<compile_context>
chip_gen: v7x
topology: tpu7x:2x2x1
jax: 0.10.0
libtpu: 0.0.40
codegen_flags: <defaults>
</compile_context>

<pallas_src>
import jax
import jax.numpy as jnp
from jax import lax
from jax.experimental import pallas as pl
from jax.experimental.pallas import tpu as pltpu

FEAT = 800          # 4 x embedding_dim(200)
EMB_DIM = 200
EPS = 1e-5          # nn.BatchNorm1d default eps


# ---------------------------------------------------------------------------
# Kernel
# ---------------------------------------------------------------------------
def _bn_relu(y, gamma, beta):
    """Training-mode BatchNorm1d (batch stats, biased var) + ReLU.

    One-pass variance, gamma pre-folded into the scale (one XLU reduction and
    one full-tile VPU multiply fewer than the naive form)."""
    mean = jnp.mean(y, axis=0, keepdims=True)
    msq = jnp.mean(y * y, axis=0, keepdims=True)
    var = msq - mean * mean
    scale = gamma * lax.rsqrt(var + EPS)          # (1, FEAT)
    shift = beta - mean * scale
    return jnp.maximum(y * scale + shift, 0.0)


def rosenet_kernel(x_ref, w1_ref, w2_ref, bn_ref, wout_ref, bout_ref,
                   res_ref, scores_ref):
    """One grid step == one RoseNetBlock; the last step also applies the final
    Linear(800, S).  res_ref is the VMEM-resident residual stream (same output
    block index on every grid step, "arbitrary" axis)."""
    i = pl.program_id(0)

    @pl.when(i == 0)
    def _():
        res_ref[...] = x_ref[...]

    h = res_ref[...]                               # (B, 800) f32
    bn = bn_ref[0]                                 # (4, 800) f32: g1,b1,g2,b2

    # layer1 (bias dropped: exactly cancelled by BN mean) -> bn -> relu
    y = jnp.dot(h.astype(jnp.bfloat16), w1_ref[0],
                preferred_element_type=jnp.float32)
    y = _bn_relu(y, bn[0:1, :], bn[1:2, :])

    # layer2 -> bn -> relu
    y = jnp.dot(y.astype(jnp.bfloat16), w2_ref[0],
                preferred_element_type=jnp.float32)
    y = _bn_relu(y, bn[2:3, :], bn[3:4, :])

    res_ref[...] = h + y                           # residual add

    # Final linear, folded into the last block step.
    @pl.when(i == pl.num_programs(0) - 1)
    def _():
        scores_ref[...] = (
            jnp.dot(res_ref[...].astype(jnp.bfloat16), wout_ref[...],
                    preferred_element_type=jnp.float32) + bout_ref[...])


# ---------------------------------------------------------------------------
# Wrapper
# ---------------------------------------------------------------------------
def rosenet_forward(x_idx, params):
    """x_idx: (B, 4) int32 -> (B, scores_size) f32."""
    pos_emb, id_emb = params["pos_emb"], params["id_emb"]

    # Embedding lookup + hstack (glue: gather has no rectangular BlockSpec).
    x = jnp.concatenate([
        jnp.take(pos_emb, x_idx[:, 0], axis=0),
        jnp.take(id_emb, x_idx[:, 1], axis=0),
        jnp.take(pos_emb, x_idx[:, 2], axis=0),
        jnp.take(id_emb, x_idx[:, 3], axis=0),
    ], axis=1).astype(jnp.float32)                 # (B, 800)

    B = x.shape[0]
    num_blocks = params["w1_t"].shape[0]
    S = params["w_out_t"].shape[1]

    res_spec = pl.BlockSpec((B, FEAT), lambda i: (0, 0))
    mat_spec = pl.BlockSpec((1, FEAT, FEAT), lambda i: (i, 0, 0))
    bn_spec = pl.BlockSpec((1, 4, FEAT), lambda i: (i, 0, 0))
    wout_spec = pl.BlockSpec((FEAT, S), lambda i: (0, 0))
    bout_spec = pl.BlockSpec((1, S), lambda i: (0, 0))
    scores_spec = pl.BlockSpec((B, S), lambda i: (0, 0))

    _, scores = pl.pallas_call(
        rosenet_kernel,
        out_shape=(jax.ShapeDtypeStruct((B, FEAT), jnp.float32),
                   jax.ShapeDtypeStruct((B, S), jnp.float32)),
        grid_spec=pltpu.PrefetchScalarGridSpec(
            num_scalar_prefetch=0,
            grid=(num_blocks,),
            in_specs=[res_spec, mat_spec, mat_spec, bn_spec,
                      wout_spec, bout_spec],
            out_specs=[res_spec, scores_spec],
        ),
        input_output_aliases={0: 0},       # reuse x's HBM buffer as residual out
        compiler_params=pltpu.CompilerParams(
            dimension_semantics=("arbitrary",)),
    )(x, params["w1_t"], params["w2_t"], params["bn"],
      params["w_out_t"], params["b_out"])
    return scores


# ---------------------------------------------------------------------------
# Pure-JAX reference (PyTorch-faithful structure, same bf16 weight numerics)
# ---------------------------------------------------------------------------
def _bn_relu_ref(y, gamma, beta):
    mean = jnp.mean(y, axis=0, keepdims=True)
    var = jnp.mean(jnp.square(y - mean), axis=0, keepdims=True)
    return jnp.maximum((y - mean) * lax.rsqrt(var + EPS) * gamma + beta, 0.0)


def rosenet_ref(x_idx, params):
    pos_emb, id_emb = params["pos_emb"], params["id_emb"]
    x = jnp.concatenate([
        pos_emb[x_idx[:, 0]], id_emb[x_idx[:, 1]],
        pos_emb[x_idx[:, 2]], id_emb[x_idx[:, 3]]], axis=1).astype(jnp.float32)
    num_blocks = params["w1_t"].shape[0]
    for i in range(num_blocks):
        h = x
        y = jnp.dot(x.astype(jnp.bfloat16), params["w1_t"][i],
                    preferred_element_type=jnp.float32) + params["b1"][i]
        y = _bn_relu_ref(y, params["bn"][i, 0], params["bn"][i, 1])
        y = jnp.dot(y.astype(jnp.bfloat16), params["w2_t"][i],
                    preferred_element_type=jnp.float32) + params["b2"][i]
        y = _bn_relu_ref(y, params["bn"][i, 2], params["bn"][i, 3])
        x = h + y
    return jnp.dot(x.astype(jnp.bfloat16), params["w_out_t"],
                   preferred_element_type=jnp.float32) + params["b_out"]


# ---------------------------------------------------------------------------
# Deterministic parameter construction
# ---------------------------------------------------------------------------
def make_params(key, *, scores_size, num_blocks, protein_length):
    num_embeddings = 150 if (protein_length > 110 or protein_length == 85) else 110
    ks = jax.random.split(key, 12)
    s = 0.02
    g1 = 1.0 + jax.random.normal(ks[4], (num_blocks, FEAT), jnp.float32) * s
    be1 = jax.random.normal(ks[5], (num_blocks, FEAT), jnp.float32) * s
    g2 = 1.0 + jax.random.normal(ks[8], (num_blocks, FEAT), jnp.float32) * s
    be2 = jax.random.normal(ks[9], (num_blocks, FEAT), jnp.float32) * s
    params = {
        "pos_emb": jax.random.normal(ks[0], (num_embeddings, EMB_DIM), jnp.float32) * s,
        "id_emb":  jax.random.normal(ks[1], (num_embeddings, EMB_DIM), jnp.float32) * s,
        # Block linear weights, pre-transposed to (in, out), stored as bf16.
        "w1_t": (jax.random.normal(ks[2], (num_blocks, FEAT, FEAT), jnp.float32) * s
                 ).astype(jnp.bfloat16),
        "w2_t": (jax.random.normal(ks[6], (num_blocks, FEAT, FEAT), jnp.float32) * s
                 ).astype(jnp.bfloat16),
        # Linear biases (used by the reference; cancelled by BN in the kernel).
        "b1": jax.random.normal(ks[3], (num_blocks, FEAT), jnp.float32) * s,
        "b2": jax.random.normal(ks[7], (num_blocks, FEAT), jnp.float32) * s,
        # Packed BN affine params: rows = [gamma1, beta1, gamma2, beta2].
        "bn": jnp.stack([g1, be1, g2, be2], axis=1),   # (num_blocks, 4, FEAT)
        # Final linear.
        "w_out_t": (jax.random.normal(ks[10], (FEAT, scores_size), jnp.float32) * s
                    ).astype(jnp.bfloat16),
        "b_out": jax.random.normal(ks[11], (1, scores_size), jnp.float32) * s,
    }
    return params, num_embeddings


# ---------------------------------------------------------------------------
if __name__ == "__main__":
    scores_size = 20
    batch_size = 8
    protein_length = 50     # -> num_embeddings = 110
    num_blocks = 2

    key = jax.random.PRNGKey(0)
    kp, kx = jax.random.split(key)
    params, num_embeddings = make_params(
        kp, scores_size=scores_size, num_blocks=num_blocks,
        protein_length=protein_length)

    # Input: (B, 4) integer indices (pos, id, pos, id).
    x_idx = jax.random.randint(kx, (batch_size, 4), 0, num_embeddings,
                               dtype=jnp.int32)

    out = jax.jit(rosenet_forward)(x_idx, params)
    out = jax.block_until_ready(out)

    ref = rosenet_ref(x_idx, params)
    assert out.shape == (batch_size, scores_size)
    # bf16-weight / bf16-matmul-input numerics -> bf16-level tolerance.
    assert jnp.allclose(out, ref, atol=5e-3, rtol=5e-3), \
        f"max abs err {jnp.max(jnp.abs(out - ref))}"

    print("KERNEL_OK")
</pallas_src>

<mosaic_0001>
module attributes {stable_mosaic.version = 11 : i64} {
  func.func @rosenet_kernel(%arg0: i32, %arg1: memref<8x800xf32, #tpu.memory_space<vmem>>, %arg2: memref<1x800x800xbf16, #tpu.memory_space<vmem>>, %arg3: memref<1x800x800xbf16, #tpu.memory_space<vmem>>, %arg4: memref<1x4x800xf32, #tpu.memory_space<vmem>>, %arg5: memref<800x20xbf16, #tpu.memory_space<vmem>>, %arg6: memref<1x20xf32, #tpu.memory_space<vmem>>, %arg7: memref<8x800xf32, #tpu.memory_space<vmem>>, %arg8: memref<8x20xf32, #tpu.memory_space<vmem>>) attributes {dimension_semantics = [#tpu.dimension_semantics<arbitrary>], iteration_bounds = array<i64: 2>, scalar_prefetch = 0 : i64, scratch_operands = 0 : i64, tpu.core_type = #tpu.core_type<tc>, window_params = [{pipeline_mode = #tpu.pipeline_mode<synchronous>, transform_indices = @transform_0, window_bounds = array<i64: 8, 800>}, {transform_indices = @transform_1, window_bounds = array<i64: 1, 800, 800>}, {transform_indices = @transform_2, window_bounds = array<i64: 1, 800, 800>}, {transform_indices = @transform_3, window_bounds = array<i64: 1, 4, 800>}, {pipeline_mode = #tpu.pipeline_mode<synchronous>, transform_indices = @transform_4, window_bounds = array<i64: 800, 20>}, {pipeline_mode = #tpu.pipeline_mode<synchronous>, transform_indices = @transform_5, window_bounds = array<i64: 1, 20>}, {pipeline_mode = #tpu.pipeline_mode<synchronous>, transform_indices = @transform_6, window_bounds = array<i64: 8, 800>}, {pipeline_mode = #tpu.pipeline_mode<synchronous>, transform_indices = @transform_7, window_bounds = array<i64: 8, 20>}]} {
    %c0_i32 = arith.constant 0 : i32
    %0 = arith.cmpi eq, %arg0, %c0_i32 : i32
    %1 = arith.extui %0 : i1 to i32
    %c0_i32_0 = arith.constant 0 : i32
    %2 = arith.cmpi ne, %1, %c0_i32_0 : i32
    scf.if %2 {
      %c0_27 = arith.constant 0 : index
      %c0_28 = arith.constant 0 : index
      %69 = vector.load %arg1[%c0_27, %c0_28] : memref<8x800xf32, #tpu.memory_space<vmem>>, vector<8x800xf32>
      %c0_29 = arith.constant 0 : index
      %c0_30 = arith.constant 0 : index
      %70 = vector.load %arg7[%c0_29, %c0_30] : memref<8x800xf32, #tpu.memory_space<vmem>>, vector<8x800xf32>
      tpu.vector_store %arg7[%c0_29, %c0_30], %69 {strides = array<i32>} : memref<8x800xf32, #tpu.memory_space<vmem>>, vector<8x800xf32>,
    } else {
    }
    %c0 = arith.constant 0 : index
    %c0_1 = arith.constant 0 : index
    %3 = vector.load %arg7[%c0, %c0_1] : memref<8x800xf32, #tpu.memory_space<vmem>>, vector<8x800xf32>
    %c0_2 = arith.constant 0 : index
    %c0_3 = arith.constant 0 : index
    %c0_4 = arith.constant 0 : index
    %4 = vector.load %arg4[%c0_2, %c0_3, %c0_4] : memref<1x4x800xf32, #tpu.memory_space<vmem>>, vector<1x4x800xf32>
    %5 = vector.shape_cast %4 : vector<1x4x800xf32> to vector<4x800xf32>
    %6 = arith.truncf %3 : vector<8x800xf32> to vector<8x800xbf16>
    %c0_5 = arith.constant 0 : index
    %c0_6 = arith.constant 0 : index
    %c0_7 = arith.constant 0 : index
    %7 = vector.load %arg2[%c0_5, %c0_6, %c0_7] : memref<1x800x800xbf16, #tpu.memory_space<vmem>>, vector<1x800x800xbf16>
    %8 = vector.shape_cast %7 : vector<1x800x800xbf16> to vector<800x800xbf16>
    %cst = arith.constant dense<0.000000e+00> : vector<8x800xf32>
    %9 = tpu.matmul %6, %8, %cst {dimension_numbers = #tpu.dot_dimension_numbers<[1], [0], [0], [1], [0, 0, 1, 1], [], []>} : vector<8x800xbf16>, vector<800x800xbf16>, vector<8x800xf32> -> vector<8x800xf32>
    %10 = vector.extract_strided_slice %5 {offsets = [0, 0], sizes = [1, 800], strides = [1, 1]} : vector<4x800xf32> to vector<1x800xf32>
    %11 = vector.extract_strided_slice %5 {offsets = [1, 0], sizes = [1, 800], strides = [1, 1]} : vector<4x800xf32> to vector<1x800xf32>
    %cst_8 = arith.constant dense<0.000000e+00> : vector<800xf32>
    %12 = vector.multi_reduction <add>, %9, %cst_8 [0] : vector<8x800xf32> to vector<800xf32>
    %13 = vector.shape_cast %12 : vector<800xf32> to vector<1x800xf32>
    %cst_9 = arith.constant 8.000000e+00 : f32
    %14 = vector.broadcast %cst_9 : f32 to vector<1x800xf32>
    %15 = arith.divf %13, %14 : vector<1x800xf32>
    %16 = arith.mulf %9, %9 : vector<8x800xf32>
    %cst_10 = arith.constant dense<0.000000e+00> : vector<800xf32>
    %17 = vector.multi_reduction <add>, %16, %cst_10 [0] : vector<8x800xf32> to vector<800xf32>
    %18 = vector.shape_cast %17 : vector<800xf32> to vector<1x800xf32>
    %cst_11 = arith.constant 8.000000e+00 : f32
    %19 = vector.broadcast %cst_11 : f32 to vector<1x800xf32>
    %20 = arith.divf %18, %19 : vector<1x800xf32>
    %21 = arith.mulf %15, %15 : vector<1x800xf32>
    %22 = arith.subf %20, %21 : vector<1x800xf32>
    %cst_12 = arith.constant 9.99999974E-6 : f32
    %23 = vector.broadcast %cst_12 : f32 to vector<1x800xf32>
    %24 = arith.addf %22, %23 : vector<1x800xf32>
    %25 = math.rsqrt %24 : vector<1x800xf32>
    %26 = arith.mulf %10, %25 : vector<1x800xf32>
    %27 = arith.mulf %15, %26 : vector<1x800xf32>
    %28 = arith.subf %11, %27 : vector<1x800xf32>
    %29 = vector.broadcast %26 : vector<1x800xf32> to vector<8x800xf32>
    %30 = arith.mulf %9, %29 : vector<8x800xf32>
    %31 = vector.broadcast %28 : vector<1x800xf32> to vector<8x800xf32>
    %32 = arith.addf %30, %31 : vector<8x800xf32>
    %cst_13 = arith.constant 0.000000e+00 : f32
    %33 = vector.broadcast %cst_13 : f32 to vector<8x800xf32>
    %34 = arith.maximumf %32, %33 : vector<8x800xf32>
    %35 = arith.truncf %34 : vector<8x800xf32> to vector<8x800xbf16>
    %c0_14 = arith.constant 0 : index
    %c0_15 = arith.constant 0 : index
    %c0_16 = arith.constant 0 : index
    %36 = vector.load %arg3[%c0_14, %c0_15, %c0_16] : memref<1x800x800xbf16, #tpu.memory_space<vmem>>, vector<1x800x800xbf16>
    %37 = vector.shape_cast %36 : vector<1x800x800xbf16> to vector<800x800xbf16>
    %cst_17 = arith.constant dense<0.000000e+00> : vector<8x800xf32>
    %38 = tpu.matmul %35, %37, %cst_17 {dimension_numbers = #tpu.dot_dimension_numbers<[1], [0], [0], [1], [0, 0, 1, 1], [], []>} : vector<8x800xbf16>, vector<800x800xbf16>, vector<8x800xf32> -> vector<8x800xf32>
    %39 = vector.extract_strided_slice %5 {offsets = [2, 0], sizes = [1, 800], strides = [1, 1]} : vector<4x800xf32> to vector<1x800xf32>
    %40 = vector.extract_strided_slice %5 {offsets = [3, 0], sizes = [1, 800], strides = [1, 1]} : vector<4x800xf32> to vector<1x800xf32>
    %cst_18 = arith.constant dense<0.000000e+00> : vector<800xf32>
    %41 = vector.multi_reduction <add>, %38, %cst_18 [0] : vector<8x800xf32> to vector<800xf32>
    %42 = vector.shape_cast %41 : vector<800xf32> to vector<1x800xf32>
    %cst_19 = arith.constant 8.000000e+00 : f32
    %43 = vector.broadcast %cst_19 : f32 to vector<1x800xf32>
    %44 = arith.divf %42, %43 : vector<1x800xf32>
    %45 = arith.mulf %38, %38 : vector<8x800xf32>
    %cst_20 = arith.constant dense<0.000000e+00> : vector<800xf32>
    %46 = vector.multi_reduction <add>, %45, %cst_20 [0] : vector<8x800xf32> to vector<800xf32>
    %47 = vector.shape_cast %46 : vector<800xf32> to vector<1x800xf32>
    %cst_21 = arith.constant 8.000000e+00 : f32
    %48 = vector.broadcast %cst_21 : f32 to vector<1x800xf32>
    %49 = arith.divf %47, %48 : vector<1x800xf32>
    %50 = arith.mulf %44, %44 : vector<1x800xf32>
    %51 = arith.subf %49, %50 : vector<1x800xf32>
    %cst_22 = arith.constant 9.99999974E-6 : f32
    %52 = vector.broadcast %cst_22 : f32 to vector<1x800xf32>
    %53 = arith.addf %51, %52 : vector<1x800xf32>
    %54 = math.rsqrt %53 : vector<1x800xf32>
    %55 = arith.mulf %39, %54 : vector<1x800xf32>
    %56 = arith.mulf %44, %55 : vector<1x800xf32>
    %57 = arith.subf %40, %56 : vector<1x800xf32>
    %58 = vector.broadcast %55 : vector<1x800xf32> to vector<8x800xf32>
    %59 = arith.mulf %38, %58 : vector<8x800xf32>
    %60 = vector.broadcast %57 : vector<1x800xf32> to vector<8x800xf32>
    %61 = arith.addf %59, %60 : vector<8x800xf32>
    %cst_23 = arith.constant 0.000000e+00 : f32
    %62 = vector.broadcast %cst_23 : f32 to vector<8x800xf32>
    %63 = arith.maximumf %61, %62 : vector<8x800xf32>
    %64 = arith.addf %3, %63 : vector<8x800xf32>
    %c0_24 = arith.constant 0 : index
    %c0_25 = arith.constant 0 : index
    %65 = vector.load %arg7[%c0_24, %c0_25] : memref<8x800xf32, #tpu.memory_space<vmem>>, vector<8x800xf32>
    tpu.vector_store %arg7[%c0_24, %c0_25], %64 {strides = array<i32>} : memref<8x800xf32, #tpu.memory_space<vmem>>, vector<8x800xf32>,
    %c1_i32 = arith.constant 1 : i32
    %66 = arith.cmpi eq, %arg0, %c1_i32 : i32
    %67 = arith.extui %66 : i1 to i32
    %c0_i32_26 = arith.constant 0 : i32
    %68 = arith.cmpi ne, %67, %c0_i32_26 : i32
    scf.if %68 {
      %c0_27 = arith.constant 0 : index
      %c0_28 = arith.constant 0 : index
      %69 = vector.load %arg7[%c0_27, %c0_28] : memref<8x800xf32, #tpu.memory_space<vmem>>, vector<8x800xf32>
      %70 = arith.truncf %69 : vector<8x800xf32> to vector<8x800xbf16>
      %c0_29 = arith.constant 0 : index
      %c0_30 = arith.constant 0 : index
      %71 = vector.load %arg5[%c0_29, %c0_30] : memref<800x20xbf16, #tpu.memory_space<vmem>>, vector<800x20xbf16>
      %cst_31 = arith.constant dense<0.000000e+00> : vector<8x20xf32>
      %72 = tpu.matmul %70, %71, %cst_31 {dimension_numbers = #tpu.dot_dimension_numbers<[1], [0], [0], [1], [0, 0, 1, 1], [], []>} : vector<8x800xbf16>, vector<800x20xbf16>, vector<8x20xf32> -> vector<8x20xf32>
      %c0_32 = arith.constant 0 : index
      %c0_33 = arith.constant 0 : index
      %73 = vector.load %arg6[%c0_32, %c0_33] : memref<1x20xf32, #tpu.memory_space<vmem>>, vector<1x20xf32>
      %74 = vector.broadcast %73 : vector<1x20xf32> to vector<8x20xf32>
      %75 = arith.addf %72, %74 : vector<8x20xf32>
      %c0_34 = arith.constant 0 : index
      %c0_35 = arith.constant 0 : index
      %76 = vector.load %arg8[%c0_34, %c0_35] : memref<8x20xf32, #tpu.memory_space<vmem>>, vector<8x20xf32>
      tpu.vector_store %arg8[%c0_34, %c0_35], %75 {strides = array<i32>} : memref<8x20xf32, #tpu.memory_space<vmem>>, vector<8x20xf32>,
    } else {
    }
    return
  }
  func.func @transform_0(%arg0: i32) -> (i32, i32) {
    %c0_i32 = arith.constant 0 : i32
    %c0_i32_0 = arith.constant 0 : i32
    %c0_i32_1 = arith.constant 0 : i32
    return %c0_i32, %c0_i32_0 : i32, i32
  }
  func.func @transform_1(%arg0: i32) -> (i32, i32, i32) {
    %c0_i32 = arith.constant 0 : i32
    %c0_i32_0 = arith.constant 0 : i32
    %c0_i32_1 = arith.constant 0 : i32
    return %arg0, %c0_i32, %c0_i32_0 : i32, i32, i32
  }
  func.func @transform_2(%arg0: i32) -> (i32, i32, i32) {
    %c0_i32 = arith.constant 0 : i32
    %c0_i32_0 = arith.constant 0 : i32
    %c0_i32_1 = arith.constant 0 : i32
    return %arg0, %c0_i32, %c0_i32_0 : i32, i32, i32
  }
  func.func @transform_3(%arg0: i32) -> (i32, i32, i32) {
    %c0_i32 = arith.constant 0 : i32
    %c0_i32_0 = arith.constant 0 : i32
    %c0_i32_1 = arith.constant 0 : i32
    return %arg0, %c0_i32, %c0_i32_0 : i32, i32, i32
  }
  func.func @transform_4(%arg0: i32) -> (i32, i32) {
    %c0_i32 = arith.constant 0 : i32
    %c0_i32_0 = arith.constant 0 : i32
    %c0_i32_1 = arith.constant 0 : i32
    return %c0_i32, %c0_i32_0 : i32, i32
  }
  func.func @transform_5(%arg0: i32) -> (i32, i32) {
    %c0_i32 = arith.constant 0 : i32
    %c0_i32_0 = arith.constant 0 : i32
    %c0_i32_1 = arith.constant 0 : i32
    return %c0_i32, %c0_i32_0 : i32, i32
  }
  func.func @transform_6(%arg0: i32) -> (i32, i32) {
    %c0_i32 = arith.constant 0 : i32
    %c0_i32_0 = arith.constant 0 : i32
    %c0_i32_1 = arith.constant 0 : i32
    return %c0_i32, %c0_i32_0 : i32, i32
  }
  func.func @transform_7(%arg0: i32) -> (i32, i32) {
    %c0_i32 = arith.constant 0 : i32
    %c0_i32_0 = arith.constant 0 : i32
    %c0_i32_1 = arith.constant 0 : i32
    return %c0_i32, %c0_i32_0 : i32, i32
  }
}

</mosaic_0001>

<llo_original>
// kernel: rosenet_forward.1
$region0: #{rosenet_forward.1}
  #allocation0 [shape = 'u32[]', space=smem, size = 0x4, offset = 0x4, fixed_abs, tag = 'smem constant byte address 0x4 - core index']
  #allocation1 [shape = 'u32[144,128]{1,0:T(1,128)}', space=vmem, size = 0x12000, scoped, tag = 'internal scratch']
  %s0 = inlined_call_operand.vmem [shape: f32[8,800], index: 0, kind: input, shape index: {}, may-alias: {0,6}]
  %s1 = inlined_call_operand.hbm [shape: bf16[2,800,800], index: 1, kind: input, shape index: {}]
  %s2 = inlined_call_operand.hbm [shape: bf16[2,800,800], index: 2, kind: input, shape index: {}]
  %s3 = inlined_call_operand.hbm [shape: f32[2,4,800], index: 3, kind: input, shape index: {}]
  %s4 = inlined_call_operand.vmem [shape: bf16[800,20], index: 4, kind: input, shape index: {}]
  %s5 = inlined_call_operand.hbm [shape: f32[1,20], index: 5, kind: input, shape index: {}]
  %s6 = inlined_call_operand.vmem [shape: f32[8,800], index: 6, kind: output, shape index: {0}, may-alias: {0,6}]
  %s7 = inlined_call_operand.hbm [shape: f32[8,20], index: 7, kind: output, shape index: {1}]
  %8 = xla_tuple %s6, %s7
  %s9 = sld [smem:[#allocation0]]
  $region89: #{rosenet_forward.1} parent=0
    _
  %s11 = ssub.s32 1, %s9
  %s12 = scalar_select 0, %s11, %s9
  $region1: #{rosenet_forward.1} parent=0
    #allocation2 [shape = 'u8[2867200]{0}', space=vmem, size = 0x2bc000, scoped, tag = 'input window, operand 1']
    #allocation3 [shape = 's32[2]{0}', space=sflag, size = 0x8, scoped, tag = 'scoped memory for rosenet_forward.1']
    #allocation4 [shape = 's32[2]{0}', space=sflag, size = 0x8, scoped, tag = 'scoped memory for rosenet_forward.1']
    #allocation5 [shape = 'u8[2867200]{0}', space=vmem, size = 0x2bc000, scoped, tag = 'input window, operand 2']
    #allocation6 [shape = 's32[2]{0}', space=sflag, size = 0x8, scoped, tag = 'scoped memory for rosenet_forward.1']
    #allocation7 [shape = 'u8[28672]{0}', space=vmem, size = 0x7000, scoped, tag = 'input window, operand 3']
    #allocation8 [shape = 'u8[512]{0}', space=vmem, size = 0x400, scoped, tag = 'input window, operand 5, single buffered']
    #allocation9 [shape = 's32[1]{0}', space=sflag, size = 0x4, scoped, tag = 'scoped memory for rosenet_forward.1']
    #allocation10 [shape = 'u8[4096]{0}', space=vmem, size = 0x1000, scoped, tag = 'output window, operand 1, single buffered']
    %13 = vsyncpa [#allocation3], 0
    %s14 = scalar_lea.sflag [#allocation3], 1
    %15 = vsyncpa %s14, 0
    %16 = vsyncpa [#allocation6], 0
    %s17 = scalar_lea.sflag [#allocation6], 1
    %18 = vsyncpa %s17, 0
    %19 = vsyncpa [#allocation9], 0
    %20 = vsyncpa [#allocation4], 0
    loop: start=0, step=1, limit=4
    $region2: #{rosenet_forward.1} parent=1 // loop_pre_header
      _
    $region3: #{rosenet_forward.1} parent=1 // loop_header
      %s22 = sphi 0, %s26
      %p23 = scmp.ge.s32.totalorder %s22, 4
      %s30 = sphi 0, %s30
      %s32 = sphi 0, %s30
      %s33 = sphi 0, %s32
      %s47 = sphi 0, %s33
      %s53 = sphi 0, %s55
      %s56 = sphi 0, %s53
      %s57 = sphi 0, %s56
      %s73 = sphi 0, %s57
      %s79 = sphi 0, %s81
      %s82 = sphi 0, %s79
      %s83 = sphi 0, %s82
      %s99 = sphi 0, %s83
      %s105 = sphi 0, %s107
      %s108 = sphi 0, %s105
      %s109 = sphi 0, %s108
      %s125 = sphi 0, %s109
      %s129 = sphi 0, %s129
      %s131 = sphi 0, %s129
      %s132 = sphi 0, %s131
      %s146 = sphi 0, %s132
      %s150 = sphi 0, %s150
      %s152 = sphi 0, %s150
      %s153 = sphi 0, %s152
      %s167 = sphi 0, %s153
      %s171 = sphi 0, %s171
      %s173 = sphi 0, %s171
      %s174 = sphi 0, %s173
      %s188 = sphi 0, %s174
      %s192 = sphi 0, %s192
      %s194 = sphi 0, %s192
      %s195 = sphi 0, %s194
      %s209 = sphi 0, %s195
    $region4: #{rosenet_forward.1} parent=1 // loop_header_branch
      %25 = sbr.rel (%p23) target = $region8
    $region5: #{rosenet_forward.1} parent=1 // loop_body
      %s27 = ssub.s32 %s22, 1
      %s28 = ssub.s32 %s22, 2
      %s29 = sadd.s32 %s22, 1
      %s31 = sadd.s32 %s30, 1
      %p34 = scmp.eq.s32.totalorder %s22, 1
      %p35 = scmp.ne.s32.totalorder %s30, %s32
      %p36 = scmp.eq.s32.totalorder %s22, 0
      %p37 = por %p35, %p36
      %p38 = scmp.ne.s32.totalorder %s30, %s32
      %p39 = scmp.eq.s32.totalorder %s27, 1
      %p40 = por %p38, %p39
      %p41 = scmp.ne.s32.totalorder %s32, %s33
      %p42 = scmp.eq.s32.totalorder %s27, 0
      %p43 = por %p41, %p42
      %p44 = scmp.ne.s32.totalorder %s32, %s33
      %p45 = scmp.eq.s32.totalorder %s28, 1
      %p46 = por %p44, %p45
      %p48 = scmp.ne.s32.totalorder %s33, %s47
      %p49 = scmp.eq.s32.totalorder %s28, 0
      %p50 = por %p48, %p49
      %s51 = ssub.s32 %s22, %s29
      %p52 = scmp.eq.s32.totalorder %s51, 0
      %s54 = sadd.s32 %s53, 1
      %s55 = scalar_select %p52, %s53, %s54
      %p58 = pneg %p52
      %p59 = scmp.eq.s32.totalorder %s22, 1
      %p60 = por %p58, %p59
      %p61 = scmp.ne.s32.totalorder %s53, %s56
      %p62 = scmp.eq.s32.totalorder %s22, 0
      %p63 = por %p61, %p62
      %p64 = scmp.ne.s32.totalorder %s53, %s56
      %p65 = scmp.eq.s32.totalorder %s27, 1
      %p66 = por %p64, %p65
      %p67 = scmp.ne.s32.totalorder %s56, %s57
      %p68 = scmp.eq.s32.totalorder %s27, 0
      %p69 = por %p67, %p68
      %p70 = scmp.ne.s32.totalorder %s56, %s57
      %p71 = scmp.eq.s32.totalorder %s28, 1
      %p72 = por %p70, %p71
      %p74 = scmp.ne.s32.totalorder %s57, %s73
      %p75 = scmp.eq.s32.totalorder %s28, 0
      %p76 = por %p74, %p75
      %s77 = ssub.s32 %s22, %s29
      %p78 = scmp.eq.s32.totalorder %s77, 0
      %s80 = sadd.s32 %s79, 1
      %s81 = scalar_select %p78, %s79, %s80
      %p84 = pneg %p78
      %p85 = scmp.eq.s32.totalorder %s22, 1
      %p86 = por %p84, %p85
      %p87 = scmp.ne.s32.totalorder %s79, %s82
      %p88 = scmp.eq.s32.totalorder %s22, 0
      %p89 = por %p87, %p88
      %p90 = scmp.ne.s32.totalorder %s79, %s82
      %p91 = scmp.eq.s32.totalorder %s27, 1
      %p92 = por %p90, %p91
      %p93 = scmp.ne.s32.totalorder %s82, %s83
      %p94 = scmp.eq.s32.totalorder %s27, 0
      %p95 = por %p93, %p94
      %p96 = scmp.ne.s32.totalorder %s82, %s83
      %p97 = scmp.eq.s32.totalorder %s28, 1
      %p98 = por %p96, %p97
      %p100 = scmp.ne.s32.totalorder %s83, %s99
      %p101 = scmp.eq.s32.totalorder %s28, 0
      %p102 = por %p100, %p101
      %s103 = ssub.s32 %s22, %s29
      %p104 = scmp.eq.s32.totalorder %s103, 0
      %s106 = sadd.s32 %s105, 1
      %s107 = scalar_select %p104, %s105, %s106
      %p110 = pneg %p104
      %p111 = scmp.eq.s32.totalorder %s22, 1
      %p112 = por %p110, %p111
      %p113 = scmp.ne.s32.totalorder %s105, %s108
      %p114 = scmp.eq.s32.totalorder %s22, 0
      %p115 = por %p113, %p114
      %p116 = scmp.ne.s32.totalorder %s105, %s108
      %p117 = scmp.eq.s32.totalorder %s27, 1
      %p118 = por %p116, %p117
      %p119 = scmp.ne.s32.totalorder %s108, %s109
      %p120 = scmp.eq.s32.totalorder %s27, 0
      %p121 = por %p119, %p120
      %p122 = scmp.ne.s32.totalorder %s108, %s109
      %p123 = scmp.eq.s32.totalorder %s28, 1
      %p124 = por %p122, %p123
      %p126 = scmp.ne.s32.totalorder %s109, %s125
      %p127 = scmp.eq.s32.totalorder %s28, 0
      %p128 = por %p126, %p127
      %s130 = sadd.s32 %s129, 1
      %p133 = scmp.eq.s32.totalorder %s22, 1
      %p134 = scmp.ne.s32.totalorder %s129, %s131
      %p135 = scmp.eq.s32.totalorder %s22, 0
      %p136 = por %p134, %p135
      %p137 = scmp.ne.s32.totalorder %s129, %s131
      %p138 = scmp.eq.s32.totalorder %s27, 1
      %p139 = por %p137, %p138
      %p140 = scmp.ne.s32.totalorder %s131, %s132
      %p141 = scmp.eq.s32.totalorder %s27, 0
      %p142 = por %p140, %p141
      %p143 = scmp.ne.s32.totalorder %s131, %s132
      %p144 = scmp.eq.s32.totalorder %s28, 1
      %p145 = por %p143, %p144
      %p147 = scmp.ne.s32.totalorder %s132, %s146
      %p148 = scmp.eq.s32.totalorder %s28, 0
      %p149 = por %p147, %p148
      %s151 = sadd.s32 %s150, 1
      %p154 = scmp.eq.s32.totalorder %s22, 1
      %p155 = scmp.ne.s32.totalorder %s150, %s152
      %p156 = scmp.eq.s32.totalorder %s22, 0
      %p157 = por %p155, %p156
      %p158 = scmp.ne.s32.totalorder %s150, %s152
      %p159 = scmp.eq.s32.totalorder %s27, 1
      %p160 = por %p158, %p159
      %p161 = scmp.ne.s32.totalorder %s152, %s153
      %p162 = scmp.eq.s32.totalorder %s27, 0
      %p163 = por %p161, %p162
      %p164 = scmp.ne.s32.totalorder %s152, %s153
      %p165 = scmp.eq.s32.totalorder %s28, 1
      %p166 = por %p164, %p165
      %p168 = scmp.ne.s32.totalorder %s153, %s167
      %p169 = scmp.eq.s32.totalorder %s28, 0
      %p170 = por %p168, %p169
      %s172 = sadd.s32 %s171, 1
      %p175 = scmp.eq.s32.totalorder %s22, 1
      %p176 = scmp.ne.s32.totalorder %s171, %s173
      %p177 = scmp.eq.s32.totalorder %s22, 0
      %p178 = por %p176, %p177
      %p179 = scmp.ne.s32.totalorder %s171, %s173
      %p180 = scmp.eq.s32.totalorder %s27, 1
      %p181 = por %p179, %p180
      %p182 = scmp.ne.s32.totalorder %s173, %s174
      %p183 = scmp.eq.s32.totalorder %s27, 0
      %p184 = por %p182, %p183
      %p185 = scmp.ne.s32.totalorder %s173, %s174
      %p186 = scmp.eq.s32.totalorder %s28, 1
      %p187 = por %p185, %p186
      %p189 = scmp.ne.s32.totalorder %s174, %s188
      %p190 = scmp.eq.s32.totalorder %s28, 0
      %p191 = por %p189, %p190
      %s193 = sadd.s32 %s192, 1
      %p196 = scmp.eq.s32.totalorder %s22, 1
      %p197 = scmp.ne.s32.totalorder %s192, %s194
      %p198 = scmp.eq.s32.totalorder %s22, 0
      %p199 = por %p197, %p198
      %p200 = scmp.ne.s32.totalorder %s192, %s194
      %p201 = scmp.eq.s32.totalorder %s27, 1
      %p202 = por %p200, %p201
      %p203 = scmp.ne.s32.totalorder %s194, %s195
      %p204 = scmp.eq.s32.totalorder %s27, 0
      %p205 = por %p203, %p204
      %p206 = scmp.ne.s32.totalorder %s194, %s195
      %p207 = scmp.eq.s32.totalorder %s28, 1
      %p208 = por %p206, %p207
      %p210 = scmp.ne.s32.totalorder %s195, %s209
      %p211 = scmp.eq.s32.totalorder %s28, 0
      %p212 = por %p210, %p211
      %p213 = scmp.le.s32.totalorder 1, %s22
      %p214 = scmp.lt.s32.totalorder %s22, 3
      %p215 = pnand %p213, %p214
      %p216 = pneg %p215
      // Predicated region
      $region9: #{rosenet_forward.1} parent=5 // pred_check
        _
      $region10: #{rosenet_forward.1} parent=5 // pred_check_branch
        %218 = sbr.rel (%p215) target = $region12
      $region11: #{rosenet_forward.1} parent=5 // pred_region
        %s219 = ssub.s32 %s22, 1
        // Predicated region
        $region13: #{rosenet_forward.1} parent=11 // pred_check
          %p220 = pneg %p43
        $region14: #{rosenet_forward.1} parent=11 // pred_check_branch
          %222 = sbr.rel (%p220) target = $region16
        $region15: #{rosenet_forward.1} parent=11 // pred_region
          _
        $region16: #{rosenet_forward.1} parent=11 // pred_fallthru
          _
        // Predicated region
        $region17: #{rosenet_forward.1} parent=11 // pred_check
          %p223 = pneg %p142
        $region18: #{rosenet_forward.1} parent=11 // pred_check_branch
          %225 = sbr.rel (%p223) target = $region20
        $region19: #{rosenet_forward.1} parent=11 // pred_region
          _
        $region20: #{rosenet_forward.1} parent=11 // pred_fallthru
          _
        // Predicated region
        $region21: #{rosenet_forward.1} parent=11 // pred_check
          %p226 = pneg %p163
        $region22: #{rosenet_forward.1} parent=11 // pred_check_branch
          %228 = sbr.rel (%p226) target = $region24
        $region23: #{rosenet_forward.1} parent=11 // pred_region
          %s230 = ssub.s32 16, 16
          %231 = vsyncadd [#allocation9], %s230
          %s233 = sshll.u32 [#allocation8], 4
          %s234 = int_to_ptr.vmem [resolvable:$true] %s233
          %236 = dma.hbm_to_vmem [thread:$0]  %s5, 16, %s234, [#allocation9]
        $region24: #{rosenet_forward.1} parent=11 // pred_fallthru
          _
      $region12: #{rosenet_forward.1} parent=5 // pred_fallthru
        _
      %p237 = scmp.lt.s32.totalorder %s22, 2
      // Predicated region
      $region25: #{rosenet_forward.1} parent=5 // pred_check
        %p238 = pneg %p237
      $region26: #{rosenet_forward.1} parent=5 // pred_check_branch
        %240 = sbr.rel (%p238) target = $region28
      $region27: #{rosenet_forward.1} parent=5 // pred_region
        // Predicated region
        $region29: #{rosenet_forward.1} parent=27 // pred_check
          %p241 = pneg %p63
        $region30: #{rosenet_forward.1} parent=27 // pred_check_branch
          %243 = sbr.rel (%p241) target = $region32
        $region31: #{rosenet_forward.1} parent=27 // pred_region
          %s244 = sand.u32 %s53, 1
          %s245 = scalar_lea.sflag [#allocation3], %s244
          %s246 = sand.u32 %s53, 1
          %s247 = smul.addr %s246, 2800
          %s248 = scalar_lea.vmem [#allocation2], %s247
          %s250 = ssub.s32 44800, 44800
          %251 = vsyncadd %s245, %s250
          %s252 = smul.addr %s22, 700
          %s253 = smul.addr %s252, 64
          %s254 = scalar_lea.hbm %s1, %s253
          %s255 = sshll.u32 %s248, 4
          %s256 = int_to_ptr.vmem [resolvable:$true] %s255
          %261 = dma.hbm_to_vmem [thread:$0]  %s254, 44800, %s256, %s245, 448, 448, 28
        $region32: #{rosenet_forward.1} parent=27 // pred_fallthru
          _
        // Predicated region
        $region33: #{rosenet_forward.1} parent=27 // pred_check
          %p262 = pneg %p89
        $region34: #{rosenet_forward.1} parent=27 // pred_check_branch
          %264 = sbr.rel (%p262) target = $region36
        $region35: #{rosenet_forward.1} parent=27 // pred_region
          %s265 = sand.u32 %s22, 1
          %s266 = scalar_lea.sflag [#allocation6], %s265
          %s267 = sand.u32 %s79, 1
          %s268 = smul.addr %s267, 2800
          %s269 = scalar_lea.vmem [#allocation5], %s268
          %s271 = ssub.s32 44800, 44800
          %272 = vsyncadd %s266, %s271
          %s273 = smul.addr %s22, 700
          %s274 = smul.addr %s273, 64
          %s275 = scalar_lea.hbm %s2, %s274
          %s276 = sshll.u32 %s269, 4
          %s277 = int_to_ptr.vmem [resolvable:$true] %s276
          %282 = dma.hbm_to_vmem [thread:$0]  %s275, 44800, %s277, %s266, 448, 448, 28
        $region36: #{rosenet_forward.1} parent=27 // pred_fallthru
          _
        // Predicated region
        $region37: #{rosenet_forward.1} parent=27 // pred_check
          %p283 = pneg %p115
        $region38: #{rosenet_forward.1} parent=27 // pred_check_branch
          %285 = sbr.rel (%p283) target = $region40
        $region39: #{rosenet_forward.1} parent=27 // pred_region
          %s286 = sand.u32 %s22, 1
          %s287 = scalar_lea.sflag [#allocation6], %s286
          %s288 = sand.u32 %s105, 1
          %s289 = smul.addr %s288, 28
          %s290 = scalar_lea.vmem [#allocation7], %s289
          %s292 = ssub.s32 448, 448
          %293 = vsyncadd %s287, %s292
          %s294 = smul.addr %s22, 7
          %s295 = smul.addr %s294, 64
          %s296 = scalar_lea.hbm %s3, %s295
          %s298 = sshll.u32 %s290, 4
          %s299 = int_to_ptr.vmem [resolvable:$true] %s298
          %301 = dma.hbm_to_vmem [thread:$0]  %s296, 448, %s299, %s287
        $region40: #{rosenet_forward.1} parent=27 // pred_fallthru
          _
      $region28: #{rosenet_forward.1} parent=5 // pred_fallthru
        _
      %p302 = scmp.le.s32.totalorder 1, %s22
      %p303 = scmp.lt.s32.totalorder %s22, 3
      %p304 = pnand %p302, %p303
      %p305 = pneg %p304
      // Predicated region
      $region41: #{rosenet_forward.1} parent=5 // pred_check
        _
      $region42: #{rosenet_forward.1} parent=5 // pred_check_branch
        %307 = sbr.rel (%p304) target = $region44
      $region43: #{rosenet_forward.1} parent=5 // pred_region
        %s308 = ssub.s32 %s22, 1
        %s309 = sand.u32 %s56, 1
        %s310 = scalar_lea.sflag [#allocation3], %s309
        %s311 = sand.u32 %s56, 1
        %s312 = smul.addr %s311, 2800
        %s313 = scalar_lea.vmem [#allocation2], %s312
        // Predicated region
        $region45: #{rosenet_forward.1} parent=43 // pred_check
          %p314 = pneg %p69
        $region46: #{rosenet_forward.1} parent=43 // pred_check_branch
          %316 = sbr.rel (%p314) target = $region48
        $region47: #{rosenet_forward.1} parent=43 // pred_region
          %317 = dma.done %s310, 44800
        $region48: #{rosenet_forward.1} parent=43 // pred_fallthru
          _
        %s318 = sand.u32 %s27, 1
        %s319 = scalar_lea.sflag [#allocation6], %s318
        %s320 = sand.u32 %s82, 1
        %s321 = smul.addr %s320, 2800
        %s322 = scalar_lea.vmem [#allocation5], %s321
        // Predicated region
        $region49: #{rosenet_forward.1} parent=43 // pred_check
          %p323 = pneg %p95
        $region50: #{rosenet_forward.1} parent=43 // pred_check_branch
          %325 = sbr.rel (%p323) target = $region52
        $region51: #{rosenet_forward.1} parent=43 // pred_region
          %326 = dma.done %s319, 44800
        $region52: #{rosenet_forward.1} parent=43 // pred_fallthru
          _
        %s327 = sand.u32 %s27, 1
        %s328 = scalar_lea.sflag [#allocation6], %s327
        %s329 = sand.u32 %s108, 1
        %s330 = smul.addr %s329, 28
        %s331 = scalar_lea.vmem [#allocation7], %s330
        // Predicated region
        $region53: #{rosenet_forward.1} parent=43 // pred_check
          %p332 = pneg %p121
        $region54: #{rosenet_forward.1} parent=43 // pred_check_branch
          %334 = sbr.rel (%p332) target = $region56
        $region55: #{rosenet_forward.1} parent=43 // pred_region
          %335 = dma.done %s328, 448
        $region56: #{rosenet_forward.1} parent=43 // pred_fallthru
          _
        // Predicated region
        $region57: #{rosenet_forward.1} parent=43 // pred_check
          %p336 = pneg %p163
        $region58: #{rosenet_forward.1} parent=43 // pred_check_branch
          %338 = sbr.rel (%p336) target = $region60
        $region59: #{rosenet_forward.1} parent=43 // pred_region
          %339 = dma.done [#allocation9], 16
        $region60: #{rosenet_forward.1} parent=43 // pred_fallthru
          _
        %p340 = pneg %p43
        %p341 = pneg %p40
        %s342 = sand.u32 %s56, 1
        %s343 = scalar_lea.sflag [#allocation3], %s342
        %s344 = sand.u32 %s56, 1
        %s345 = smul.addr %s344, 2800
        %s346 = scalar_lea.vmem [#allocation2], %s345
        %p347 = pneg %p69
        %p348 = pneg %p66
        %s349 = sand.u32 %s27, 1
        %s350 = scalar_lea.sflag [#allocation6], %s349
        %s351 = sand.u32 %s82, 1
        %s352 = smul.addr %s351, 2800
        %s353 = scalar_lea.vmem [#allocation5], %s352
        %p354 = pneg %p95
        %p355 = pneg %p92
        %s356 = sand.u32 %s27, 1
        %s357 = scalar_lea.sflag [#allocation6], %s356
        %s358 = sand.u32 %s108, 1
        %s359 = smul.addr %s358, 28
        %s360 = scalar_lea.vmem [#allocation7], %s359
        %p361 = pneg %p121
        %p362 = pneg %p118
        %p363 = pneg %p142
        %p364 = pneg %p139
        %p365 = pneg %p163
        %p366 = pneg %p160
        %p367 = pneg %p184
        %p368 = pneg %p181
        %p369 = pneg %p205
        %p370 = pneg %p202
        %p372 = scmp.eq.s32.totalorder %s27, 0
        // Predicated region
        $region61: #{rosenet_forward.1} parent=43 // pred_check
          %p373 = pneg %p372
        $region62: #{rosenet_forward.1} parent=43 // pred_check_branch
          %375 = sbr.rel (%p373) target = $region64
        $region63: #{rosenet_forward.1} parent=43 // pred_region
          %v376 = vld [vmem:[%s0] sm:$0xff]
          %v377 = vld [vmem:[%s0 + $0x8] sm:$0xff]
          %v378 = vld [vmem:[%s0 + $0x10] sm:$0xff]
          %v379 = vld [vmem:[%s0 + $0x18] sm:$0xff]
          %v380 = vld [vmem:[%s0 + $0x20] sm:$0xff]
          %v381 = vld [vmem:[%s0 + $0x28] sm:$0xff]
          %v382 = vld [vmem:[%s0 + $0x30] sm:$0xff]
          %383 = vst [vmem:[%s6] sm:$0xff] %v376
          %384 = vst [vmem:[%s6 + $0x8] sm:$0xff] %v377
          %385 = vst [vmem:[%s6 + $0x10] sm:$0xff] %v378
          %386 = vst [vmem:[%s6 + $0x18] sm:$0xff] %v379
          %387 = vst [vmem:[%s6 + $0x20] sm:$0xff] %v380
          %388 = vst [vmem:[%s6 + $0x28] sm:$0xff] %v381
          %vm389 = vcmask 261120
          %390 = vst.msk [vmem:[%s6 + $0x30] sm:$0xff] %vm389, %v382
        $region64: #{rosenet_forward.1} parent=43 // pred_fallthru
          _
        %v391 = vld [vmem:[%s6] sm:$0xff]
        %v392 = vld [vmem:[%s6 + $0x8] sm:$0xff]
        %v393 = vld [vmem:[%s6 + $0x10] sm:$0xff]
        %v394 = vld [vmem:[%s6 + $0x18] sm:$0xff]
        %v395 = vld [vmem:[%s6 + $0x20] sm:$0xff]
        %v396 = vld [vmem:[%s6 + $0x28] sm:$0xff]
        %v397 = vld [vmem:[%s6 + $0x30] sm:$0xff]
        %v398 = vld [vmem:[%s331] sm:$0xff]
        %v399 = vld [vmem:[%s331 + $0x8] sm:$0xff]
        %v400 = vld [vmem:[%s331 + $0x10] sm:$0xff]
        %v401 = vld [vmem:[%s331 + $0x18] sm:$0xf]
        %v402 = vpack.c.bf16 %v391, %v391
        %v403 = vpack.c.bf16 %v392, %v392
        %v404 = vpack.c.bf16 %v393, %v393
        %v405 = vpack.c.bf16 %v394, %v394
        %v406 = vpack.c.bf16 %v395, %v395
        %v407 = vpack.c.bf16 %v396, %v396
        %v408 = vpack.c.bf16 %v397, %v397
        %v409 = vld [vmem:[%s313] sm:$0xff]
        %v410 = vld [vmem:[%s313 + $0x8] sm:$0xff]
        %v411 = vld [vmem:[%s313 + $0x10] sm:$0xff]
        %v412 = vld [vmem:[%s313 + $0x18] sm:$0xf]
        %v413 = vld [vmem:[%s313 + $0x1c] sm:$0xff]
        %v414 = vld [vmem:[%s313 + $0x24] sm:$0xff]
        %v415 = vld [vmem:[%s313 + $0x2c] sm:$0xff]
        %v416 = vld [vmem:[%s313 + $0x34] sm:$0xf]
        %v417 = vld [vmem:[%s313 + $0x38] sm:$0xff]
        %v418 = vld [vmem:[%s313 + $0x40] sm:$0xff]
        %v419 = vld [vmem:[%s313 + $0x48] sm:$0xff]
        %v420 = vld [vmem:[%s313 + $0x50] sm:$0xf]
        %v421 = vld [vmem:[%s313 + $0x54] sm:$0xff]
        %v422 = vld [vmem:[%s313 + $0x5c] sm:$0xff]
        %v423 = vld [vmem:[%s313 + $0x64] sm:$0xff]
        %v424 = vld [vmem:[%s313 + $0x6c] sm:$0xf]
        %v425 = vld [vmem:[%s313 + $0x70] sm:$0xff]
        %v426 = vld [vmem:[%s313 + $0x78] sm:$0xff]
        %v427 = vld [vmem:[%s313 + $0x80] sm:$0xff]
        %v428 = vld [vmem:[%s313 + $0x88] sm:$0xf]
        %v429 = vld [vmem:[%s313 + $0x8c] sm:$0xff]
        %v430 = vld [vmem:[%s313 + $0x94] sm:$0xff]
        %v431 = vld [vmem:[%s313 + $0x9c] sm:$0xff]
        %v432 = vld [vmem:[%s313 + $0xa4] sm:$0xf]
        %v433 = vld [vmem:[%s313 + $0xa8] sm:$0xff]
        %v434 = vld [vmem:[%s313 + $0xb0] sm:$0xff]
        %v435 = vld [vmem:[%s313 + $0xb8] sm:$0xff]
        %v436 = vld [vmem:[%s313 + $0xc0] sm:$0xf]
        %v437 = vld [vmem:[%s313 + $0xc4] sm:$0xff]
        %v438 = vld [vmem:[%s313 + $0xcc] sm:$0xff]
        %v439 = vld [vmem:[%s313 + $0xd4] sm:$0xff]
        %v440 = vld [vmem:[%s313 + $0xdc] sm:$0xf]
        %v441 = vld [vmem:[%s313 + $0xe0] sm:$0xff]
        %v442 = vld [vmem:[%s313 + $0xe8] sm:$0xff]
        %v443 = vld [vmem:[%s313 + $0xf0] sm:$0xff]
        %v444 = vld [vmem:[%s313 + $0xf8] sm:$0xf]
        %v445 = vld [vmem:[%s313 + $0xfc] sm:$0xff]
        %v446 = vld [vmem:[%s313 + $0x104] sm:$0xff]
        %v447 = vld [vmem:[%s313 + $0x10c] sm:$0xff]
        %v448 = vld [vmem:[%s313 + $0x114] sm:$0xf]
        %v449 = vld [vmem:[%s313 + $0x118] sm:$0xff]
        %v450 = vld [vmem:[%s313 + $0x120] sm:$0xff]
        %v451 = vld [vmem:[%s313 + $0x128] sm:$0xff]
        %v452 = vld [vmem:[%s313 + $0x130] sm:$0xf]
        %v453 = vld [vmem:[%s313 + $0x134] sm:$0xff]
        %v454 = vld [vmem:[%s313 + $0x13c] sm:$0xff]
        %v455 = vld [vmem:[%s313 + $0x144] sm:$0xff]
        %v456 = vld [vmem:[%s313 + $0x14c] sm:$0xf]
        %v457 = vld [vmem:[%s313 + $0x150] sm:$0xff]
        %v458 = vld [vmem:[%s313 + $0x158] sm:$0xff]
        %v459 = vld [vmem:[%s313 + $0x160] sm:$0xff]
        %v460 = vld [vmem:[%s313 + $0x168] sm:$0xf]
        %v461 = vld [vmem:[%s313 + $0x16c] sm:$0xff]
        %v462 = vld [vmem:[%s313 + $0x174] sm:$0xff]
        %v463 = vld [vmem:[%s313 + $0x17c] sm:$0xff]
        %v464 = vld [vmem:[%s313 + $0x184] sm:$0xf]
        %v465 = vld [vmem:[%s313 + $0x188] sm:$0xff]
        %v466 = vld [vmem:[%s313 + $0x190] sm:$0xff]
        %v467 = vld [vmem:[%s313 + $0x198] sm:$0xff]
        %v468 = vld [vmem:[%s313 + $0x1a0] sm:$0xf]
        %v469 = vld [vmem:[%s313 + $0x1a4] sm:$0xff]
        %v470 = vld [vmem:[%s313 + $0x1ac] sm:$0xff]
        %v471 = vld [vmem:[%s313 + $0x1b4] sm:$0xff]
        %v472 = vld [vmem:[%s313 + $0x1bc] sm:$0xf]
        %v473 = vld [vmem:[%s313 + $0x1c0] sm:$0xff]
        %v474 = vld [vmem:[%s313 + $0x1c8] sm:$0xff]
        %v475 = vld [vmem:[%s313 + $0x1d0] sm:$0xff]
        %v476 = vld [vmem:[%s313 + $0x1d8] sm:$0xf]
        %v477 = vld [vmem:[%s313 + $0x1dc] sm:$0xff]
        %v478 = vld [vmem:[%s313 + $0x1e4] sm:$0xff]
        %v479 = vld [vmem:[%s313 + $0x1ec] sm:$0xff]
        %v480 = vld [vmem:[%s313 + $0x1f4] sm:$0xf]
        %v481 = vld [vmem:[%s313 + $0x1f8] sm:$0xff]
        %v482 = vld [vmem:[%s313 + $0x200] sm:$0xff]
        %v483 = vld [vmem:[%s313 + $0x208] sm:$0xff]
        %v484 = vld [vmem:[%s313 + $0x210] sm:$0xf]
        %v485 = vld [vmem:[%s313 + $0x214] sm:$0xff]
        %v486 = vld [vmem:[%s313 + $0x21c] sm:$0xff]
        %v487 = vld [vmem:[%s313 + $0x224] sm:$0xff]
        %v488 = vld [vmem:[%s313 + $0x22c] sm:$0xf]
        %v489 = vld [vmem:[%s313 + $0x230] sm:$0xff]
        %v490 = vld [vmem:[%s313 + $0x238] sm:$0xff]
        %v491 = vld [vmem:[%s313 + $0x240] sm:$0xff]
        %v492 = vld [vmem:[%s313 + $0x248] sm:$0xf]
        %v493 = vld [vmem:[%s313 + $0x24c] sm:$0xff]
        %v494 = vld [vmem:[%s313 + $0x254] sm:$0xff]
        %v495 = vld [vmem:[%s313 + $0x25c] sm:$0xff]
        %v496 = vld [vmem:[%s313 + $0x264] sm:$0xf]
        %v497 = vld [vmem:[%s313 + $0x268] sm:$0xff]
        %v498 = vld [vmem:[%s313 + $0x270] sm:$0xff]
        %v499 = vld [vmem:[%s313 + $0x278] sm:$0xff]
        %v500 = vld [vmem:[%s313 + $0x280] sm:$0xf]
        %v501 = vld [vmem:[%s313 + $0x284] sm:$0xff]
        %v502 = vld [vmem:[%s313 + $0x28c] sm:$0xff]
        %v503 = vld [vmem:[%s313 + $0x294] sm:$0xff]
        %v504 = vld [vmem:[%s313 + $0x29c] sm:$0xf]
        %v505 = vld [vmem:[%s313 + $0x2a0] sm:$0xff]
        %v506 = vld [vmem:[%s313 + $0x2a8] sm:$0xff]
        %v507 = vld [vmem:[%s313 + $0x2b0] sm:$0xff]
        %v508 = vld [vmem:[%s313 + $0x2b8] sm:$0xf]
        %v509 = vld [vmem:[%s313 + $0x2bc] sm:$0xff]
        %v510 = vld [vmem:[%s313 + $0x2c4] sm:$0xff]
        %v511 = vld [vmem:[%s313 + $0x2cc] sm:$0xff]
        %v512 = vld [vmem:[%s313 + $0x2d4] sm:$0xf]
        %v513 = vld [vmem:[%s313 + $0x2d8] sm:$0xff]
        %v514 = vld [vmem:[%s313 + $0x2e0] sm:$0xff]
        %v515 = vld [vmem:[%s313 + $0x2e8] sm:$0xff]
        %v516 = vld [vmem:[%s313 + $0x2f0] sm:$0xf]
        %v517 = vld [vmem:[%s313 + $0x2f4] sm:$0xff]
        %v518 = vld [vmem:[%s313 + $0x2fc] sm:$0xff]
        %v519 = vld [vmem:[%s313 + $0x304] sm:$0xff]
        %v520 = vld [vmem:[%s313 + $0x30c] sm:$0xf]
        %v521 = vld [vmem:[%s313 + $0x310] sm:$0xff]
        %v522 = vld [vmem:[%s313 + $0x318] sm:$0xff]
        %v523 = vld [vmem:[%s313 + $0x320] sm:$0xff]
        %v524 = vld [vmem:[%s313 + $0x328] sm:$0xf]
        %v525 = vld [vmem:[%s313 + $0x32c] sm:$0xff]
        %v526 = vld [vmem:[%s313 + $0x334] sm:$0xff]
        %v527 = vld [vmem:[%s313 + $0x33c] sm:$0xff]
        %v528 = vld [vmem:[%s313 + $0x344] sm:$0xf]
        %v529 = vld [vmem:[%s313 + $0x348] sm:$0xff]
        %v530 = vld [vmem:[%s313 + $0x350] sm:$0xff]
        %v531 = vld [vmem:[%s313 + $0x358] sm:$0xff]
        %v532 = vld [vmem:[%s313 + $0x360] sm:$0xf]
        %v533 = vld [vmem:[%s313 + $0x364] sm:$0xff]
        %v534 = vld [vmem:[%s313 + $0x36c] sm:$0xff]
        %v535 = vld [vmem:[%s313 + $0x374] sm:$0xff]
        %v536 = vld [vmem:[%s313 + $0x37c] sm:$0xf]
        %v537 = vld [vmem:[%s313 + $0x380] sm:$0xff]
        %v538 = vld [vmem:[%s313 + $0x388] sm:$0xff]
        %v539 = vld [vmem:[%s313 + $0x390] sm:$0xff]
        %v540 = vld [vmem:[%s313 + $0x398] sm:$0xf]
        %v541 = vld [vmem:[%s313 + $0x39c] sm:$0xff]
        %v542 = vld [vmem:[%s313 + $0x3a4] sm:$0xff]
        %v543 = vld [vmem:[%s313 + $0x3ac] sm:$0xff]
        %v544 = vld [vmem:[%s313 + $0x3b4] sm:$0xf]
        %v545 = vld [vmem:[%s313 + $0x3b8] sm:$0xff]
        %v546 = vld [vmem:[%s313 + $0x3c0] sm:$0xff]
        %v547 = vld [vmem:[%s313 + $0x3c8] sm:$0xff]
        %v548 = vld [vmem:[%s313 + $0x3d0] sm:$0xf]
        %v549 = vld [vmem:[%s313 + $0x3d4] sm:$0xff]
        %v550 = vld [vmem:[%s313 + $0x3dc] sm:$0xff]
        %v551 = vld [vmem:[%s313 + $0x3e4] sm:$0xff]
        %v552 = vld [vmem:[%s313 + $0x3ec] sm:$0xf]
        %v553 = vld [vmem:[%s313 + $0x3f0] sm:$0xff]
        %v554 = vld [vmem:[%s313 + $0x3f8] sm:$0xff]
        %v555 = vld [vmem:[%s313 + $0x400] sm:$0xff]
        %v556 = vld [vmem:[%s313 + $0x408] sm:$0xf]
        %v557 = vld [vmem:[%s313 + $0x40c] sm:$0xff]
        %v558 = vld [vmem:[%s313 + $0x414] sm:$0xff]
        %v559 = vld [vmem:[%s313 + $0x41c] sm:$0xff]
        %v560 = vld [vmem:[%s313 + $0x424] sm:$0xf]
        %v561 = vld [vmem:[%s313 + $0x428] sm:$0xff]
        %v562 = vld [vmem:[%s313 + $0x430] sm:$0xff]
        %v563 = vld [vmem:[%s313 + $0x438] sm:$0xff]
        %v564 = vld [vmem:[%s313 + $0x440] sm:$0xf]
        %v565 = vld [vmem:[%s313 + $0x444] sm:$0xff]
        %v566 = vld [vmem:[%s313 + $0x44c] sm:$0xff]
        %v567 = vld [vmem:[%s313 + $0x454] sm:$0xff]
        %v568 = vld [vmem:[%s313 + $0x45c] sm:$0xf]
        %v569 = vld [vmem:[%s313 + $0x460] sm:$0xff]
        %v570 = vld [vmem:[%s313 + $0x468] sm:$0xff]
        %v571 = vld [vmem:[%s313 + $0x470] sm:$0xff]
        %v572 = vld [vmem:[%s313 + $0x478] sm:$0xf]
        %v573 = vld [vmem:[%s313 + $0x47c] sm:$0xff]
        %v574 = vld [vmem:[%s313 + $0x484] sm:$0xff]
        %v575 = vld [vmem:[%s313 + $0x48c] sm:$0xff]
        %v576 = vld [vmem:[%s313 + $0x494] sm:$0xf]
        %v577 = vld [vmem:[%s313 + $0x498] sm:$0xff]
        %v578 = vld [vmem:[%s313 + $0x4a0] sm:$0xff]
        %v579 = vld [vmem:[%s313 + $0x4a8] sm:$0xff]
        %v580 = vld [vmem:[%s313 + $0x4b0] sm:$0xf]
        %v581 = vld [vmem:[%s313 + $0x4b4] sm:$0xff]
        %v582 = vld [vmem:[%s313 + $0x4bc] sm:$0xff]
        %v583 = vld [vmem:[%s313 + $0x4c4] sm:$0xff]
        %v584 = vld [vmem:[%s313 + $0x4cc] sm:$0xf]
        %v585 = vld [vmem:[%s313 + $0x4d0] sm:$0xff]
        %v586 = vld [vmem:[%s313 + $0x4d8] sm:$0xff]
        %v587 = vld [vmem:[%s313 + $0x4e0] sm:$0xff]
        %v588 = vld [vmem:[%s313 + $0x4e8] sm:$0xf]
        %v589 = vld [vmem:[%s313 + $0x4ec] sm:$0xff]
        %v590 = vld [vmem:[%s313 + $0x4f4] sm:$0xff]
        %v591 = vld [vmem:[%s313 + $0x4fc] sm:$0xff]
        %v592 = vld [vmem:[%s313 + $0x504] sm:$0xf]
        %v593 = vld [vmem:[%s313 + $0x508] sm:$0xff]
        %v594 = vld [vmem:[%s313 + $0x510] sm:$0xff]
        %v595 = vld [vmem:[%s313 + $0x518] sm:$0xff]
        %v596 = vld [vmem:[%s313 + $0x520] sm:$0xf]
        %v597 = vld [vmem:[%s313 + $0x524] sm:$0xff]
        %v598 = vld [vmem:[%s313 + $0x52c] sm:$0xff]
        %v599 = vld [vmem:[%s313 + $0x534] sm:$0xff]
        %v600 = vld [vmem:[%s313 + $0x53c] sm:$0xf]
        %v601 = vld [vmem:[%s313 + $0x540] sm:$0xff]
        %v602 = vld [vmem:[%s313 + $0x548] sm:$0xff]
        %v603 = vld [vmem:[%s313 + $0x550] sm:$0xff]
        %v604 = vld [vmem:[%s313 + $0x558] sm:$0xf]
        %v605 = vld [vmem:[%s313 + $0x55c] sm:$0xff]
        %v606 = vld [vmem:[%s313 + $0x564] sm:$0xff]
        %v607 = vld [vmem:[%s313 + $0x56c] sm:$0xff]
        %v608 = vld [vmem:[%s313 + $0x574] sm:$0xf]
        %v609 = vld [vmem:[%s313 + $0x578] sm:$0xff]
        %v610 = vld [vmem:[%s313 + $0x580] sm:$0xff]
        %v611 = vld [vmem:[%s313 + $0x588] sm:$0xff]
        %v612 = vld [vmem:[%s313 + $0x590] sm:$0xf]
        %v613 = vld [vmem:[%s313 + $0x594] sm:$0xff]
        %v614 = vld [vmem:[%s313 + $0x59c] sm:$0xff]
        %v615 = vld [vmem:[%s313 + $0x5a4] sm:$0xff]
        %v616 = vld [vmem:[%s313 + $0x5ac] sm:$0xf]
        %v617 = vld [vmem:[%s313 + $0x5b0] sm:$0xff]
        %v618 = vld [vmem:[%s313 + $0x5b8] sm:$0xff]
        %v619 = vld [vmem:[%s313 + $0x5c0] sm:$0xff]
        %v620 = vld [vmem:[%s313 + $0x5c8] sm:$0xf]
        %v621 = vld [vmem:[%s313 + $0x5cc] sm:$0xff]
        %v622 = vld [vmem:[%s313 + $0x5d4] sm:$0xff]
        %v623 = vld [vmem:[%s313 + $0x5dc] sm:$0xff]
        %v624 = vld [vmem:[%s313 + $0x5e4] sm:$0xf]
        %v625 = vld [vmem:[%s313 + $0x5e8] sm:$0xff]
        %v626 = vld [vmem:[%s313 + $0x5f0] sm:$0xff]
        %v627 = vld [vmem:[%s313 + $0x5f8] sm:$0xff]
        %v628 = vld [vmem:[%s313 + $0x600] sm:$0xf]
        %v629 = vld [vmem:[%s313 + $0x604] sm:$0xff]
        %v630 = vld [vmem:[%s313 + $0x60c] sm:$0xff]
        %v631 = vld [vmem:[%s313 + $0x614] sm:$0xff]
        %v632 = vld [vmem:[%s313 + $0x61c] sm:$0xf]
        %v633 = vld [vmem:[%s313 + $0x620] sm:$0xff]
        %v634 = vld [vmem:[%s313 + $0x628] sm:$0xff]
        %v635 = vld [vmem:[%s313 + $0x630] sm:$0xff]
        %v636 = vld [vmem:[%s313 + $0x638] sm:$0xf]
        %v637 = vld [vmem:[%s313 + $0x63c] sm:$0xff]
        %v638 = vld [vmem:[%s313 + $0x644] sm:$0xff]
        %v639 = vld [vmem:[%s313 + $0x64c] sm:$0xff]
        %v640 = vld [vmem:[%s313 + $0x654] sm:$0xf]
        %v641 = vld [vmem:[%s313 + $0x658] sm:$0xff]
        %v642 = vld [vmem:[%s313 + $0x660] sm:$0xff]
        %v643 = vld [vmem:[%s313 + $0x668] sm:$0xff]
        %v644 = vld [vmem:[%s313 + $0x670] sm:$0xf]
        %v645 = vld [vmem:[%s313 + $0x674] sm:$0xff]
        %v646 = vld [vmem:[%s313 + $0x67c] sm:$0xff]
        %v647 = vld [vmem:[%s313 + $0x684] sm:$0xff]
        %v648 = vld [vmem:[%s313 + $0x68c] sm:$0xf]
        %v649 = vld [vmem:[%s313 + $0x690] sm:$0xff]
        %v650 = vld [vmem:[%s313 + $0x698] sm:$0xff]
        %v651 = vld [vmem:[%s313 + $0x6a0] sm:$0xff]
        %v652 = vld [vmem:[%s313 + $0x6a8] sm:$0xf]
        %v653 = vld [vmem:[%s313 + $0x6ac] sm:$0xff]
        %v654 = vld [vmem:[%s313 + $0x6b4] sm:$0xff]
        %v655 = vld [vmem:[%s313 + $0x6bc] sm:$0xff]
        %v656 = vld [vmem:[%s313 + $0x6c4] sm:$0xf]
        %v657 = vld [vmem:[%s313 + $0x6c8] sm:$0xff]
        %v658 = vld [vmem:[%s313 + $0x6d0] sm:$0xff]
        %v659 = vld [vmem:[%s313 + $0x6d8] sm:$0xff]
        %v660 = vld [vmem:[%s313 + $0x6e0] sm:$0xf]
        %v661 = vld [vmem:[%s313 + $0x6e4] sm:$0xff]
        %v662 = vld [vmem:[%s313 + $0x6ec] sm:$0xff]
        %v663 = vld [vmem:[%s313 + $0x6f4] sm:$0xff]
        %v664 = vld [vmem:[%s313 + $0x6fc] sm:$0xf]
        %v665 = vld [vmem:[%s313 + $0x700] sm:$0xff]
        %v666 = vld [vmem:[%s313 + $0x708] sm:$0xff]
        %v667 = vld [vmem:[%s313 + $0x710] sm:$0xff]
        %v668 = vld [vmem:[%s313 + $0x718] sm:$0xf]
        %v669 = vld [vmem:[%s313 + $0x71c] sm:$0xff]
        %v670 = vld [vmem:[%s313 + $0x724] sm:$0xff]
        %v671 = vld [vmem:[%s313 + $0x72c] sm:$0xff]
        %v672 = vld [vmem:[%s313 + $0x734] sm:$0xf]
        %v673 = vld [vmem:[%s313 + $0x738] sm:$0xff]
        %v674 = vld [vmem:[%s313 + $0x740] sm:$0xff]
        %v675 = vld [vmem:[%s313 + $0x748] sm:$0xff]
        %v676 = vld [vmem:[%s313 + $0x750] sm:$0xf]
        %v677 = vld [vmem:[%s313 + $0x754] sm:$0xff]
        %v678 = vld [vmem:[%s313 + $0x75c] sm:$0xff]
        %v679 = vld [vmem:[%s313 + $0x764] sm:$0xff]
        %v680 = vld [vmem:[%s313 + $0x76c] sm:$0xf]
        %v681 = vld [vmem:[%s313 + $0x770] sm:$0xff]
        %v682 = vld [vmem:[%s313 + $0x778] sm:$0xff]
        %v683 = vld [vmem:[%s313 + $0x780] sm:$0xff]
        %v684 = vld [vmem:[%s313 + $0x788] sm:$0xf]
        %v685 = vld [vmem:[%s313 + $0x78c] sm:$0xff]
        %v686 = vld [vmem:[%s313 + $0x794] sm:$0xff]
        %v687 = vld [vmem:[%s313 + $0x79c] sm:$0xff]
        %v688 = vld [vmem:[%s313 + $0x7a4] sm:$0xf]
        %v689 = vld [vmem:[%s313 + $0x7a8] sm:$0xff]
        %v690 = vld [vmem:[%s313 + $0x7b0] sm:$0xff]
        %v691 = vld [vmem:[%s313 + $0x7b8] sm:$0xff]
        %v692 = vld [vmem:[%s313 + $0x7c0] sm:$0xf]
        %v693 = vld [vmem:[%s313 + $0x7c4] sm:$0xff]
        %v694 = vld [vmem:[%s313 + $0x7cc] sm:$0xff]
        %v695 = vld [vmem:[%s313 + $0x7d4] sm:$0xff]
        %v696 = vld [vmem:[%s313 + $0x7dc] sm:$0xf]
        %v697 = vld [vmem:[%s313 + $0x7e0] sm:$0xff]
        %v698 = vld [vmem:[%s313 + $0x7e8] sm:$0xff]
        %v699 = vld [vmem:[%s313 + $0x7f0] sm:$0xff]
        %v700 = vld [vmem:[%s313 + $0x7f8] sm:$0xf]
        %v701 = vld [vmem:[%s313 + $0x7fc] sm:$0xff]
        %v702 = vld [vmem:[%s313 + $0x804] sm:$0xff]
        %v703 = vld [vmem:[%s313 + $0x80c] sm:$0xff]
        %v704 = vld [vmem:[%s313 + $0x814] sm:$0xf]
        %v705 = vld [vmem:[%s313 + $0x818] sm:$0xff]
        %v706 = vld [vmem:[%s313 + $0x820] sm:$0xff]
        %v707 = vld [vmem:[%s313 + $0x828] sm:$0xff]
        %v708 = vld [vmem:[%s313 + $0x830] sm:$0xf]
        %v709 = vld [vmem:[%s313 + $0x834] sm:$0xff]
        %v710 = vld [vmem:[%s313 + $0x83c] sm:$0xff]
        %v711 = vld [vmem:[%s313 + $0x844] sm:$0xff]
        %v712 = vld [vmem:[%s313 + $0x84c] sm:$0xf]
        %v713 = vld [vmem:[%s313 + $0x850] sm:$0xff]
        %v714 = vld [vmem:[%s313 + $0x858] sm:$0xff]
        %v715 = vld [vmem:[%s313 + $0x860] sm:$0xff]
        %v716 = vld [vmem:[%s313 + $0x868] sm:$0xf]
        %v717 = vld [vmem:[%s313 + $0x86c] sm:$0xff]
        %v718 = vld [vmem:[%s313 + $0x874] sm:$0xff]
        %v719 = vld [vmem:[%s313 + $0x87c] sm:$0xff]
        %v720 = vld [vmem:[%s313 + $0x884] sm:$0xf]
        %v721 = vld [vmem:[%s313 + $0x888] sm:$0xff]
        %v722 = vld [vmem:[%s313 + $0x890] sm:$0xff]
        %v723 = vld [vmem:[%s313 + $0x898] sm:$0xff]
        %v724 = vld [vmem:[%s313 + $0x8a0] sm:$0xf]
        %v725 = vld [vmem:[%s313 + $0x8a4] sm:$0xff]
        %v726 = vld [vmem:[%s313 + $0x8ac] sm:$0xff]
        %v727 = vld [vmem:[%s313 + $0x8b4] sm:$0xff]
        %v728 = vld [vmem:[%s313 + $0x8bc] sm:$0xf]
        %v729 = vld [vmem:[%s313 + $0x8c0] sm:$0xff]
        %v730 = vld [vmem:[%s313 + $0x8c8] sm:$0xff]
        %v731 = vld [vmem:[%s313 + $0x8d0] sm:$0xff]
        %v732 = vld [vmem:[%s313 + $0x8d8] sm:$0xf]
        %v733 = vld [vmem:[%s313 + $0x8dc] sm:$0xff]
        %v734 = vld [vmem:[%s313 + $0x8e4] sm:$0xff]
        %v735 = vld [vmem:[%s313 + $0x8ec] sm:$0xff]
        %v736 = vld [vmem:[%s313 + $0x8f4] sm:$0xf]
        %v737 = vld [vmem:[%s313 + $0x8f8] sm:$0xff]
        %v738 = vld [vmem:[%s313 + $0x900] sm:$0xff]
        %v739 = vld [vmem:[%s313 + $0x908] sm:$0xff]
        %v740 = vld [vmem:[%s313 + $0x910] sm:$0xf]
        %v741 = vld [vmem:[%s313 + $0x914] sm:$0xff]
        %v742 = vld [vmem:[%s313 + $0x91c] sm:$0xff]
        %v743 = vld [vmem:[%s313 + $0x924] sm:$0xff]
        %v744 = vld [vmem:[%s313 + $0x92c] sm:$0xf]
        %v745 = vld [vmem:[%s313 + $0x930] sm:$0xff]
        %v746 = vld [vmem:[%s313 + $0x938] sm:$0xff]
        %v747 = vld [vmem:[%s313 + $0x940] sm:$0xff]
        %v748 = vld [vmem:[%s313 + $0x948] sm:$0xf]
        %v749 = vld [vmem:[%s313 + $0x94c] sm:$0xff]
        %v750 = vld [vmem:[%s313 + $0x954] sm:$0xff]
        %v751 = vld [vmem:[%s313 + $0x95c] sm:$0xff]
        %v752 = vld [vmem:[%s313 + $0x964] sm:$0xf]
        %v753 = vld [vmem:[%s313 + $0x968] sm:$0xff]
        %v754 = vld [vmem:[%s313 + $0x970] sm:$0xff]
        %v755 = vld [vmem:[%s313 + $0x978] sm:$0xff]
        %v756 = vld [vmem:[%s313 + $0x980] sm:$0xf]
        %v757 = vld [vmem:[%s313 + $0x984] sm:$0xff]
        %v758 = vld [vmem:[%s313 + $0x98c] sm:$0xff]
        %v759 = vld [vmem:[%s313 + $0x994] sm:$0xff]
        %v760 = vld [vmem:[%s313 + $0x99c] sm:$0xf]
        %v761 = vld [vmem:[%s313 + $0x9a0] sm:$0xff]
        %v762 = vld [vmem:[%s313 + $0x9a8] sm:$0xff]
        %v763 = vld [vmem:[%s313 + $0x9b0] sm:$0xff]
        %v764 = vld [vmem:[%s313 + $0x9b8] sm:$0xf]
        %v765 = vld [vmem:[%s313 + $0x9bc] sm:$0xff]
        %v766 = vld [vmem:[%s313 + $0x9c4] sm:$0xff]
        %v767 = vld [vmem:[%s313 + $0x9cc] sm:$0xff]
        %v768 = vld [vmem:[%s313 + $0x9d4] sm:$0xf]
        %v769 = vld [vmem:[%s313 + $0x9d8] sm:$0xff]
        %v770 = vld [vmem:[%s313 + $0x9e0] sm:$0xff]
        %v771 = vld [vmem:[%s313 + $0x9e8] sm:$0xff]
        %v772 = vld [vmem:[%s313 + $0x9f0] sm:$0xf]
        %v773 = vld [vmem:[%s313 + $0x9f4] sm:$0xff]
        %v774 = vld [vmem:[%s313 + $0x9fc] sm:$0xff]
        %v775 = vld [vmem:[%s313 + $0xa04] sm:$0xff]
        %v776 = vld [vmem:[%s313 + $0xa0c] sm:$0xf]
        %v777 = vld [vmem:[%s313 + $0xa10] sm:$0xff]
        %v778 = vld [vmem:[%s313 + $0xa18] sm:$0xff]
        %v779 = vld [vmem:[%s313 + $0xa20] sm:$0xff]
        %v780 = vld [vmem:[%s313 + $0xa28] sm:$0xf]
        %v781 = vld [vmem:[%s313 + $0xa2c] sm:$0xff]
        %v782 = vld [vmem:[%s313 + $0xa34] sm:$0xff]
        %v783 = vld [vmem:[%s313 + $0xa3c] sm:$0xff]
        %v784 = vld [vmem:[%s313 + $0xa44] sm:$0xf]
        %v785 = vld [vmem:[%s313 + $0xa48] sm:$0xff]
        %v786 = vld [vmem:[%s313 + $0xa50] sm:$0xff]
        %v787 = vld [vmem:[%s313 + $0xa58] sm:$0xff]
        %v788 = vld [vmem:[%s313 + $0xa60] sm:$0xf]
        %v789 = vld [vmem:[%s313 + $0xa64] sm:$0xff]
        %v790 = vld [vmem:[%s313 + $0xa6c] sm:$0xff]
        %v791 = vld [vmem:[%s313 + $0xa74] sm:$0xff]
        %v792 = vld [vmem:[%s313 + $0xa7c] sm:$0xf]
        %v793 = vld [vmem:[%s313 + $0xa80] sm:$0xff]
        %v794 = vld [vmem:[%s313 + $0xa88] sm:$0xff]
        %v795 = vld [vmem:[%s313 + $0xa90] sm:$0xff]
        %v796 = vld [vmem:[%s313 + $0xa98] sm:$0xf]
        %v797 = vld [vmem:[%s313 + $0xa9c] sm:$0xff]
        %v798 = vld [vmem:[%s313 + $0xaa4] sm:$0xff]
        %v799 = vld [vmem:[%s313 + $0xaac] sm:$0xff]
        %v800 = vld [vmem:[%s313 + $0xab4] sm:$0xf]
        %v801 = vld [vmem:[%s313 + $0xab8] sm:$0xff]
        %v802 = vld [vmem:[%s313 + $0xac0] sm:$0xff]
        %v803 = vld [vmem:[%s313 + $0xac8] sm:$0xff]
        %v804 = vld [vmem:[%s313 + $0xad0] sm:$0xf]
        %v805 = vld [vmem:[%s313 + $0xad4] sm:$0xff]
        %v806 = vld [vmem:[%s313 + $0xadc] sm:$0xff]
        %v807 = vld [vmem:[%s313 + $0xae4] sm:$0xff]
        %v808 = vld [vmem:[%s313 + $0xaec] sm:$0xf]
        %v1209 = vunpack.c.l.b16 %v409
        %v1210 = vunpack.c.h.b16 %v409
        %v1211 = vunpack.c.l.b16 %v410
        %v1212 = vunpack.c.h.b16 %v410
        %v1213 = vunpack.c.l.b16 %v411
        %v1214 = vunpack.c.h.b16 %v411
        %v1215 = vunpack.c.l.b16 %v412
        %v1216 = vunpack.c.l.b16 %v413
        %v1217 = vunpack.c.h.b16 %v413
        %v1218 = vunpack.c.l.b16 %v414
        %v1219 = vunpack.c.h.b16 %v414
        %v1220 = vunpack.c.l.b16 %v415
        %v1221 = vunpack.c.h.b16 %v415
        %v1222 = vunpack.c.l.b16 %v416
        %v1223 = vunpack.c.l.b16 %v417
        %v1224 = vunpack.c.h.b16 %v417
        %v1225 = vunpack.c.l.b16 %v418
        %v1226 = vunpack.c.h.b16 %v418
        %v1227 = vunpack.c.l.b16 %v419
        %v1228 = vunpack.c.h.b16 %v419
        %v1229 = vunpack.c.l.b16 %v420
        %v1230 = vunpack.c.l.b16 %v421
        %v1231 = vunpack.c.h.b16 %v421
        %v1232 = vunpack.c.l.b16 %v422
        %v1233 = vunpack.c.h.b16 %v422
        %v1234 = vunpack.c.l.b16 %v423
        %v1235 = vunpack.c.h.b16 %v423
        %v1236 = vunpack.c.l.b16 %v424
        %v1237 = vunpack.c.l.b16 %v425
        %v1238 = vunpack.c.h.b16 %v425
        %v1239 = vunpack.c.l.b16 %v426
        %v1240 = vunpack.c.h.b16 %v426
        %v1241 = vunpack.c.l.b16 %v427
        %v1242 = vunpack.c.h.b16 %v427
        %v1243 = vunpack.c.l.b16 %v428
        %v1244 = vunpack.c.l.b16 %v429
        %v1245 = vunpack.c.h.b16 %v429
        %v1246 = vunpack.c.l.b16 %v430
        %v1247 = vunpack.c.h.b16 %v430
        %v1248 = vunpack.c.l.b16 %v431
        %v1249 = vunpack.c.h.b16 %v431
        %v1250 = vunpack.c.l.b16 %v432
        %v1251 = vunpack.c.l.b16 %v433
        %v1252 = vunpack.c.h.b16 %v433
        %v1253 = vunpack.c.l.b16 %v434
        %v1254 = vunpack.c.h.b16 %v434
        %v1255 = vunpack.c.l.b16 %v435
        %v1256 = vunpack.c.h.b16 %v435
        %v1257 = vunpack.c.l.b16 %v436
        %v1258 = vunpack.c.l.b16 %v437
        %v1259 = vunpack.c.h.b16 %v437
        %v1260 = vunpack.c.l.b16 %v438
        %v1261 = vunpack.c.h.b16 %v438
        %v1262 = vunpack.c.l.b16 %v439
        %v1263 = vunpack.c.h.b16 %v439
        %v1264 = vunpack.c.l.b16 %v440
        %v1265 = vunpack.c.l.b16 %v441
        %v1266 = vunpack.c.h.b16 %v441
        %v1267 = vunpack.c.l.b16 %v442
        %v1268 = vunpack.c.h.b16 %v442
        %v1269 = vunpack.c.l.b16 %v443
        %v1270 = vunpack.c.h.b16 %v443
        %v1271 = vunpack.c.l.b16 %v444
        %v1272 = vunpack.c.l.b16 %v445
        %v1273 = vunpack.c.h.b16 %v445
        %v1274 = vunpack.c.l.b16 %v446
        %v1275 = vunpack.c.h.b16 %v446
        %v1276 = vunpack.c.l.b16 %v447
        %v1277 = vunpack.c.h.b16 %v447
        %v1278 = vunpack.c.l.b16 %v448
        %v1279 = vunpack.c.l.b16 %v449
        %v1280 = vunpack.c.h.b16 %v449
        %v1281 = vunpack.c.l.b16 %v450
        %v1282 = vunpack.c.h.b16 %v450
        %v1283 = vunpack.c.l.b16 %v451
        %v1284 = vunpack.c.h.b16 %v451
        %v1285 = vunpack.c.l.b16 %v452
        %v1286 = vunpack.c.l.b16 %v453
        %v1287 = vunpack.c.h.b16 %v453
        %v1288 = vunpack.c.l.b16 %v454
        %v1289 = vunpack.c.h.b16 %v454
        %v1290 = vunpack.c.l.b16 %v455
        %v1291 = vunpack.c.h.b16 %v455
        %v1292 = vunpack.c.l.b16 %v456
        %v1293 = vunpack.c.l.b16 %v457
        %v1294 = vunpack.c.h.b16 %v457
        %v1295 = vunpack.c.l.b16 %v458
        %v1296 = vunpack.c.h.b16 %v458
        %v1297 = vunpack.c.l.b16 %v459
        %v1298 = vunpack.c.h.b16 %v459
        %v1299 = vunpack.c.l.b16 %v460
        %v1300 = vunpack.c.l.b16 %v461
        %v1301 = vunpack.c.h.b16 %v461
        %v1302 = vunpack.c.l.b16 %v462
        %v1303 = vunpack.c.h.b16 %v462
        %v1304 = vunpack.c.l.b16 %v463
        %v1305 = vunpack.c.h.b16 %v463
        %v1306 = vunpack.c.l.b16 %v464
        %v1307 = vunpack.c.l.b16 %v465
        %v1308 = vunpack.c.h.b16 %v465
        %v1309 = vunpack.c.l.b16 %v466
        %v1310 = vunpack.c.h.b16 %v466
        %v1311 = vunpack.c.l.b16 %v467
        %v1312 = vunpack.c.h.b16 %v467
        %v1313 = vunpack.c.l.b16 %v468
        %v1314 = vunpack.c.l.b16 %v469
        %v1315 = vunpack.c.h.b16 %v469
        %v1316 = vunpack.c.l.b16 %v470
        %v1317 = vunpack.c.h.b16 %v470
        %v1318 = vunpack.c.l.b16 %v471
        %v1319 = vunpack.c.h.b16 %v471
        %v1320 = vunpack.c.l.b16 %v472
        %v1321 = vunpack.c.l.b16 %v473
        %v1322 = vunpack.c.h.b16 %v473
        %v1323 = vunpack.c.l.b16 %v474
        %v1324 = vunpack.c.h.b16 %v474
        %v1325 = vunpack.c.l.b16 %v475
        %v1326 = vunpack.c.h.b16 %v475
        %v1327 = vunpack.c.l.b16 %v476
        %v1328 = vunpack.c.l.b16 %v477
        %v1329 = vunpack.c.h.b16 %v477
        %v1330 = vunpack.c.l.b16 %v478
        %v1331 = vunpack.c.h.b16 %v478
        %v1332 = vunpack.c.l.b16 %v479
        %v1333 = vunpack.c.h.b16 %v479
        %v1334 = vunpack.c.l.b16 %v480
        %v1335 = vunpack.c.l.b16 %v481
        %v1336 = vunpack.c.h.b16 %v481
        %v1337 = vunpack.c.l.b16 %v482
        %v1338 = vunpack.c.h.b16 %v482
        %v1339 = vunpack.c.l.b16 %v483
        %v1340 = vunpack.c.h.b16 %v483
        %v1341 = vunpack.c.l.b16 %v484
        %v1342 = vunpack.c.l.b16 %v485
        %v1343 = vunpack.c.h.b16 %v485
        %v1344 = vunpack.c.l.b16 %v486
        %v1345 = vunpack.c.h.b16 %v486
        %v1346 = vunpack.c.l.b16 %v487
        %v1347 = vunpack.c.h.b16 %v487
        %v1348 = vunpack.c.l.b16 %v488
        %v1349 = vunpack.c.l.b16 %v489
        %v1350 = vunpack.c.h.b16 %v489
        %v1351 = vunpack.c.l.b16 %v490
        %v1352 = vunpack.c.h.b16 %v490
        %v1353 = vunpack.c.l.b16 %v491
        %v1354 = vunpack.c.h.b16 %v491
        %v1355 = vunpack.c.l.b16 %v492
        %v1356 = vunpack.c.l.b16 %v493
        %v1357 = vunpack.c.h.b16 %v493
        %v1358 = vunpack.c.l.b16 %v494
        %v1359 = vunpack.c.h.b16 %v494
        %v1360 = vunpack.c.l.b16 %v495
        %v1361 = vunpack.c.h.b16 %v495
        %v1362 = vunpack.c.l.b16 %v496
        %v1363 = vunpack.c.l.b16 %v497
        %v1364 = vunpack.c.h.b16 %v497
        %v1365 = vunpack.c.l.b16 %v498
        %v1366 = vunpack.c.h.b16 %v498
        %v1367 = vunpack.c.l.b16 %v499
        %v1368 = vunpack.c.h.b16 %v499
        %v1369 = vunpack.c.l.b16 %v500
        %v1370 = vunpack.c.l.b16 %v501
        %v1371 = vunpack.c.h.b16 %v501
        %v1372 = vunpack.c.l.b16 %v502
        %v1373 = vunpack.c.h.b16 %v502
        %v1374 = vunpack.c.l.b16 %v503
        %v1375 = vunpack.c.h.b16 %v503
        %v1376 = vunpack.c.l.b16 %v504
        %v1377 = vunpack.c.l.b16 %v505
        %v1378 = vunpack.c.h.b16 %v505
        %v1379 = vunpack.c.l.b16 %v506
        %v1380 = vunpack.c.h.b16 %v506
        %v1381 = vunpack.c.l.b16 %v507
        %v1382 = vunpack.c.h.b16 %v507
        %v1383 = vunpack.c.l.b16 %v508
        %v1384 = vunpack.c.l.b16 %v509
        %v1385 = vunpack.c.h.b16 %v509
        %v1386 = vunpack.c.l.b16 %v510
        %v1387 = vunpack.c.h.b16 %v510
        %v1388 = vunpack.c.l.b16 %v511
        %v1389 = vunpack.c.h.b16 %v511
        %v1390 = vunpack.c.l.b16 %v512
        %v1391 = vunpack.c.l.b16 %v513
        %v1392 = vunpack.c.h.b16 %v513
        %v1393 = vunpack.c.l.b16 %v514
        %v1394 = vunpack.c.h.b16 %v514
        %v1395 = vunpack.c.l.b16 %v515
        %v1396 = vunpack.c.h.b16 %v515
        %v1397 = vunpack.c.l.b16 %v516
        %v1398 = vunpack.c.l.b16 %v517
        %v1399 = vunpack.c.h.b16 %v517
        %v1400 = vunpack.c.l.b16 %v518
        %v1401 = vunpack.c.h.b16 %v518
        %v1402 = vunpack.c.l.b16 %v519
        %v1403 = vunpack.c.h.b16 %v519
        %v1404 = vunpack.c.l.b16 %v520
        %v1405 = vunpack.c.l.b16 %v521
        %v1406 = vunpack.c.h.b16 %v521
        %v1407 = vunpack.c.l.b16 %v522
        %v1408 = vunpack.c.h.b16 %v522
        %v1409 = vunpack.c.l.b16 %v523
        %v1410 = vunpack.c.h.b16 %v523
        %v1411 = vunpack.c.l.b16 %v524
        %v1412 = vunpack.c.l.b16 %v525
        %v1413 = vunpack.c.h.b16 %v525
        %v1414 = vunpack.c.l.b16 %v526
        %v1415 = vunpack.c.h.b16 %v526
        %v1416 = vunpack.c.l.b16 %v527
        %v1417 = vunpack.c.h.b16 %v527
        %v1418 = vunpack.c.l.b16 %v528
        %v1419 = vunpack.c.l.b16 %v529
        %v1420 = vunpack.c.h.b16 %v529
        %v1421 = vunpack.c.l.b16 %v530
        %v1422 = vunpack.c.h.b16 %v530
        %v1423 = vunpack.c.l.b16 %v531
        %v1424 = vunpack.c.h.b16 %v531
        %v1425 = vunpack.c.l.b16 %v532
        %v1426 = vunpack.c.l.b16 %v533
        %v1427 = vunpack.c.h.b16 %v533
        %v1428 = vunpack.c.l.b16 %v534
        %v1429 = vunpack.c.h.b16 %v534
        %v1430 = vunpack.c.l.b16 %v535
        %v1431 = vunpack.c.h.b16 %v535
        %v1432 = vunpack.c.l.b16 %v536
        %v1433 = vunpack.c.l.b16 %v537
        %v1434 = vunpack.c.h.b16 %v537
        %v1435 = vunpack.c.l.b16 %v538
        %v1436 = vunpack.c.h.b16 %v538
        %v1437 = vunpack.c.l.b16 %v539
        %v1438 = vunpack.c.h.b16 %v539
        %v1439 = vunpack.c.l.b16 %v540
        %v1440 = vunpack.c.l.b16 %v541
        %v1441 = vunpack.c.h.b16 %v541
        %v1442 = vunpack.c.l.b16 %v542
        %v1443 = vunpack.c.h.b16 %v542
        %v1444 = vunpack.c.l.b16 %v543
        %v1445 = vunpack.c.h.b16 %v543
        %v1446 = vunpack.c.l.b16 %v544
        %v1447 = vunpack.c.l.b16 %v545
        %v1448 = vunpack.c.h.b16 %v545
        %v1449 = vunpack.c.l.b16 %v546
        %v1450 = vunpack.c.h.b16 %v546
        %v1451 = vunpack.c.l.b16 %v547
        %v1452 = vunpack.c.h.b16 %v547
        %v1453 = vunpack.c.l.b16 %v548
        %v1454 = vunpack.c.l.b16 %v549
        %v1455 = vunpack.c.h.b16 %v549
        %v1456 = vunpack.c.l.b16 %v550
        %v1457 = vunpack.c.h.b16 %v550
        %v1458 = vunpack.c.l.b16 %v551
        %v1459 = vunpack.c.h.b16 %v551
        %v1460 = vunpack.c.l.b16 %v552
        %v1461 = vunpack.c.l.b16 %v553
        %v1462 = vunpack.c.h.b16 %v553
        %v1463 = vunpack.c.l.b16 %v554
        %v1464 = vunpack.c.h.b16 %v554
        %v1465 = vunpack.c.l.b16 %v555
        %v1466 = vunpack.c.h.b16 %v555
        %v1467 = vunpack.c.l.b16 %v556
        %v1468 = vunpack.c.l.b16 %v557
        %v1469 = vunpack.c.h.b16 %v557
        %v1470 = vunpack.c.l.b16 %v558
        %v1471 = vunpack.c.h.b16 %v558
        %v1472 = vunpack.c.l.b16 %v559
        %v1473 = vunpack.c.h.b16 %v559
        %v1474 = vunpack.c.l.b16 %v560
        %v1475 = vunpack.c.l.b16 %v561
        %v1476 = vunpack.c.h.b16 %v561
        %v1477 = vunpack.c.l.b16 %v562
        %v1478 = vunpack.c.h.b16 %v562
        %v1479 = vunpack.c.l.b16 %v563
        %v1480 = vunpack.c.h.b16 %v563
        %v1481 = vunpack.c.l.b16 %v564
        %v1482 = vunpack.c.l.b16 %v565
        %v1483 = vunpack.c.h.b16 %v565
        %v1484 = vunpack.c.l.b16 %v566
        %v1485 = vunpack.c.h.b16 %v566
        %v1486 = vunpack.c.l.b16 %v567
        %v1487 = vunpack.c.h.b16 %v567
        %v1488 = vunpack.c.l.b16 %v568
        %v1489 = vunpack.c.l.b16 %v569
        %v1490 = vunpack.c.h.b16 %v569
        %v1491 = vunpack.c.l.b16 %v570
        %v1492 = vunpack.c.h.b16 %v570
        %v1493 = vunpack.c.l.b16 %v571
        %v1494 = vunpack.c.h.b16 %v571
        %v1495 = vunpack.c.l.b16 %v572
        %v1496 = vunpack.c.l.b16 %v573
        %v1497 = vunpack.c.h.b16 %v573
        %v1498 = vunpack.c.l.b16 %v574
        %v1499 = vunpack.c.h.b16 %v574
        %v1500 = vunpack.c.l.b16 %v575
        %v1501 = vunpack.c.h.b16 %v575
        %v1502 = vunpack.c.l.b16 %v576
        %v1503 = vunpack.c.l.b16 %v577
        %v1504 = vunpack.c.h.b16 %v577
        %v1505 = vunpack.c.l.b16 %v578
        %v1506 = vunpack.c.h.b16 %v578
        %v1507 = vunpack.c.l.b16 %v579
        %v1508 = vunpack.c.h.b16 %v579
        %v1509 = vunpack.c.l.b16 %v580
        %v1510 = vunpack.c.l.b16 %v581
        %v1511 = vunpack.c.h.b16 %v581
        %v1512 = vunpack.c.l.b16 %v582
        %v1513 = vunpack.c.h.b16 %v582
        %v1514 = vunpack.c.l.b16 %v583
        %v1515 = vunpack.c.h.b16 %v583
        %v1516 = vunpack.c.l.b16 %v584
        %v1517 = vunpack.c.l.b16 %v585
        %v1518 = vunpack.c.h.b16 %v585
        %v1519 = vunpack.c.l.b16 %v586
        %v1520 = vunpack.c.h.b16 %v586
        %v1521 = vunpack.c.l.b16 %v587
        %v1522 = vunpack.c.h.b16 %v587
        %v1523 = vunpack.c.l.b16 %v588
        %v1524 = vunpack.c.l.b16 %v589
        %v1525 = vunpack.c.h.b16 %v589
        %v1526 = vunpack.c.l.b16 %v590
        %v1527 = vunpack.c.h.b16 %v590
        %v1528 = vunpack.c.l.b16 %v591
        %v1529 = vunpack.c.h.b16 %v591
        %v1530 = vunpack.c.l.b16 %v592
        %v1531 = vunpack.c.l.b16 %v593
        %v1532 = vunpack.c.h.b16 %v593
        %v1533 = vunpack.c.l.b16 %v594
        %v1534 = vunpack.c.h.b16 %v594
        %v1535 = vunpack.c.l.b16 %v595
        %v1536 = vunpack.c.h.b16 %v595
        %v1537 = vunpack.c.l.b16 %v596
        %v1538 = vunpack.c.l.b16 %v597
        %v1539 = vunpack.c.h.b16 %v597
        %v1540 = vunpack.c.l.b16 %v598
        %v1541 = vunpack.c.h.b16 %v598
        %v1542 = vunpack.c.l.b16 %v599
        %v1543 = vunpack.c.h.b16 %v599
        %v1544 = vunpack.c.l.b16 %v600
        %v1545 = vunpack.c.l.b16 %v601
        %v1546 = vunpack.c.h.b16 %v601
        %v1547 = vunpack.c.l.b16 %v602
        %v1548 = vunpack.c.h.b16 %v602
        %v1549 = vunpack.c.l.b16 %v603
        %v1550 = vunpack.c.h.b16 %v603
        %v1551 = vunpack.c.l.b16 %v604
        %v1552 = vunpack.c.l.b16 %v605
        %v1553 = vunpack.c.h.b16 %v605
        %v1554 = vunpack.c.l.b16 %v606
        %v1555 = vunpack.c.h.b16 %v606
        %v1556 = vunpack.c.l.b16 %v607
        %v1557 = vunpack.c.h.b16 %v607
        %v1558 = vunpack.c.l.b16 %v608
        %v1559 = vunpack.c.l.b16 %v609
        %v1560 = vunpack.c.h.b16 %v609
        %v1561 = vunpack.c.l.b16 %v610
        %v1562 = vunpack.c.h.b16 %v610
        %v1563 = vunpack.c.l.b16 %v611
        %v1564 = vunpack.c.h.b16 %v611
        %v1565 = vunpack.c.l.b16 %v612
        %v1566 = vunpack.c.l.b16 %v613
        %v1567 = vunpack.c.h.b16 %v613
        %v1568 = vunpack.c.l.b16 %v614
        %v1569 = vunpack.c.h.b16 %v614
        %v1570 = vunpack.c.l.b16 %v615
        %v1571 = vunpack.c.h.b16 %v615
        %v1572 = vunpack.c.l.b16 %v616
        %v1573 = vunpack.c.l.b16 %v617
        %v1574 = vunpack.c.h.b16 %v617
        %v1575 = vunpack.c.l.b16 %v618
        %v1576 = vunpack.c.h.b16 %v618
        %v1577 = vunpack.c.l.b16 %v619
        %v1578 = vunpack.c.h.b16 %v619
        %v1579 = vunpack.c.l.b16 %v620
        %v1580 = vunpack.c.l.b16 %v621
        %v1581 = vunpack.c.h.b16 %v621
        %v1582 = vunpack.c.l.b16 %v622
        %v1583 = vunpack.c.h.b16 %v622
        %v1584 = vunpack.c.l.b16 %v623
        %v1585 = vunpack.c.h.b16 %v623
        %v1586 = vunpack.c.l.b16 %v624
        %v1587 = vunpack.c.l.b16 %v625
        %v1588 = vunpack.c.h.b16 %v625
        %v1589 = vunpack.c.l.b16 %v626
        %v1590 = vunpack.c.h.b16 %v626
        %v1591 = vunpack.c.l.b16 %v627
        %v1592 = vunpack.c.h.b16 %v627
        %v1593 = vunpack.c.l.b16 %v628
        %v1594 = vunpack.c.l.b16 %v629
        %v1595 = vunpack.c.h.b16 %v629
        %v1596 = vunpack.c.l.b16 %v630
        %v1597 = vunpack.c.h.b16 %v630
        %v1598 = vunpack.c.l.b16 %v631
        %v1599 = vunpack.c.h.b16 %v631
        %v1600 = vunpack.c.l.b16 %v632
        %v1601 = vunpack.c.l.b16 %v633
        %v1602 = vunpack.c.h.b16 %v633
        %v1603 = vunpack.c.l.b16 %v634
        %v1604 = vunpack.c.h.b16 %v634
        %v1605 = vunpack.c.l.b16 %v635
        %v1606 = vunpack.c.h.b16 %v635
        %v1607 = vunpack.c.l.b16 %v636
        %v1608 = vunpack.c.l.b16 %v637
        %v1609 = vunpack.c.h.b16 %v637
        %v1610 = vunpack.c.l.b16 %v638
        %v1611 = vunpack.c.h.b16 %v638
        %v1612 = vunpack.c.l.b16 %v639
        %v1613 = vunpack.c.h.b16 %v639
        %v1614 = vunpack.c.l.b16 %v640
        %v1615 = vunpack.c.l.b16 %v641
        %v1616 = vunpack.c.h.b16 %v641
        %v1617 = vunpack.c.l.b16 %v642
        %v1618 = vunpack.c.h.b16 %v642
        %v1619 = vunpack.c.l.b16 %v643
        %v1620 = vunpack.c.h.b16 %v643
        %v1621 = vunpack.c.l.b16 %v644
        %v1622 = vunpack.c.l.b16 %v645
        %v1623 = vunpack.c.h.b16 %v645
        %v1624 = vunpack.c.l.b16 %v646
        %v1625 = vunpack.c.h.b16 %v646
        %v1626 = vunpack.c.l.b16 %v647
        %v1627 = vunpack.c.h.b16 %v647
        %v1628 = vunpack.c.l.b16 %v648
        %v1629 = vunpack.c.l.b16 %v649
        %v1630 = vunpack.c.h.b16 %v649
        %v1631 = vunpack.c.l.b16 %v650
        %v1632 = vunpack.c.h.b16 %v650
        %v1633 = vunpack.c.l.b16 %v651
        %v1634 = vunpack.c.h.b16 %v651
        %v1635 = vunpack.c.l.b16 %v652
        %v1636 = vunpack.c.l.b16 %v653
        %v1637 = vunpack.c.h.b16 %v653
        %v1638 = vunpack.c.l.b16 %v654
        %v1639 = vunpack.c.h.b16 %v654
        %v1640 = vunpack.c.l.b16 %v655
        %v1641 = vunpack.c.h.b16 %v655
        %v1642 = vunpack.c.l.b16 %v656
        %v1643 = vunpack.c.l.b16 %v657
        %v1644 = vunpack.c.h.b16 %v657
        %v1645 = vunpack.c.l.b16 %v658
        %v1646 = vunpack.c.h.b16 %v658
        %v1647 = vunpack.c.l.b16 %v659
        %v1648 = vunpack.c.h.b16 %v659
        %v1649 = vunpack.c.l.b16 %v660
        %v1650 = vunpack.c.l.b16 %v661
        %v1651 = vunpack.c.h.b16 %v661
        %v1652 = vunpack.c.l.b16 %v662
        %v1653 = vunpack.c.h.b16 %v662
        %v1654 = vunpack.c.l.b16 %v663
        %v1655 = vunpack.c.h.b16 %v663
        %v1656 = vunpack.c.l.b16 %v664
        %v1657 = vunpack.c.l.b16 %v665
        %v1658 = vunpack.c.h.b16 %v665
        %v1659 = vunpack.c.l.b16 %v666
        %v1660 = vunpack.c.h.b16 %v666
        %v1661 = vunpack.c.l.b16 %v667
        %v1662 = vunpack.c.h.b16 %v667
        %v1663 = vunpack.c.l.b16 %v668
        %v1664 = vunpack.c.l.b16 %v669
        %v1665 = vunpack.c.h.b16 %v669
        %v1666 = vunpack.c.l.b16 %v670
        %v1667 = vunpack.c.h.b16 %v670
        %v1668 = vunpack.c.l.b16 %v671
        %v1669 = vunpack.c.h.b16 %v671
        %v1670 = vunpack.c.l.b16 %v672
        %v1671 = vunpack.c.l.b16 %v673
        %v1672 = vunpack.c.h.b16 %v673
        %v1673 = vunpack.c.l.b16 %v674
        %v1674 = vunpack.c.h.b16 %v674
        %v1675 = vunpack.c.l.b16 %v675
        %v1676 = vunpack.c.h.b16 %v675
        %v1677 = vunpack.c.l.b16 %v676
        %v1678 = vunpack.c.l.b16 %v677
        %v1679 = vunpack.c.h.b16 %v677
        %v1680 = vunpack.c.l.b16 %v678
        %v1681 = vunpack.c.h.b16 %v678
        %v1682 = vunpack.c.l.b16 %v679
        %v1683 = vunpack.c.h.b16 %v679
        %v1684 = vunpack.c.l.b16 %v680
        %v1685 = vunpack.c.l.b16 %v681
        %v1686 = vunpack.c.h.b16 %v681
        %v1687 = vunpack.c.l.b16 %v682
        %v1688 = vunpack.c.h.b16 %v682
        %v1689 = vunpack.c.l.b16 %v683
        %v1690 = vunpack.c.h.b16 %v683
        %v1691 = vunpack.c.l.b16 %v684
        %v1692 = vunpack.c.l.b16 %v685
        %v1693 = vunpack.c.h.b16 %v685
        %v1694 = vunpack.c.l.b16 %v686
        %v1695 = vunpack.c.h.b16 %v686
        %v1696 = vunpack.c.l.b16 %v687
        %v1697 = vunpack.c.h.b16 %v687
        %v1698 = vunpack.c.l.b16 %v688
        %v1699 = vunpack.c.l.b16 %v689
        %v1700 = vunpack.c.h.b16 %v689
        %v1701 = vunpack.c.l.b16 %v690
        %v1702 = vunpack.c.h.b16 %v690
        %v1703 = vunpack.c.l.b16 %v691
        %v1704 = vunpack.c.h.b16 %v691
        %v1705 = vunpack.c.l.b16 %v692
        %v1706 = vunpack.c.l.b16 %v693
        %v1707 = vunpack.c.h.b16 %v693
        %v1708 = vunpack.c.l.b16 %v694
        %v1709 = vunpack.c.h.b16 %v694
        %v1710 = vunpack.c.l.b16 %v695
        %v1711 = vunpack.c.h.b16 %v695
        %v1712 = vunpack.c.l.b16 %v696
        %v1713 = vunpack.c.l.b16 %v697
        %v1714 = vunpack.c.h.b16 %v697
        %v1715 = vunpack.c.l.b16 %v698
        %v1716 = vunpack.c.h.b16 %v698
        %v1717 = vunpack.c.l.b16 %v699
        %v1718 = vunpack.c.h.b16 %v699
        %v1719 = vunpack.c.l.b16 %v700
        %v1720 = vunpack.c.l.b16 %v701
        %v1721 = vunpack.c.h.b16 %v701
        %v1722 = vunpack.c.l.b16 %v702
        %v1723 = vunpack.c.h.b16 %v702
        %v1724 = vunpack.c.l.b16 %v703
        %v1725 = vunpack.c.h.b16 %v703
        %v1726 = vunpack.c.l.b16 %v704
        %v1727 = vunpack.c.l.b16 %v705
        %v1728 = vunpack.c.h.b16 %v705
        %v1729 = vunpack.c.l.b16 %v706
        %v1730 = vunpack.c.h.b16 %v706
        %v1731 = vunpack.c.l.b16 %v707
        %v1732 = vunpack.c.h.b16 %v707
        %v1733 = vunpack.c.l.b16 %v708
        %v1734 = vunpack.c.l.b16 %v709
        %v1735 = vunpack.c.h.b16 %v709
        %v1736 = vunpack.c.l.b16 %v710
        %v1737 = vunpack.c.h.b16 %v710
        %v1738 = vunpack.c.l.b16 %v711
        %v1739 = vunpack.c.h.b16 %v711
        %v1740 = vunpack.c.l.b16 %v712
        %v1741 = vunpack.c.l.b16 %v713
        %v1742 = vunpack.c.h.b16 %v713
        %v1743 = vunpack.c.l.b16 %v714
        %v1744 = vunpack.c.h.b16 %v714
        %v1745 = vunpack.c.l.b16 %v715
        %v1746 = vunpack.c.h.b16 %v715
        %v1747 = vunpack.c.l.b16 %v716
        %v1748 = vunpack.c.l.b16 %v717
        %v1749 = vunpack.c.h.b16 %v717
        %v1750 = vunpack.c.l.b16 %v718
        %v1751 = vunpack.c.h.b16 %v718
        %v1752 = vunpack.c.l.b16 %v719
        %v1753 = vunpack.c.h.b16 %v719
        %v1754 = vunpack.c.l.b16 %v720
        %v1755 = vunpack.c.l.b16 %v721
        %v1756 = vunpack.c.h.b16 %v721
        %v1757 = vunpack.c.l.b16 %v722
        %v1758 = vunpack.c.h.b16 %v722
        %v1759 = vunpack.c.l.b16 %v723
        %v1760 = vunpack.c.h.b16 %v723
        %v1761 = vunpack.c.l.b16 %v724
        %v1762 = vunpack.c.l.b16 %v725
        %v1763 = vunpack.c.h.b16 %v725
        %v1764 = vunpack.c.l.b16 %v726
        %v1765 = vunpack.c.h.b16 %v726
        %v1766 = vunpack.c.l.b16 %v727
        %v1767 = vunpack.c.h.b16 %v727
        %v1768 = vunpack.c.l.b16 %v728
        %v1769 = vunpack.c.l.b16 %v729
        %v1770 = vunpack.c.h.b16 %v729
        %v1771 = vunpack.c.l.b16 %v730
        %v1772 = vunpack.c.h.b16 %v730
        %v1773 = vunpack.c.l.b16 %v731
        %v1774 = vunpack.c.h.b16 %v731
        %v1775 = vunpack.c.l.b16 %v732
        %v1776 = vunpack.c.l.b16 %v733
        %v1777 = vunpack.c.h.b16 %v733
        %v1778 = vunpack.c.l.b16 %v734
        %v1779 = vunpack.c.h.b16 %v734
        %v1780 = vunpack.c.l.b16 %v735
        %v1781 = vunpack.c.h.b16 %v735
        %v1782 = vunpack.c.l.b16 %v736
        %v1783 = vunpack.c.l.b16 %v737
        %v1784 = vunpack.c.h.b16 %v737
        %v1785 = vunpack.c.l.b16 %v738
        %v1786 = vunpack.c.h.b16 %v738
        %v1787 = vunpack.c.l.b16 %v739
        %v1788 = vunpack.c.h.b16 %v739
        %v1789 = vunpack.c.l.b16 %v740
        %v1790 = vunpack.c.l.b16 %v741
        %v1791 = vunpack.c.h.b16 %v741
        %v1792 = vunpack.c.l.b16 %v742
        %v1793 = vunpack.c.h.b16 %v742
        %v1794 = vunpack.c.l.b16 %v743
        %v1795 = vunpack.c.h.b16 %v743
        %v1796 = vunpack.c.l.b16 %v744
        %v1797 = vunpack.c.l.b16 %v745
        %v1798 = vunpack.c.h.b16 %v745
        %v1799 = vunpack.c.l.b16 %v746
        %v1800 = vunpack.c.h.b16 %v746
        %v1801 = vunpack.c.l.b16 %v747
        %v1802 = vunpack.c.h.b16 %v747
        %v1803 = vunpack.c.l.b16 %v748
        %v1804 = vunpack.c.l.b16 %v749
        %v1805 = vunpack.c.h.b16 %v749
        %v1806 = vunpack.c.l.b16 %v750
        %v1807 = vunpack.c.h.b16 %v750
        %v1808 = vunpack.c.l.b16 %v751
        %v1809 = vunpack.c.h.b16 %v751
        %v1810 = vunpack.c.l.b16 %v752
        %v1811 = vunpack.c.l.b16 %v753
        %v1812 = vunpack.c.h.b16 %v753
        %v1813 = vunpack.c.l.b16 %v754
        %v1814 = vunpack.c.h.b16 %v754
        %v1815 = vunpack.c.l.b16 %v755
        %v1816 = vunpack.c.h.b16 %v755
        %v1817 = vunpack.c.l.b16 %v756
        %v1818 = vunpack.c.l.b16 %v757
        %v1819 = vunpack.c.h.b16 %v757
        %v1820 = vunpack.c.l.b16 %v758
        %v1821 = vunpack.c.h.b16 %v758
        %v1822 = vunpack.c.l.b16 %v759
        %v1823 = vunpack.c.h.b16 %v759
        %v1824 = vunpack.c.l.b16 %v760
        %v1825 = vunpack.c.l.b16 %v761
        %v1826 = vunpack.c.h.b16 %v761
        %v1827 = vunpack.c.l.b16 %v762
        %v1828 = vunpack.c.h.b16 %v762
        %v1829 = vunpack.c.l.b16 %v763
        %v1830 = vunpack.c.h.b16 %v763
        %v1831 = vunpack.c.l.b16 %v764
        %v1832 = vunpack.c.l.b16 %v765
        %v1833 = vunpack.c.h.b16 %v765
        %v1834 = vunpack.c.l.b16 %v766
        %v1835 = vunpack.c.h.b16 %v766
        %v1836 = vunpack.c.l.b16 %v767
        %v1837 = vunpack.c.h.b16 %v767
        %v1838 = vunpack.c.l.b16 %v768
        %v1839 = vunpack.c.l.b16 %v769
        %v1840 = vunpack.c.h.b16 %v769
        %v1841 = vunpack.c.l.b16 %v770
        %v1842 = vunpack.c.h.b16 %v770
        %v1843 = vunpack.c.l.b16 %v771
        %v1844 = vunpack.c.h.b16 %v771
        %v1845 = vunpack.c.l.b16 %v772
        %v1846 = vunpack.c.l.b16 %v773
        %v1847 = vunpack.c.h.b16 %v773
        %v1848 = vunpack.c.l.b16 %v774
        %v1849 = vunpack.c.h.b16 %v774
        %v1850 = vunpack.c.l.b16 %v775
        %v1851 = vunpack.c.h.b16 %v775
        %v1852 = vunpack.c.l.b16 %v776
        %v1853 = vunpack.c.l.b16 %v777
        %v1854 = vunpack.c.h.b16 %v777
        %v1855 = vunpack.c.l.b16 %v778
        %v1856 = vunpack.c.h.b16 %v778
        %v1857 = vunpack.c.l.b16 %v779
        %v1858 = vunpack.c.h.b16 %v779
        %v1859 = vunpack.c.l.b16 %v780
        %v1860 = vunpack.c.l.b16 %v781
        %v1861 = vunpack.c.h.b16 %v781
        %v1862 = vunpack.c.l.b16 %v782
        %v1863 = vunpack.c.h.b16 %v782
        %v1864 = vunpack.c.l.b16 %v783
        %v1865 = vunpack.c.h.b16 %v783
        %v1866 = vunpack.c.l.b16 %v784
        %v1867 = vunpack.c.l.b16 %v785
        %v1868 = vunpack.c.h.b16 %v785
        %v1869 = vunpack.c.l.b16 %v786
        %v1870 = vunpack.c.h.b16 %v786
        %v1871 = vunpack.c.l.b16 %v787
        %v1872 = vunpack.c.h.b16 %v787
        %v1873 = vunpack.c.l.b16 %v788
        %v1874 = vunpack.c.l.b16 %v789
        %v1875 = vunpack.c.h.b16 %v789
        %v1876 = vunpack.c.l.b16 %v790
        %v1877 = vunpack.c.h.b16 %v790
        %v1878 = vunpack.c.l.b16 %v791
        %v1879 = vunpack.c.h.b16 %v791
        %v1880 = vunpack.c.l.b16 %v792
        %v1881 = vunpack.c.l.b16 %v793
        %v1882 = vunpack.c.h.b16 %v793
        %v1883 = vunpack.c.l.b16 %v794
        %v1884 = vunpack.c.h.b16 %v794
        %v1885 = vunpack.c.l.b16 %v795
        %v1886 = vunpack.c.h.b16 %v795
        %v1887 = vunpack.c.l.b16 %v796
        %v1888 = vunpack.c.l.b16 %v797
        %v1889 = vunpack.c.h.b16 %v797
        %v1890 = vunpack.c.l.b16 %v798
        %v1891 = vunpack.c.h.b16 %v798
        %v1892 = vunpack.c.l.b16 %v799
        %v1893 = vunpack.c.h.b16 %v799
        %v1894 = vunpack.c.l.b16 %v800
        %v1895 = vunpack.c.l.b16 %v801
        %v1896 = vunpack.c.h.b16 %v801
        %v1897 = vunpack.c.l.b16 %v802
        %v1898 = vunpack.c.h.b16 %v802
        %v1899 = vunpack.c.l.b16 %v803
        %v1900 = vunpack.c.h.b16 %v803
        %v1901 = vunpack.c.l.b16 %v804
        %v1902 = vunpack.c.l.b16 %v805
        %v1903 = vunpack.c.h.b16 %v805
        %v1904 = vunpack.c.l.b16 %v806
        %v1905 = vunpack.c.h.b16 %v806
        %v1906 = vunpack.c.l.b16 %v807
        %v1907 = vunpack.c.h.b16 %v807
        %v1908 = vunpack.c.l.b16 %v808
        %v1909 = vpack.c.b16 %v1216, %v1209
        %v1910 = vpack.c.b16 %v1217, %v1210
        %v1911 = vpack.c.b16 %v1218, %v1211
        %v1912 = vpack.c.b16 %v1219, %v1212
        %v1913 = vpack.c.b16 %v1220, %v1213
        %v1914 = vpack.c.b16 %v1221, %v1214
        %v1915 = vpack.c.b16 %v1222, %v1215
        %v1916 = vpack.c.b16 %v1230, %v1223
        %v1917 = vpack.c.b16 %v1231, %v1224
        %v1918 = vpack.c.b16 %v1232, %v1225
        %v1919 = vpack.c.b16 %v1233, %v1226
        %v1920 = vpack.c.b16 %v1234, %v1227
        %v1921 = vpack.c.b16 %v1235, %v1228
        %v1922 = vpack.c.b16 %v1236, %v1229
        %v1923 = vpack.c.b16 %v1244, %v1237
        %v1924 = vpack.c.b16 %v1245, %v1238
        %v1925 = vpack.c.b16 %v1246, %v1239
        %v1926 = vpack.c.b16 %v1247, %v1240
        %v1927 = vpack.c.b16 %v1248, %v1241
        %v1928 = vpack.c.b16 %v1249, %v1242
        %v1929 = vpack.c.b16 %v1250, %v1243
        %v1930 = vpack.c.b16 %v1258, %v1251
        %v1931 = vpack.c.b16 %v1259, %v1252
        %v1932 = vpack.c.b16 %v1260, %v1253
        %v1933 = vpack.c.b16 %v1261, %v1254
        %v1934 = vpack.c.b16 %v1262, %v1255
        %v1935 = vpack.c.b16 %v1263, %v1256
        %v1936 = vpack.c.b16 %v1264, %v1257
        %v1937 = vpack.c.b16 %v1272, %v1265
        %v1938 = vpack.c.b16 %v1273, %v1266
        %v1939 = vpack.c.b16 %v1274, %v1267
        %v1940 = vpack.c.b16 %v1275, %v1268
        %v1941 = vpack.c.b16 %v1276, %v1269
        %v1942 = vpack.c.b16 %v1277, %v1270
        %v1943 = vpack.c.b16 %v1278, %v1271
        %v1944 = vpack.c.b16 %v1286, %v1279
        %v1945 = vpack.c.b16 %v1287, %v1280
        %v1946 = vpack.c.b16 %v1288, %v1281
        %v1947 = vpack.c.b16 %v1289, %v1282
        %v1948 = vpack.c.b16 %v1290, %v1283
        %v1949 = vpack.c.b16 %v1291, %v1284
        %v1950 = vpack.c.b16 %v1292, %v1285
        %v1951 = vpack.c.b16 %v1300, %v1293
        %v1952 = vpack.c.b16 %v1301, %v1294
        %v1953 = vpack.c.b16 %v1302, %v1295
        %v1954 = vpack.c.b16 %v1303, %v1296
        %v1955 = vpack.c.b16 %v1304, %v1297
        %v1956 = vpack.c.b16 %v1305, %v1298
        %v1957 = vpack.c.b16 %v1306, %v1299
        %v1958 = vpack.c.b16 %v1314, %v1307
        %v1959 = vpack.c.b16 %v1315, %v1308
        %v1960 = vpack.c.b16 %v1316, %v1309
        %v1961 = vpack.c.b16 %v1317, %v1310
        %v1962 = vpack.c.b16 %v1318, %v1311
        %v1963 = vpack.c.b16 %v1319, %v1312
        %v1964 = vpack.c.b16 %v1320, %v1313
        %v1965 = vpack.c.b16 %v1328, %v1321
        %v1966 = vpack.c.b16 %v1329, %v1322
        %v1967 = vpack.c.b16 %v1330, %v1323
        %v1968 = vpack.c.b16 %v1331, %v1324
        %v1969 = vpack.c.b16 %v1332, %v1325
        %v1970 = vpack.c.b16 %v1333, %v1326
        %v1971 = vpack.c.b16 %v1334, %v1327
        %v1972 = vpack.c.b16 %v1342, %v1335
        %v1973 = vpack.c.b16 %v1343, %v1336
        %v1974 = vpack.c.b16 %v1344, %v1337
        %v1975 = vpack.c.b16 %v1345, %v1338
        %v1976 = vpack.c.b16 %v1346, %v1339
        %v1977 = vpack.c.b16 %v1347, %v1340
        %v1978 = vpack.c.b16 %v1348, %v1341
        %v1979 = vpack.c.b16 %v1356, %v1349
        %v1980 = vpack.c.b16 %v1357, %v1350
        %v1981 = vpack.c.b16 %v1358, %v1351
        %v1982 = vpack.c.b16 %v1359, %v1352
        %v1983 = vpack.c.b16 %v1360, %v1353
        %v1984 = vpack.c.b16 %v1361, %v1354
        %v1985 = vpack.c.b16 %v1362, %v1355
        %v1986 = vpack.c.b16 %v1370, %v1363
        %v1987 = vpack.c.b16 %v1371, %v1364
        %v1988 = vpack.c.b16 %v1372, %v1365
        %v1989 = vpack.c.b16 %v1373, %v1366
        %v1990 = vpack.c.b16 %v1374, %v1367
        %v1991 = vpack.c.b16 %v1375, %v1368
        %v1992 = vpack.c.b16 %v1376, %v1369
        %v1993 = vpack.c.b16 %v1384, %v1377
        %v1994 = vpack.c.b16 %v1385, %v1378
        %v1995 = vpack.c.b16 %v1386, %v1379
        %v1996 = vpack.c.b16 %v1387, %v1380
        %v1997 = vpack.c.b16 %v1388, %v1381
        %v1998 = vpack.c.b16 %v1389, %v1382
        %v1999 = vpack.c.b16 %v1390, %v1383
        %v2000 = vpack.c.b16 %v1398, %v1391
        %v2001 = vpack.c.b16 %v1399, %v1392
        %v2002 = vpack.c.b16 %v1400, %v1393
        %v2003 = vpack.c.b16 %v1401, %v1394
        %v2004 = vpack.c.b16 %v1402, %v1395
        %v2005 = vpack.c.b16 %v1403, %v1396
        %v2006 = vpack.c.b16 %v1404, %v1397
        %v2007 = vpack.c.b16 %v1412, %v1405
        %v2008 = vpack.c.b16 %v1413, %v1406
        %v2009 = vpack.c.b16 %v1414, %v1407
        %v2010 = vpack.c.b16 %v1415, %v1408
        %v2011 = vpack.c.b16 %v1416, %v1409
        %v2012 = vpack.c.b16 %v1417, %v1410
        %v2013 = vpack.c.b16 %v1418, %v1411
        %v2014 = vpack.c.b16 %v1426, %v1419
        %v2015 = vpack.c.b16 %v1427, %v1420
        %v2016 = vpack.c.b16 %v1428, %v1421
        %v2017 = vpack.c.b16 %v1429, %v1422
        %v2018 = vpack.c.b16 %v1430, %v1423
        %v2019 = vpack.c.b16 %v1431, %v1424
        %v2020 = vpack.c.b16 %v1432, %v1425
        %v2021 = vpack.c.b16 %v1440, %v1433
        %v2022 = vpack.c.b16 %v1441, %v1434
        %v2023 = vpack.c.b16 %v1442, %v1435
        %v2024 = vpack.c.b16 %v1443, %v1436
        %v2025 = vpack.c.b16 %v1444, %v1437
        %v2026 = vpack.c.b16 %v1445, %v1438
        %v2027 = vpack.c.b16 %v1446, %v1439
        %v2028 = vpack.c.b16 %v1454, %v1447
        %v2029 = vpack.c.b16 %v1455, %v1448
        %v2030 = vpack.c.b16 %v1456, %v1449
        %v2031 = vpack.c.b16 %v1457, %v1450
        %v2032 = vpack.c.b16 %v1458, %v1451
        %v2033 = vpack.c.b16 %v1459, %v1452
        %v2034 = vpack.c.b16 %v1460, %v1453
        %v2035 = vpack.c.b16 %v1468, %v1461
        %v2036 = vpack.c.b16 %v1469, %v1462
        %v2037 = vpack.c.b16 %v1470, %v1463
        %v2038 = vpack.c.b16 %v1471, %v1464
        %v2039 = vpack.c.b16 %v1472, %v1465
        %v2040 = vpack.c.b16 %v1473, %v1466
        %v2041 = vpack.c.b16 %v1474, %v1467
        %v2042 = vpack.c.b16 %v1482, %v1475
        %v2043 = vpack.c.b16 %v1483, %v1476
        %v2044 = vpack.c.b16 %v1484, %v1477
        %v2045 = vpack.c.b16 %v1485, %v1478
        %v2046 = vpack.c.b16 %v1486, %v1479
        %v2047 = vpack.c.b16 %v1487, %v1480
        %v2048 = vpack.c.b16 %v1488, %v1481
        %v2049 = vpack.c.b16 %v1496, %v1489
        %v2050 = vpack.c.b16 %v1497, %v1490
        %v2051 = vpack.c.b16 %v1498, %v1491
        %v2052 = vpack.c.b16 %v1499, %v1492
        %v2053 = vpack.c.b16 %v1500, %v1493
        %v2054 = vpack.c.b16 %v1501, %v1494
        %v2055 = vpack.c.b16 %v1502, %v1495
        %v2056 = vpack.c.b16 %v1510, %v1503
        %v2057 = vpack.c.b16 %v1511, %v1504
        %v2058 = vpack.c.b16 %v1512, %v1505
        %v2059 = vpack.c.b16 %v1513, %v1506
        %v2060 = vpack.c.b16 %v1514, %v1507
        %v2061 = vpack.c.b16 %v1515, %v1508
        %v2062 = vpack.c.b16 %v1516, %v1509
        %v2063 = vpack.c.b16 %v1524, %v1517
        %v2064 = vpack.c.b16 %v1525, %v1518
        %v2065 = vpack.c.b16 %v1526, %v1519
        %v2066 = vpack.c.b16 %v1527, %v1520
        %v2067 = vpack.c.b16 %v1528, %v1521
        %v2068 = vpack.c.b16 %v1529, %v1522
        %v2069 = vpack.c.b16 %v1530, %v1523
        %v2070 = vpack.c.b16 %v1538, %v1531
        %v2071 = vpack.c.b16 %v1539, %v1532
        %v2072 = vpack.c.b16 %v1540, %v1533
        %v2073 = vpack.c.b16 %v1541, %v1534
        %v2074 = vpack.c.b16 %v1542, %v1535
        %v2075 = vpack.c.b16 %v1543, %v1536
        %v2076 = vpack.c.b16 %v1544, %v1537
        %v2077 = vpack.c.b16 %v1552, %v1545
        %v2078 = vpack.c.b16 %v1553, %v1546
        %v2079 = vpack.c.b16 %v1554, %v1547
        %v2080 = vpack.c.b16 %v1555, %v1548
        %v2081 = vpack.c.b16 %v1556, %v1549
        %v2082 = vpack.c.b16 %v1557, %v1550
        %v2083 = vpack.c.b16 %v1558, %v1551
        %v2084 = vpack.c.b16 %v1566, %v1559
        %v2085 = vpack.c.b16 %v1567, %v1560
        %v2086 = vpack.c.b16 %v1568, %v1561
        %v2087 = vpack.c.b16 %v1569, %v1562
        %v2088 = vpack.c.b16 %v1570, %v1563
        %v2089 = vpack.c.b16 %v1571, %v1564
        %v2090 = vpack.c.b16 %v1572, %v1565
        %v2091 = vpack.c.b16 %v1580, %v1573
        %v2092 = vpack.c.b16 %v1581, %v1574
        %v2093 = vpack.c.b16 %v1582, %v1575
        %v2094 = vpack.c.b16 %v1583, %v1576
        %v2095 = vpack.c.b16 %v1584, %v1577
        %v2096 = vpack.c.b16 %v1585, %v1578
        %v2097 = vpack.c.b16 %v1586, %v1579
        %v2098 = vpack.c.b16 %v1594, %v1587
        %v2099 = vpack.c.b16 %v1595, %v1588
        %v2100 = vpack.c.b16 %v1596, %v1589
        %v2101 = vpack.c.b16 %v1597, %v1590
        %v2102 = vpack.c.b16 %v1598, %v1591
        %v2103 = vpack.c.b16 %v1599, %v1592
        %v2104 = vpack.c.b16 %v1600, %v1593
        %v2105 = vpack.c.b16 %v1608, %v1601
        %v2106 = vpack.c.b16 %v1609, %v1602
        %v2107 = vpack.c.b16 %v1610, %v1603
        %v2108 = vpack.c.b16 %v1611, %v1604
        %v2109 = vpack.c.b16 %v1612, %v1605
        %v2110 = vpack.c.b16 %v1613, %v1606
        %v2111 = vpack.c.b16 %v1614, %v1607
        %v2112 = vpack.c.b16 %v1622, %v1615
        %v2113 = vpack.c.b16 %v1623, %v1616
        %v2114 = vpack.c.b16 %v1624, %v1617
        %v2115 = vpack.c.b16 %v1625, %v1618
        %v2116 = vpack.c.b16 %v1626, %v1619
        %v2117 = vpack.c.b16 %v1627, %v1620
        %v2118 = vpack.c.b16 %v1628, %v1621
        %v2119 = vpack.c.b16 %v1636, %v1629
        %v2120 = vpack.c.b16 %v1637, %v1630
        %v2121 = vpack.c.b16 %v1638, %v1631
        %v2122 = vpack.c.b16 %v1639, %v1632
        %v2123 = vpack.c.b16 %v1640, %v1633
        %v2124 = vpack.c.b16 %v1641, %v1634
        %v2125 = vpack.c.b16 %v1642, %v1635
        %v2126 = vpack.c.b16 %v1650, %v1643
        %v2127 = vpack.c.b16 %v1651, %v1644
        %v2128 = vpack.c.b16 %v1652, %v1645
        %v2129 = vpack.c.b16 %v1653, %v1646
        %v2130 = vpack.c.b16 %v1654, %v1647
        %v2131 = vpack.c.b16 %v1655, %v1648
        %v2132 = vpack.c.b16 %v1656, %v1649
        %v2133 = vpack.c.b16 %v1664, %v1657
        %v2134 = vpack.c.b16 %v1665, %v1658
        %v2135 = vpack.c.b16 %v1666, %v1659
        %v2136 = vpack.c.b16 %v1667, %v1660
        %v2137 = vpack.c.b16 %v1668, %v1661
        %v2138 = vpack.c.b16 %v1669, %v1662
        %v2139 = vpack.c.b16 %v1670, %v1663
        %v2140 = vpack.c.b16 %v1678, %v1671
        %v2141 = vpack.c.b16 %v1679, %v1672
        %v2142 = vpack.c.b16 %v1680, %v1673
        %v2143 = vpack.c.b16 %v1681, %v1674
        %v2144 = vpack.c.b16 %v1682, %v1675
        %v2145 = vpack.c.b16 %v1683, %v1676
        %v2146 = vpack.c.b16 %v1684, %v1677
        %v2147 = vpack.c.b16 %v1692, %v1685
        %v2148 = vpack.c.b16 %v1693, %v1686
        %v2149 = vpack.c.b16 %v1694, %v1687
        %v2150 = vpack.c.b16 %v1695, %v1688
        %v2151 = vpack.c.b16 %v1696, %v1689
        %v2152 = vpack.c.b16 %v1697, %v1690
        %v2153 = vpack.c.b16 %v1698, %v1691
        %v2154 = vpack.c.b16 %v1706, %v1699
        %v2155 = vpack.c.b16 %v1707, %v1700
        %v2156 = vpack.c.b16 %v1708, %v1701
        %v2157 = vpack.c.b16 %v1709, %v1702
        %v2158 = vpack.c.b16 %v1710, %v1703
        %v2159 = vpack.c.b16 %v1711, %v1704
        %v2160 = vpack.c.b16 %v1712, %v1705
        %v2161 = vpack.c.b16 %v1720, %v1713
        %v2162 = vpack.c.b16 %v1721, %v1714
        %v2163 = vpack.c.b16 %v1722, %v1715
        %v2164 = vpack.c.b16 %v1723, %v1716
        %v2165 = vpack.c.b16 %v1724, %v1717
        %v2166 = vpack.c.b16 %v1725, %v1718
        %v2167 = vpack.c.b16 %v1726, %v1719
        %v2168 = vpack.c.b16 %v1734, %v1727
        %v2169 = vpack.c.b16 %v1735, %v1728
        %v2170 = vpack.c.b16 %v1736, %v1729
        %v2171 = vpack.c.b16 %v1737, %v1730
        %v2172 = vpack.c.b16 %v1738, %v1731
        %v2173 = vpack.c.b16 %v1739, %v1732
        %v2174 = vpack.c.b16 %v1740, %v1733
        %v2175 = vpack.c.b16 %v1748, %v1741
        %v2176 = vpack.c.b16 %v1749, %v1742
        %v2177 = vpack.c.b16 %v1750, %v1743
        %v2178 = vpack.c.b16 %v1751, %v1744
        %v2179 = vpack.c.b16 %v1752, %v1745
        %v2180 = vpack.c.b16 %v1753, %v1746
        %v2181 = vpack.c.b16 %v1754, %v1747
        %v2182 = vpack.c.b16 %v1762, %v1755
        %v2183 = vpack.c.b16 %v1763, %v1756
        %v2184 = vpack.c.b16 %v1764, %v1757
        %v2185 = vpack.c.b16 %v1765, %v1758
        %v2186 = vpack.c.b16 %v1766, %v1759
        %v2187 = vpack.c.b16 %v1767, %v1760
        %v2188 = vpack.c.b16 %v1768, %v1761
        %v2189 = vpack.c.b16 %v1776, %v1769
        %v2190 = vpack.c.b16 %v1777, %v1770
        %v2191 = vpack.c.b16 %v1778, %v1771
        %v2192 = vpack.c.b16 %v1779, %v1772
        %v2193 = vpack.c.b16 %v1780, %v1773
        %v2194 = vpack.c.b16 %v1781, %v1774
        %v2195 = vpack.c.b16 %v1782, %v1775
        %v2196 = vpack.c.b16 %v1790, %v1783
        %v2197 = vpack.c.b16 %v1791, %v1784
        %v2198 = vpack.c.b16 %v1792, %v1785
        %v2199 = vpack.c.b16 %v1793, %v1786
        %v2200 = vpack.c.b16 %v1794, %v1787
        %v2201 = vpack.c.b16 %v1795, %v1788
        %v2202 = vpack.c.b16 %v1796, %v1789
        %v2203 = vpack.c.b16 %v1804, %v1797
        %v2204 = vpack.c.b16 %v1805, %v1798
        %v2205 = vpack.c.b16 %v1806, %v1799
        %v2206 = vpack.c.b16 %v1807, %v1800
        %v2207 = vpack.c.b16 %v1808, %v1801
        %v2208 = vpack.c.b16 %v1809, %v1802
        %v2209 = vpack.c.b16 %v1810, %v1803
        %v2210 = vpack.c.b16 %v1818, %v1811
        %v2211 = vpack.c.b16 %v1819, %v1812
        %v2212 = vpack.c.b16 %v1820, %v1813
        %v2213 = vpack.c.b16 %v1821, %v1814
        %v2214 = vpack.c.b16 %v1822, %v1815
        %v2215 = vpack.c.b16 %v1823, %v1816
        %v2216 = vpack.c.b16 %v1824, %v1817
        %v2217 = vpack.c.b16 %v1832, %v1825
        %v2218 = vpack.c.b16 %v1833, %v1826
        %v2219 = vpack.c.b16 %v1834, %v1827
        %v2220 = vpack.c.b16 %v1835, %v1828
        %v2221 = vpack.c.b16 %v1836, %v1829
        %v2222 = vpack.c.b16 %v1837, %v1830
        %v2223 = vpack.c.b16 %v1838, %v1831
        %v2224 = vpack.c.b16 %v1846, %v1839
        %v2225 = vpack.c.b16 %v1847, %v1840
        %v2226 = vpack.c.b16 %v1848, %v1841
        %v2227 = vpack.c.b16 %v1849, %v1842
        %v2228 = vpack.c.b16 %v1850, %v1843
        %v2229 = vpack.c.b16 %v1851, %v1844
        %v2230 = vpack.c.b16 %v1852, %v1845
        %v2231 = vpack.c.b16 %v1860, %v1853
        %v2232 = vpack.c.b16 %v1861, %v1854
        %v2233 = vpack.c.b16 %v1862, %v1855
        %v2234 = vpack.c.b16 %v1863, %v1856
        %v2235 = vpack.c.b16 %v1864, %v1857
        %v2236 = vpack.c.b16 %v1865, %v1858
        %v2237 = vpack.c.b16 %v1866, %v1859
        %v2238 = vpack.c.b16 %v1874, %v1867
        %v2239 = vpack.c.b16 %v1875, %v1868
        %v2240 = vpack.c.b16 %v1876, %v1869
        %v2241 = vpack.c.b16 %v1877, %v1870
        %v2242 = vpack.c.b16 %v1878, %v1871
        %v2243 = vpack.c.b16 %v1879, %v1872
        %v2244 = vpack.c.b16 %v1880, %v1873
        %v2245 = vpack.c.b16 %v1888, %v1881
        %v2246 = vpack.c.b16 %v1889, %v1882
        %v2247 = vpack.c.b16 %v1890, %v1883
        %v2248 = vpack.c.b16 %v1891, %v1884
        %v2249 = vpack.c.b16 %v1892, %v1885
        %v2250 = vpack.c.b16 %v1893, %v1886
        %v2251 = vpack.c.b16 %v1894, %v1887
        %v2252 = vpack.c.b16 %v1902, %v1895
        %v2253 = vpack.c.b16 %v1903, %v1896
        %v2254 = vpack.c.b16 %v1904, %v1897
        %v2255 = vpack.c.b16 %v1905, %v1898
        %v2256 = vpack.c.b16 %v1906, %v1899
        %v2257 = vpack.c.b16 %v1907, %v1900
        %v2258 = vpack.c.b16 %v1908, %v1901
        %vm2609 = vcmask 261120
        %v2611 = vsel %vm2609, %v408, 0
        %2613 = vmatprep.subr.bf16.mxu0 %v1910
        %2614 = vmatpush1.bf16.msra.mxu0 %v1909
        %2615 = vmatprep.subr.bf16.mxu0 %v1917
        %2616 = vmatpush1.bf16.msra.mxu0 %v1916
        %2617 = vmatprep.subr.bf16.mxu0 %v1924
        %2618 = vmatpush1.bf16.msra.mxu0 %v1923
        %2619 = vmatprep.subr.bf16.mxu0 %v1931
        %2620 = vmatpush1.bf16.msra.mxu0 %v1930
        %2621 = vmatprep.subr.bf16.mxu0 %v1938
        %2622 = vmatpush1.bf16.msra.mxu0 %v1937
        %2623 = vmatprep.subr.bf16.mxu0 %v1945
        %2624 = vmatpush1.bf16.msra.mxu0 %v1944
        %2625 = vmatprep.subr.bf16.mxu0 %v1952
        %2626 = vmatpush1.bf16.msra.mxu0 %v1951
        %2627 = vmatprep.subr.bf16.mxu0 %v1959
        %2628 = vmatpush1.bf16.msra.mxu0 %v1958
        %2629 = vmatprep.subr.bf16.mxu0 %v1966
        %2630 = vmatpush1.bf16.msra.mxu0 %v1965
        %2631 = vmatprep.subr.bf16.mxu0 %v1973
        %2632 = vmatpush1.bf16.msra.mxu0 %v1972
        %2633 = vmatprep.subr.bf16.mxu0 %v1980
        %2634 = vmatpush1.bf16.msra.mxu0 %v1979
        %2635 = vmatprep.subr.bf16.mxu0 %v1987
        %2636 = vmatpush1.bf16.msra.mxu0 %v1986
        %2637 = vmatprep.subr.bf16.mxu0 %v1994
        %2638 = vmatpush1.bf16.msra.mxu0 %v1993
        %2639 = vmatprep.subr.bf16.mxu0 %v2001
        %2640 = vmatpush1.bf16.msra.mxu0 %v2000
        %2641 = vmatprep.subr.bf16.mxu0 %v2008
        %2642 = vmatpush1.bf16.msra.mxu0 %v2007
        %2643 = vmatprep.subr.bf16.mxu0 %v2015
        %2644 = vmatpush1.bf16.msra.mxu0 %v2014
        %2645 = vmatprep.mubr.bf16.mxu0 %v403
        %2646 = vmatmul.mubr.bf16.gmra.mrb[0].mxu0 %v402
        %v2647 = vpop.f32.mrb[0].mxu0
        %v2648 = vadd.f32 0.0, %v2647
        %v2649 = vpop.f32.mrb[0].mxu0
        %v2650 = vadd.f32 0.0, %v2649
        %v2651 = vpop.f32.mrb[0].mxu0
        %v2652 = vpop.f32.mrb[0].mxu0
        %2653 = vdwg.mxu0
        %2654 = vmatprep.subr.bf16.mxu0 %v2022
        %2655 = vmatpush1.bf16.msra.mxu0 %v2021
        %2656 = vmatprep.subr.bf16.mxu0 %v2029
        %2657 = vmatpush1.bf16.msra.mxu0 %v2028
        %2658 = vmatprep.subr.bf16.mxu0 %v2036
        %2659 = vmatpush1.bf16.msra.mxu0 %v2035
        %2660 = vmatprep.subr.bf16.mxu0 %v2043
        %2661 = vmatpush1.bf16.msra.mxu0 %v2042
        %2662 = vmatprep.subr.bf16.mxu0 %v2050
        %2663 = vmatpush1.bf16.msra.mxu0 %v2049
        %2664 = vmatprep.subr.bf16.mxu0 %v2057
        %2665 = vmatpush1.bf16.msra.mxu0 %v2056
        %2666 = vmatprep.subr.bf16.mxu0 %v2064
        %2667 = vmatpush1.bf16.msra.mxu0 %v2063
        %2668 = vmatprep.subr.bf16.mxu0 %v2071
        %2669 = vmatpush1.bf16.msra.mxu0 %v2070
        %2670 = vmatprep.subr.bf16.mxu0 %v2078
        %2671 = vmatpush1.bf16.msra.mxu0 %v2077
        %2672 = vmatprep.subr.bf16.mxu0 %v2085
        %2673 = vmatpush1.bf16.msra.mxu0 %v2084
        %2674 = vmatprep.subr.bf16.mxu0 %v2092
        %2675 = vmatpush1.bf16.msra.mxu0 %v2091
        %2676 = vmatprep.subr.bf16.mxu0 %v2099
        %2677 = vmatpush1.bf16.msra.mxu0 %v2098
        %2678 = vmatprep.subr.bf16.mxu0 %v2106
        %2679 = vmatpush1.bf16.msra.mxu0 %v2105
        %2680 = vmatprep.subr.bf16.mxu0 %v2113
        %2681 = vmatpush1.bf16.msra.mxu0 %v2112
        %2682 = vmatprep.subr.bf16.mxu0 %v2120
        %2683 = vmatpush1.bf16.msra.mxu0 %v2119
        %2684 = vmatprep.subr.bf16.mxu0 %v2127
        %2685 = vmatpush1.bf16.msra.mxu0 %v2126
        %2686 = vmatprep.mubr.bf16.mxu0 %v405
        %2687 = vmatmul.mubr.bf16.gmra.mrb[0].mxu0 %v404
        %v2688 = vpop.f32.mrb[0].mxu0
        %v2689 = vadd.f32 %v2648, %v2688
        %v2690 = vpop.f32.mrb[0].mxu0
        %v2691 = vadd.f32 %v2650, %v2690
        %v2692 = vpop.f32.mrb[0].mxu0
        %v2693 = vpop.f32.mrb[0].mxu0
        %2694 = vdwg.mxu0
        %2695 = vmatprep.subr.bf16.mxu0 %v2134
        %2696 = vmatpush1.bf16.msra.mxu0 %v2133
        %2697 = vmatprep.subr.bf16.mxu0 %v2141
        %2698 = vmatpush1.bf16.msra.mxu0 %v2140
        %2699 = vmatprep.subr.bf16.mxu0 %v2148
        %2700 = vmatpush1.bf16.msra.mxu0 %v2147
        %2701 = vmatprep.subr.bf16.mxu0 %v2155
        %2702 = vmatpush1.bf16.msra.mxu0 %v2154
        %2703 = vmatprep.subr.bf16.mxu0 %v2162
        %2704 = vmatpush1.bf16.msra.mxu0 %v2161
        %2705 = vmatprep.subr.bf16.mxu0 %v2169
        %2706 = vmatpush1.bf16.msra.mxu0 %v2168
        %2707 = vmatprep.subr.bf16.mxu0 %v2176
        %2708 = vmatpush1.bf16.msra.mxu0 %v2175
        %2709 = vmatprep.subr.bf16.mxu0 %v2183
        %2710 = vmatpush1.bf16.msra.mxu0 %v2182
        %2711 = vmatprep.subr.bf16.mxu0 %v2190
        %2712 = vmatpush1.bf16.msra.mxu0 %v2189
        %2713 = vmatprep.subr.bf16.mxu0 %v2197
        %2714 = vmatpush1.bf16.msra.mxu0 %v2196
        %2715 = vmatprep.subr.bf16.mxu0 %v2204
        %2716 = vmatpush1.bf16.msra.mxu0 %v2203
        %2717 = vmatprep.subr.bf16.mxu0 %v2211
        %2718 = vmatpush1.bf16.msra.mxu0 %v2210
        %2719 = vmatprep.subr.bf16.mxu0 %v2218
        %2720 = vmatpush1.bf16.msra.mxu0 %v2217
        %2721 = vmatprep.subr.bf16.mxu0 %v2225
        %2722 = vmatpush1.bf16.msra.mxu0 %v2224
        %2723 = vmatprep.subr.bf16.mxu0 %v2232
        %2724 = vmatpush1.bf16.msra.mxu0 %v2231
        %2725 = vmatprep.subr.bf16.mxu0 %v2239
        %2726 = vmatpush1.bf16.msra.mxu0 %v2238
        %2727 = vmatprep.mubr.bf16.mxu0 %v407
        %2728 = vmatmul.mubr.bf16.gmra.mrb[0].mxu0 %v406
        %v2729 = vpop.f32.mrb[0].mxu0
        %v2730 = vadd.f32 %v2689, %v2729
        %v2731 = vpop.f32.mrb[0].mxu0
        %v2732 = vadd.f32 %v2691, %v2731
        %v2733 = vpop.f32.mrb[0].mxu0
        %v2734 = vpop.f32.mrb[0].mxu0
        %2735 = vdwg.mxu0
        %2736 = vmatprep.subr.bf16.mxu0 %v2246
        %2737 = vmatpush1.bf16.msra.mxu0 %v2245
        %2738 = vmatprep.subr.bf16.mxu0 %v2253
        %2739 = vmatpush1.bf16.msra.mxu0 %v2252
        %2740 = vmatprep.subr.bf16.mxu0 0
        %2741 = vmatpush1.bf16.msra.mxu0 0
        %2742 = vmatprep.subr.bf16.mxu0 0
        %2743 = vmatpush1.bf16.msra.mxu0 0
        %2744 = vmatprep.subr.bf16.mxu0 0
        %2745 = vmatpush1.bf16.msra.mxu0 0
        %2746 = vmatprep.subr.bf16.mxu0 0
        %2747 = vmatpush1.bf16.msra.mxu0 0
        %2748 = vmatprep.subr.bf16.mxu0 0
        %2749 = vmatpush1.bf16.msra.mxu0 0
        %2750 = vmatprep.subr.bf16.mxu0 0
        %2751 = vmatpush1.bf16.msra.mxu0 0
        %2752 = vmatprep.subr.bf16.mxu0 0
        %2753 = vmatpush1.bf16.msra.mxu0 0
        %2754 = vmatprep.subr.bf16.mxu0 0
        %2755 = vmatpush1.bf16.msra.mxu0 0
        %2756 = vmatprep.subr.bf16.mxu0 0
        %2757 = vmatpush1.bf16.msra.mxu0 0
        %2758 = vmatprep.subr.bf16.mxu0 0
        %2759 = vmatpush1.bf16.msra.mxu0 0
        %2760 = vmatprep.subr.bf16.mxu0 0
        %2761 = vmatpush1.bf16.msra.mxu0 0
        %2762 = vmatprep.subr.bf16.mxu0 0
        %2763 = vmatpush1.bf16.msra.mxu0 0
        %2764 = vmatprep.subr.bf16.mxu0 0
        %2765 = vmatpush1.bf16.msra.mxu0 0
        %2766 = vmatprep.subr.bf16.mxu0 0
        %2767 = vmatpush1.bf16.msra.mxu0 0
        %2768 = vmatprep.mubr.bf16.mxu0 0
        %2769 = vmatmul.mubr.bf16.gmra.mrb[0].mxu0 %v2611
        %v2770 = vpop.f32.mrb[0].mxu0
        %v2771 = vadd.f32 %v2730, %v2770
        %v2772 = vpop.f32.mrb[0].mxu0
        %v2773 = vadd.f32 %v2732, %v2772
        %v2774 = vpop.f32.mrb[0].mxu0
        %v2775 = vpop.f32.mrb[0].mxu0
        %2776 = vdwg.mxu0
        %2777 = vmatprep.subr.bf16.mxu0 %v1912
        %2778 = vmatpush1.bf16.msra.mxu0 %v1911
        %2779 = vmatprep.subr.bf16.mxu0 %v1919
        %2780 = vmatpush1.bf16.msra.mxu0 %v1918
        %2781 = vmatprep.subr.bf16.mxu0 %v1926
        %2782 = vmatpush1.bf16.msra.mxu0 %v1925
        %2783 = vmatprep.subr.bf16.mxu0 %v1933
        %2784 = vmatpush1.bf16.msra.mxu0 %v1932
        %2785 = vmatprep.subr.bf16.mxu0 %v1940
        %2786 = vmatpush1.bf16.msra.mxu0 %v1939
        %2787 = vmatprep.subr.bf16.mxu0 %v1947
        %2788 = vmatpush1.bf16.msra.mxu0 %v1946
        %2789 = vmatprep.subr.bf16.mxu0 %v1954
        %2790 = vmatpush1.bf16.msra.mxu0 %v1953
        %2791 = vmatprep.subr.bf16.mxu0 %v1961
        %2792 = vmatpush1.bf16.msra.mxu0 %v1960
        %2793 = vmatprep.subr.bf16.mxu0 %v1968
        %2794 = vmatpush1.bf16.msra.mxu0 %v1967
        %2795 = vmatprep.subr.bf16.mxu0 %v1975
        %2796 = vmatpush1.bf16.msra.mxu0 %v1974
        %2797 = vmatprep.subr.bf16.mxu0 %v1982
        %2798 = vmatpush1.bf16.msra.mxu0 %v1981
        %2799 = vmatprep.subr.bf16.mxu0 %v1989
        %2800 = vmatpush1.bf16.msra.mxu0 %v1988
        %2801 = vmatprep.subr.bf16.mxu0 %v1996
        %2802 = vmatpush1.bf16.msra.mxu0 %v1995
        %2803 = vmatprep.subr.bf16.mxu0 %v2003
        %2804 = vmatpush1.bf16.msra.mxu0 %v2002
        %2805 = vmatprep.subr.bf16.mxu0 %v2010
        %2806 = vmatpush1.bf16.msra.mxu0 %v2009
        %2807 = vmatprep.subr.bf16.mxu0 %v2017
        %2808 = vmatpush1.bf16.msra.mxu0 %v2016
        %2809 = vmatprep.mubr.bf16.mxu0 %v403
        %2810 = vmatmul.mubr.bf16.gmra.mrb[0].mxu0 %v402
        %v2811 = vpop.f32.mrb[0].mxu0
        %v2812 = vadd.f32 0.0, %v2811
        %v2813 = vpop.f32.mrb[0].mxu0
        %v2814 = vadd.f32 0.0, %v2813
        %v2815 = vpop.f32.mrb[0].mxu0
        %v2816 = vpop.f32.mrb[0].mxu0
        %2817 = vdwg.mxu0
        %2818 = vmatprep.subr.bf16.mxu0 %v2024
        %2819 = vmatpush1.bf16.msra.mxu0 %v2023
        %2820 = vmatprep.subr.bf16.mxu0 %v2031
        %2821 = vmatpush1.bf16.msra.mxu0 %v2030
        %2822 = vmatprep.subr.bf16.mxu0 %v2038
        %2823 = vmatpush1.bf16.msra.mxu0 %v2037
        %2824 = vmatprep.subr.bf16.mxu0 %v2045
        %2825 = vmatpush1.bf16.msra.mxu0 %v2044
        %2826 = vmatprep.subr.bf16.mxu0 %v2052
        %2827 = vmatpush1.bf16.msra.mxu0 %v2051
        %2828 = vmatprep.subr.bf16.mxu0 %v2059
        %2829 = vmatpush1.bf16.msra.mxu0 %v2058
        %2830 = vmatprep.subr.bf16.mxu0 %v2066
        %2831 = vmatpush1.bf16.msra.mxu0 %v2065
        %2832 = vmatprep.subr.bf16.mxu0 %v2073
        %2833 = vmatpush1.bf16.msra.mxu0 %v2072
        %2834 = vmatprep.subr.bf16.mxu0 %v2080
        %2835 = vmatpush1.bf16.msra.mxu0 %v2079
        %2836 = vmatprep.subr.bf16.mxu0 %v2087
        %2837 = vmatpush1.bf16.msra.mxu0 %v2086
        %2838 = vmatprep.subr.bf16.mxu0 %v2094
        %2839 = vmatpush1.bf16.msra.mxu0 %v2093
        %2840 = vmatprep.subr.bf16.mxu0 %v2101
        %2841 = vmatpush1.bf16.msra.mxu0 %v2100
        %2842 = vmatprep.subr.bf16.mxu0 %v2108
        %2843 = vmatpush1.bf16.msra.mxu0 %v2107
        %2844 = vmatprep.subr.bf16.mxu0 %v2115
        %2845 = vmatpush1.bf16.msra.mxu0 %v2114
        %2846 = vmatprep.subr.bf16.mxu0 %v2122
        %2847 = vmatpush1.bf16.msra.mxu0 %v2121
        %2848 = vmatprep.subr.bf16.mxu0 %v2129
        %2849 = vmatpush1.bf16.msra.mxu0 %v2128
        %2850 = vmatprep.mubr.bf16.mxu0 %v405
        %2851 = vmatmul.mubr.bf16.gmra.mrb[0].mxu0 %v404
        %v2852 = vpop.f32.mrb[0].mxu0
        %v2853 = vadd.f32 %v2812, %v2852
        %v2854 = vpop.f32.mrb[0].mxu0
        %v2855 = vadd.f32 %v2814, %v2854
        %v2856 = vpop.f32.mrb[0].mxu0
        %v2857 = vpop.f32.mrb[0].mxu0
        %2858 = vdwg.mxu0
        %2859 = vmatprep.subr.bf16.mxu0 %v2136
        %2860 = vmatpush1.bf16.msra.mxu0 %v2135
        %2861 = vmatprep.subr.bf16.mxu0 %v2143
        %2862 = vmatpush1.bf16.msra.mxu0 %v2142
        %2863 = vmatprep.subr.bf16.mxu0 %v2150
        %2864 = vmatpush1.bf16.msra.mxu0 %v2149
        %2865 = vmatprep.subr.bf16.mxu0 %v2157
        %2866 = vmatpush1.bf16.msra.mxu0 %v2156
        %2867 = vmatprep.subr.bf16.mxu0 %v2164
        %2868 = vmatpush1.bf16.msra.mxu0 %v2163
        %2869 = vmatprep.subr.bf16.mxu0 %v2171
        %2870 = vmatpush1.bf16.msra.mxu0 %v2170
        %2871 = vmatprep.subr.bf16.mxu0 %v2178
        %2872 = vmatpush1.bf16.msra.mxu0 %v2177
        %2873 = vmatprep.subr.bf16.mxu0 %v2185
        %2874 = vmatpush1.bf16.msra.mxu0 %v2184
        %2875 = vmatprep.subr.bf16.mxu0 %v2192
        %2876 = vmatpush1.bf16.msra.mxu0 %v2191
        %2877 = vmatprep.subr.bf16.mxu0 %v2199
        %2878 = vmatpush1.bf16.msra.mxu0 %v2198
        %2879 = vmatprep.subr.bf16.mxu0 %v2206
        %2880 = vmatpush1.bf16.msra.mxu0 %v2205
        %2881 = vmatprep.subr.bf16.mxu0 %v2213
        %2882 = vmatpush1.bf16.msra.mxu0 %v2212
        %2883 = vmatprep.subr.bf16.mxu0 %v2220
        %2884 = vmatpush1.bf16.msra.mxu0 %v2219
        %2885 = vmatprep.subr.bf16.mxu0 %v2227
        %2886 = vmatpush1.bf16.msra.mxu0 %v2226
        %2887 = vmatprep.subr.bf16.mxu0 %v2234
        %2888 = vmatpush1.bf16.msra.mxu0 %v2233
        %2889 = vmatprep.subr.bf16.mxu0 %v2241
        %2890 = vmatpush1.bf16.msra.mxu0 %v2240
        %2891 = vmatprep.mubr.bf16.mxu0 %v407
        %2892 = vmatmul.mubr.bf16.gmra.mrb[0].mxu0 %v406
        %v2893 = vpop.f32.mrb[0].mxu0
        %v2894 = vadd.f32 %v2853, %v2893
        %v2895 = vpop.f32.mrb[0].mxu0
        %v2896 = vadd.f32 %v2855, %v2895
        %v2897 = vpop.f32.mrb[0].mxu0
        %v2898 = vpop.f32.mrb[0].mxu0
        %2899 = vdwg.mxu0
        %2900 = vmatprep.subr.bf16.mxu0 %v2248
        %2901 = vmatpush1.bf16.msra.mxu0 %v2247
        %2902 = vmatprep.subr.bf16.mxu0 %v2255
        %2903 = vmatpush1.bf16.msra.mxu0 %v2254
        %2904 = vmatprep.subr.bf16.mxu0 0
        %2905 = vmatpush1.bf16.msra.mxu0 0
        %2906 = vmatprep.subr.bf16.mxu0 0
        %2907 = vmatpush1.bf16.msra.mxu0 0
        %2908 = vmatprep.subr.bf16.mxu0 0
        %2909 = vmatpush1.bf16.msra.mxu0 0
        %2910 = vmatprep.subr.bf16.mxu0 0
        %2911 = vmatpush1.bf16.msra.mxu0 0
        %2912 = vmatprep.subr.bf16.mxu0 0
        %2913 = vmatpush1.bf16.msra.mxu0 0
        %2914 = vmatprep.subr.bf16.mxu0 0
        %2915 = vmatpush1.bf16.msra.mxu0 0
        %2916 = vmatprep.subr.bf16.mxu0 0
        %2917 = vmatpush1.bf16.msra.mxu0 0
        %2918 = vmatprep.subr.bf16.mxu0 0
        %2919 = vmatpush1.bf16.msra.mxu0 0
        %2920 = vmatprep.subr.bf16.mxu0 0
        %2921 = vmatpush1.bf16.msra.mxu0 0
        %2922 = vmatprep.subr.bf16.mxu0 0
        %2923 = vmatpush1.bf16.msra.mxu0 0
        %2924 = vmatprep.subr.bf16.mxu0 0
        %2925 = vmatpush1.bf16.msra.mxu0 0
        %2926 = vmatprep.subr.bf16.mxu0 0
        %2927 = vmatpush1.bf16.msra.mxu0 0
        %2928 = vmatprep.subr.bf16.mxu0 0
        %2929 = vmatpush1.bf16.msra.mxu0 0
        %2930 = vmatprep.subr.bf16.mxu0 0
        %2931 = vmatpush1.bf16.msra.mxu0 0
        %2932 = vmatprep.mubr.bf16.mxu0 0
        %2933 = vmatmul.mubr.bf16.gmra.mrb[0].mxu0 %v2611
        %v2934 = vpop.f32.mrb[0].mxu0
        %v2935 = vadd.f32 %v2894, %v2934
        %v2936 = vpop.f32.mrb[0].mxu0
        %v2937 = vadd.f32 %v2896, %v2936
        %v2938 = vpop.f32.mrb[0].mxu0
        %v2939 = vpop.f32.mrb[0].mxu0
        %2940 = vdwg.mxu0
        %2941 = vmatprep.subr.bf16.mxu0 %v1914
        %2942 = vmatpush1.bf16.msra.mxu0 %v1913
        %2943 = vmatprep.subr.bf16.mxu0 %v1921
        %2944 = vmatpush1.bf16.msra.mxu0 %v1920
        %2945 = vmatprep.subr.bf16.mxu0 %v1928
        %2946 = vmatpush1.bf16.msra.mxu0 %v1927
        %2947 = vmatprep.subr.bf16.mxu0 %v1935
        %2948 = vmatpush1.bf16.msra.mxu0 %v1934
        %2949 = vmatprep.subr.bf16.mxu0 %v1942
        %2950 = vmatpush1.bf16.msra.mxu0 %v1941
        %2951 = vmatprep.subr.bf16.mxu0 %v1949
        %2952 = vmatpush1.bf16.msra.mxu0 %v1948
        %2953 = vmatprep.subr.bf16.mxu0 %v1956
        %2954 = vmatpush1.bf16.msra.mxu0 %v1955
        %2955 = vmatprep.subr.bf16.mxu0 %v1963
        %2956 = vmatpush1.bf16.msra.mxu0 %v1962
        %2957 = vmatprep.subr.bf16.mxu0 %v1970
        %2958 = vmatpush1.bf16.msra.mxu0 %v1969
        %2959 = vmatprep.subr.bf16.mxu0 %v1977
        %2960 = vmatpush1.bf16.msra.mxu0 %v1976
        %2961 = vmatprep.subr.bf16.mxu0 %v1984
        %2962 = vmatpush1.bf16.msra.mxu0 %v1983
        %2963 = vmatprep.subr.bf16.mxu0 %v1991
        %2964 = vmatpush1.bf16.msra.mxu0 %v1990
        %2965 = vmatprep.subr.bf16.mxu0 %v1998
        %2966 = vmatpush1.bf16.msra.mxu0 %v1997
        %2967 = vmatprep.subr.bf16.mxu0 %v2005
        %2968 = vmatpush1.bf16.msra.mxu0 %v2004
        %2969 = vmatprep.subr.bf16.mxu0 %v2012
        %2970 = vmatpush1.bf16.msra.mxu0 %v2011
        %2971 = vmatprep.subr.bf16.mxu0 %v2019
        %2972 = vmatpush1.bf16.msra.mxu0 %v2018
        %2973 = vmatprep.mubr.bf16.mxu0 %v403
        %2974 = vmatmul.mubr.bf16.gmra.mrb[0].mxu0 %v402
        %v2975 = vpop.f32.mrb[0].mxu0
        %v2976 = vadd.f32 0.0, %v2975
        %v2977 = vpop.f32.mrb[0].mxu0
        %v2978 = vadd.f32 0.0, %v2977
        %v2979 = vpop.f32.mrb[0].mxu0
        %v2980 = vpop.f32.mrb[0].mxu0
        %2981 = vdwg.mxu0
        %2982 = vmatprep.subr.bf16.mxu0 %v2026
        %2983 = vmatpush1.bf16.msra.mxu0 %v2025
        %2984 = vmatprep.subr.bf16.mxu0 %v2033
        %2985 = vmatpush1.bf16.msra.mxu0 %v2032
        %2986 = vmatprep.subr.bf16.mxu0 %v2040
        %2987 = vmatpush1.bf16.msra.mxu0 %v2039
        %2988 = vmatprep.subr.bf16.mxu0 %v2047
        %2989 = vmatpush1.bf16.msra.mxu0 %v2046
        %2990 = vmatprep.subr.bf16.mxu0 %v2054
        %2991 = vmatpush1.bf16.msra.mxu0 %v2053
        %2992 = vmatprep.subr.bf16.mxu0 %v2061
        %2993 = vmatpush1.bf16.msra.mxu0 %v2060
        %2994 = vmatprep.subr.bf16.mxu0 %v2068
        %2995 = vmatpush1.bf16.msra.mxu0 %v2067
        %2996 = vmatprep.subr.bf16.mxu0 %v2075
        %2997 = vmatpush1.bf16.msra.mxu0 %v2074
        %2998 = vmatprep.subr.bf16.mxu0 %v2082
        %2999 = vmatpush1.bf16.msra.mxu0 %v2081
        %3000 = vmatprep.subr.bf16.mxu0 %v2089
        %3001 = vmatpush1.bf16.msra.mxu0 %v2088
        %3002 = vmatprep.subr.bf16.mxu0 %v2096
        %3003 = vmatpush1.bf16.msra.mxu0 %v2095
        %3004 = vmatprep.subr.bf16.mxu0 %v2103
        %3005 = vmatpush1.bf16.msra.mxu0 %v2102
        %3006 = vmatprep.subr.bf16.mxu0 %v2110
        %3007 = vmatpush1.bf16.msra.mxu0 %v2109
        %3008 = vmatprep.subr.bf16.mxu0 %v2117
        %3009 = vmatpush1.bf16.msra.mxu0 %v2116
        %3010 = vmatprep.subr.bf16.mxu0 %v2124
        %3011 = vmatpush1.bf16.msra.mxu0 %v2123
        %3012 = vmatprep.subr.bf16.mxu0 %v2131
        %3013 = vmatpush1.bf16.msra.mxu0 %v2130
        %3014 = vmatprep.mubr.bf16.mxu0 %v405
        %3015 = vmatmul.mubr.bf16.gmra.mrb[0].mxu0 %v404
        %v3016 = vpop.f32.mrb[0].mxu0
        %v3017 = vadd.f32 %v2976, %v3016
        %v3018 = vpop.f32.mrb[0].mxu0
        %v3019 = vadd.f32 %v2978, %v3018
        %v3020 = vpop.f32.mrb[0].mxu0
        %v3021 = vpop.f32.mrb[0].mxu0
        %3022 = vdwg.mxu0
        %3023 = vmatprep.subr.bf16.mxu0 %v2138
        %3024 = vmatpush1.bf16.msra.mxu0 %v2137
        %3025 = vmatprep.subr.bf16.mxu0 %v2145
        %3026 = vmatpush1.bf16.msra.mxu0 %v2144
        %3027 = vmatprep.subr.bf16.mxu0 %v2152
        %3028 = vmatpush1.bf16.msra.mxu0 %v2151
        %3029 = vmatprep.subr.bf16.mxu0 %v2159
        %3030 = vmatpush1.bf16.msra.mxu0 %v2158
        %3031 = vmatprep.subr.bf16.mxu0 %v2166
        %3032 = vmatpush1.bf16.msra.mxu0 %v2165
        %3033 = vmatprep.subr.bf16.mxu0 %v2173
        %3034 = vmatpush1.bf16.msra.mxu0 %v2172
        %3035 = vmatprep.subr.bf16.mxu0 %v2180
        %3036 = vmatpush1.bf16.msra.mxu0 %v2179
        %3037 = vmatprep.subr.bf16.mxu0 %v2187
        %3038 = vmatpush1.bf16.msra.mxu0 %v2186
        %3039 = vmatprep.subr.bf16.mxu0 %v2194
        %3040 = vmatpush1.bf16.msra.mxu0 %v2193
        %3041 = vmatprep.subr.bf16.mxu0 %v2201
        %3042 = vmatpush1.bf16.msra.mxu0 %v2200
        %3043 = vmatprep.subr.bf16.mxu0 %v2208
        %3044 = vmatpush1.bf16.msra.mxu0 %v2207
        %3045 = vmatprep.subr.bf16.mxu0 %v2215
        %3046 = vmatpush1.bf16.msra.mxu0 %v2214
        %3047 = vmatprep.subr.bf16.mxu0 %v2222
        %3048 = vmatpush1.bf16.msra.mxu0 %v2221
        %3049 = vmatprep.subr.bf16.mxu0 %v2229
        %3050 = vmatpush1.bf16.msra.mxu0 %v2228
        %3051 = vmatprep.subr.bf16.mxu0 %v2236
        %3052 = vmatpush1.bf16.msra.mxu0 %v2235
        %3053 = vmatprep.subr.bf16.mxu0 %v2243
        %3054 = vmatpush1.bf16.msra.mxu0 %v2242
        %3055 = vmatprep.mubr.bf16.mxu0 %v407
        %3056 = vmatmul.mubr.bf16.gmra.mrb[0].mxu0 %v406
        %v3057 = vpop.f32.mrb[0].mxu0
        %v3058 = vadd.f32 %v3017, %v3057
        %v3059 = vpop.f32.mrb[0].mxu0
        %v3060 = vadd.f32 %v3019, %v3059
        %v3061 = vpop.f32.mrb[0].mxu0
        %v3062 = vpop.f32.mrb[0].mxu0
        %3063 = vdwg.mxu0
        %3064 = vmatprep.subr.bf16.mxu0 %v2250
        %3065 = vmatpush1.bf16.msra.mxu0 %v2249
        %3066 = vmatprep.subr.bf16.mxu0 %v2257
        %3067 = vmatpush1.bf16.msra.mxu0 %v2256
        %3068 = vmatprep.subr.bf16.mxu0 0
        %3069 = vmatpush1.bf16.msra.mxu0 0
        %3070 = vmatprep.subr.bf16.mxu0 0
        %3071 = vmatpush1.bf16.msra.mxu0 0
        %3072 = vmatprep.subr.bf16.mxu0 0
        %3073 = vmatpush1.bf16.msra.mxu0 0
        %3074 = vmatprep.subr.bf16.mxu0 0
        %3075 = vmatpush1.bf16.msra.mxu0 0
        %3076 = vmatprep.subr.bf16.mxu0 0
        %3077 = vmatpush1.bf16.msra.mxu0 0
        %3078 = vmatprep.subr.bf16.mxu0 0
        %3079 = vmatpush1.bf16.msra.mxu0 0
        %3080 = vmatprep.subr.bf16.mxu0 0
        %3081 = vmatpush1.bf16.msra.mxu0 0
        %3082 = vmatprep.subr.bf16.mxu0 0
        %3083 = vmatpush1.bf16.msra.mxu0 0
        %3084 = vmatprep.subr.bf16.mxu0 0
        %3085 = vmatpush1.bf16.msra.mxu0 0
        %3086 = vmatprep.subr.bf16.mxu0 0
        %3087 = vmatpush1.bf16.msra.mxu0 0
        %3088 = vmatprep.subr.bf16.mxu0 0
        %3089 = vmatpush1.bf16.msra.mxu0 0
        %3090 = vmatprep.subr.bf16.mxu0 0
        %3091 = vmatpush1.bf16.msra.mxu0 0
        %3092 = vmatprep.subr.bf16.mxu0 0
        %3093 = vmatpush1.bf16.msra.mxu0 0
        %3094 = vmatprep.subr.bf16.mxu0 0
        %3095 = vmatpush1.bf16.msra.mxu0 0
        %3096 = vmatprep.mubr.bf16.mxu0 0
        %3097 = vmatmul.mubr.bf16.gmra.mrb[0].mxu0 %v2611
        %v3098 = vpop.f32.mrb[0].mxu0
        %v3099 = vadd.f32 %v3058, %v3098
        %v3100 = vpop.f32.mrb[0].mxu0
        %v3101 = vadd.f32 %v3060, %v3100
        %v3102 = vpop.f32.mrb[0].mxu0
        %v3103 = vpop.f32.mrb[0].mxu0
        %3104 = vdwg.mxu0
        %3105 = vmatprep.subr.bf16.mxu0 0
        %3106 = vmatpush1.bf16.msra.mxu0 %v1915
        %3107 = vmatprep.subr.bf16.mxu0 0
        %3108 = vmatpush1.bf16.msra.mxu0 %v1922
        %3109 = vmatprep.subr.bf16.mxu0 0
        %3110 = vmatpush1.bf16.msra.mxu0 %v1929
        %3111 = vmatprep.subr.bf16.mxu0 0
        %3112 = vmatpush1.bf16.msra.mxu0 %v1936
        %3113 = vmatprep.subr.bf16.mxu0 0
        %3114 = vmatpush1.bf16.msra.mxu0 %v1943
        %3115 = vmatprep.subr.bf16.mxu0 0
        %3116 = vmatpush1.bf16.msra.mxu0 %v1950
        %3117 = vmatprep.subr.bf16.mxu0 0
        %3118 = vmatpush1.bf16.msra.mxu0 %v1957
        %3119 = vmatprep.subr.bf16.mxu0 0
        %3120 = vmatpush1.bf16.msra.mxu0 %v1964
        %3121 = vmatprep.subr.bf16.mxu0 0
        %3122 = vmatpush1.bf16.msra.mxu0 %v1971
        %3123 = vmatprep.subr.bf16.mxu0 0
        %3124 = vmatpush1.bf16.msra.mxu0 %v1978
        %3125 = vmatprep.subr.bf16.mxu0 0
        %3126 = vmatpush1.bf16.msra.mxu0 %v1985
        %3127 = vmatprep.subr.bf16.mxu0 0
        %3128 = vmatpush1.bf16.msra.mxu0 %v1992
        %3129 = vmatprep.subr.bf16.mxu0 0
        %3130 = vmatpush1.bf16.msra.mxu0 %v1999
        %3131 = vmatprep.subr.bf16.mxu0 0
        %3132 = vmatpush1.bf16.msra.mxu0 %v2006
        %3133 = vmatprep.subr.bf16.mxu0 0
        %3134 = vmatpush1.bf16.msra.mxu0 %v2013
        %3135 = vmatprep.subr.bf16.mxu0 0
        %3136 = vmatpush1.bf16.msra.mxu0 %v2020
        %3137 = vmatprep.mubr.bf16.mxu0 %v403
        %3138 = vmatmul.mubr.bf16.gmra.mrb[0].mxu0 %v402
        %v3139 = vpop.f32.mrb[0].mxu0
        %v3140 = vadd.f32 0.0, %v3139
        %v3141 = vpop.f32.mrb[0].mxu0
        %v3142 = vpop.f32.mrb[0].mxu0
        %v3143 = vpop.f32.mrb[0].mxu0
        %3144 = vdwg.mxu0
        %3145 = vmatprep.subr.bf16.mxu0 0
        %3146 = vmatpush1.bf16.msra.mxu0 %v2027
        %3147 = vmatprep.subr.bf16.mxu0 0
        %3148 = vmatpush1.bf16.msra.mxu0 %v2034
        %3149 = vmatprep.subr.bf16.mxu0 0
        %3150 = vmatpush1.bf16.msra.mxu0 %v2041
        %3151 = vmatprep.subr.bf16.mxu0 0
        %3152 = vmatpush1.bf16.msra.mxu0 %v2048
        %3153 = vmatprep.subr.bf16.mxu0 0
        %3154 = vmatpush1.bf16.msra.mxu0 %v2055
        %3155 = vmatprep.subr.bf16.mxu0 0
        %3156 = vmatpush1.bf16.msra.mxu0 %v2062
        %3157 = vmatprep.subr.bf16.mxu0 0
        %3158 = vmatpush1.bf16.msra.mxu0 %v2069
        %3159 = vmatprep.subr.bf16.mxu0 0
        %3160 = vmatpush1.bf16.msra.mxu0 %v2076
        %3161 = vmatprep.subr.bf16.mxu0 0
        %3162 = vmatpush1.bf16.msra.mxu0 %v2083
        %3163 = vmatprep.subr.bf16.mxu0 0
        %3164 = vmatpush1.bf16.msra.mxu0 %v2090
        %3165 = vmatprep.subr.bf16.mxu0 0
        %3166 = vmatpush1.bf16.msra.mxu0 %v2097
        %3167 = vmatprep.subr.bf16.mxu0 0
        %3168 = vmatpush1.bf16.msra.mxu0 %v2104
        %3169 = vmatprep.subr.bf16.mxu0 0
        %3170 = vmatpush1.bf16.msra.mxu0 %v2111
        %3171 = vmatprep.subr.bf16.mxu0 0
        %3172 = vmatpush1.bf16.msra.mxu0 %v2118
        %3173 = vmatprep.subr.bf16.mxu0 0
        %3174 = vmatpush1.bf16.msra.mxu0 %v2125
        %3175 = vmatprep.subr.bf16.mxu0 0
        %3176 = vmatpush1.bf16.msra.mxu0 %v2132
        %3177 = vmatprep.mubr.bf16.mxu0 %v405
        %3178 = vmatmul.mubr.bf16.gmra.mrb[0].mxu0 %v404
        %v3179 = vpop.f32.mrb[0].mxu0
        %v3180 = vadd.f32 %v3140, %v3179
        %v3181 = vpop.f32.mrb[0].mxu0
        %v3182 = vpop.f32.mrb[0].mxu0
        %v3183 = vpop.f32.mrb[0].mxu0
        %3184 = vdwg.mxu0
        %3185 = vmatprep.subr.bf16.mxu0 0
        %3186 = vmatpush1.bf16.msra.mxu0 %v2139
        %3187 = vmatprep.subr.bf16.mxu0 0
        %3188 = vmatpush1.bf16.msra.mxu0 %v2146
        %3189 = vmatprep.subr.bf16.mxu0 0
        %3190 = vmatpush1.bf16.msra.mxu0 %v2153
        %3191 = vmatprep.subr.bf16.mxu0 0
        %3192 = vmatpush1.bf16.msra.mxu0 %v2160
        %3193 = vmatprep.subr.bf16.mxu0 0
        %3194 = vmatpush1.bf16.msra.mxu0 %v2167
        %3195 = vmatprep.subr.bf16.mxu0 0
        %3196 = vmatpush1.bf16.msra.mxu0 %v2174
        %3197 = vmatprep.subr.bf16.mxu0 0
        %3198 = vmatpush1.bf16.msra.mxu0 %v2181
        %3199 = vmatprep.subr.bf16.mxu0 0
        %3200 = vmatpush1.bf16.msra.mxu0 %v2188
        %3201 = vmatprep.subr.bf16.mxu0 0
        %3202 = vmatpush1.bf16.msra.mxu0 %v2195
        %3203 = vmatprep.subr.bf16.mxu0 0
        %3204 = vmatpush1.bf16.msra.mxu0 %v2202
        %3205 = vmatprep.subr.bf16.mxu0 0
        %3206 = vmatpush1.bf16.msra.mxu0 %v2209
        %3207 = vmatprep.subr.bf16.mxu0 0
        %3208 = vmatpush1.bf16.msra.mxu0 %v2216
        %3209 = vmatprep.subr.bf16.mxu0 0
        %3210 = vmatpush1.bf16.msra.mxu0 %v2223
        %3211 = vmatprep.subr.bf16.mxu0 0
        %3212 = vmatpush1.bf16.msra.mxu0 %v2230
        %3213 = vmatprep.subr.bf16.mxu0 0
        %3214 = vmatpush1.bf16.msra.mxu0 %v2237
        %3215 = vmatprep.subr.bf16.mxu0 0
        %3216 = vmatpush1.bf16.msra.mxu0 %v2244
        %3217 = vmatprep.mubr.bf16.mxu0 %v407
        %3218 = vmatmul.mubr.bf16.gmra.mrb[0].mxu0 %v406
        %v3219 = vpop.f32.mrb[0].mxu0
        %v3220 = vadd.f32 %v3180, %v3219
        %v3221 = vpop.f32.mrb[0].mxu0
        %v3222 = vpop.f32.mrb[0].mxu0
        %v3223 = vpop.f32.mrb[0].mxu0
        %3224 = vdwg.mxu0
        %3225 = vmatprep.subr.bf16.mxu0 0
        %3226 = vmatpush1.bf16.msra.mxu0 %v2251
        %3227 = vmatprep.subr.bf16.mxu0 0
        %3228 = vmatpush1.bf16.msra.mxu0 %v2258
        %3229 = vmatprep.subr.bf16.mxu0 0
        %3230 = vmatpush1.bf16.msra.mxu0 0
        %3231 = vmatprep.subr.bf16.mxu0 0
        %3232 = vmatpush1.bf16.msra.mxu0 0
        %3233 = vmatprep.subr.bf16.mxu0 0
        %3234 = vmatpush1.bf16.msra.mxu0 0
        %3235 = vmatprep.subr.bf16.mxu0 0
        %3236 = vmatpush1.bf16.msra.mxu0 0
        %3237 = vmatprep.subr.bf16.mxu0 0
        %3238 = vmatpush1.bf16.msra.mxu0 0
        %3239 = vmatprep.subr.bf16.mxu0 0
        %3240 = vmatpush1.bf16.msra.mxu0 0
        %3241 = vmatprep.subr.bf16.mxu0 0
        %3242 = vmatpush1.bf16.msra.mxu0 0
        %3243 = vmatprep.subr.bf16.mxu0 0
        %3244 = vmatpush1.bf16.msra.mxu0 0
        %3245 = vmatprep.subr.bf16.mxu0 0
        %3246 = vmatpush1.bf16.msra.mxu0 0
        %3247 = vmatprep.subr.bf16.mxu0 0
        %3248 = vmatpush1.bf16.msra.mxu0 0
        %3249 = vmatprep.subr.bf16.mxu0 0
        %3250 = vmatpush1.bf16.msra.mxu0 0
        %3251 = vmatprep.subr.bf16.mxu0 0
        %3252 = vmatpush1.bf16.msra.mxu0 0
        %3253 = vmatprep.subr.bf16.mxu0 0
        %3254 = vmatpush1.bf16.msra.mxu0 0
        %3255 = vmatprep.subr.bf16.mxu0 0
        %3256 = vmatpush1.bf16.msra.mxu0 0
        %3257 = vmatprep.mubr.bf16.mxu0 0
        %3258 = vmatmul.mubr.bf16.gmra.mrb[0].mxu0 %v2611
        %v3259 = vpop.f32.mrb[0].mxu0
        %v3260 = vadd.f32 %v3220, %v3259
        %v3261 = vpop.f32.mrb[0].mxu0
        %v3262 = vpop.f32.mrb[0].mxu0
        %v3263 = vpop.f32.mrb[0].mxu0
        %3264 = vdwg.mxu0
        %v3265 = vrot.slane %v2771, 4
        %v3266 = vadd.f32 %v2771, %v3265
        %v3267 = vrot.slane %v3266, 2
        %v3268 = vadd.f32 %v3266, %v3267
        %v3269 = vrot.slane %v3268, 1
        %v3270 = vadd.f32 %v3268, %v3269
        %v3271 = vrot.slane %v2773, 4
        %v3272 = vadd.f32 %v2773, %v3271
        %v3273 = vrot.slane %v3272, 2
        %v3274 = vadd.f32 %v3272, %v3273
        %v3275 = vrot.slane %v3274, 1
        %v3276 = vadd.f32 %v3274, %v3275
        %v3277 = vrot.slane %v2935, 4
        %v3278 = vadd.f32 %v2935, %v3277
        %v3279 = vrot.slane %v3278, 2
        %v3280 = vadd.f32 %v3278, %v3279
        %v3281 = vrot.slane %v3280, 1
        %v3282 = vadd.f32 %v3280, %v3281
        %v3283 = vrot.slane %v2937, 4
        %v3284 = vadd.f32 %v2937, %v3283
        %v3285 = vrot.slane %v3284, 2
        %v3286 = vadd.f32 %v3284, %v3285
        %v3287 = vrot.slane %v3286, 1
        %v3288 = vadd.f32 %v3286, %v3287
        %v3289 = vrot.slane %v3099, 4
        %v3290 = vadd.f32 %v3099, %v3289
        %v3291 = vrot.slane %v3290, 2
        %v3292 = vadd.f32 %v3290, %v3291
        %v3293 = vrot.slane %v3292, 1
        %v3294 = vadd.f32 %v3292, %v3293
        %v3295 = vrot.slane %v3101, 4
        %v3296 = vadd.f32 %v3101, %v3295
        %v3297 = vrot.slane %v3296, 2
        %v3298 = vadd.f32 %v3296, %v3297
        %v3299 = vrot.slane %v3298, 1
        %v3300 = vadd.f32 %v3298, %v3299
        %v3301 = vsel %vm2609, %v3260, 0.0
        %v3302 = vrot.slane %v3301, 4
        %v3303 = vadd.f32 %v3301, %v3302
        %v3304 = vrot.slane %v3303, 2
        %v3305 = vadd.f32 %v3303, %v3304
        %v3306 = vrot.slane %v3305, 1
        %v3307 = vadd.f32 %v3305, %v3306
        %v3308 = vrcp.pop 8.0
        %v3309 = vmul.f32 %v3270, %v3308
        %v3310 = vmul.f32 %v3276, %v3308
        %v3311 = vmul.f32 %v3282, %v3308
        %v3312 = vmul.f32 %v3288, %v3308
        %v3313 = vmul.f32 %v3294, %v3308
        %v3314 = vmul.f32 %v3300, %v3308
        %v3315 = vmul.f32 %v3307, %v3308
        %v3316 = vmul.f32 %v2771, %v2771
        %v3317 = vmul.f32 %v2773, %v2773
        %v3318 = vmul.f32 %v2935, %v2935
        %v3319 = vmul.f32 %v2937, %v2937
        %v3320 = vmul.f32 %v3099, %v3099
        %v3321 = vmul.f32 %v3101, %v3101
        %v3322 = vmul.f32 %v3260, %v3260
        %v3323 = vrot.slane %v3316, 4
        %v3324 = vadd.f32 %v3316, %v3323
        %v3325 = vrot.slane %v3324, 2
        %v3326 = vadd.f32 %v3324, %v3325
        %v3327 = vrot.slane %v3326, 1
        %v3328 = vadd.f32 %v3326, %v3327
        %v3329 = vrot.slane %v3317, 4
        %v3330 = vadd.f32 %v3317, %v3329
        %v3331 = vrot.slane %v3330, 2
        %v3332 = vadd.f32 %v3330, %v3331
        %v3333 = vrot.slane %v3332, 1
        %v3334 = vadd.f32 %v3332, %v3333
        %v3335 = vrot.slane %v3318, 4
        %v3336 = vadd.f32 %v3318, %v3335
        %v3337 = vrot.slane %v3336, 2
        %v3338 = vadd.f32 %v3336, %v3337
        %v3339 = vrot.slane %v3338, 1
        %v3340 = vadd.f32 %v3338, %v3339
        %v3341 = vrot.slane %v3319, 4
        %v3342 = vadd.f32 %v3319, %v3341
        %v3343 = vrot.slane %v3342, 2
        %v3344 = vadd.f32 %v3342, %v3343
        %v3345 = vrot.slane %v3344, 1
        %v3346 = vadd.f32 %v3344, %v3345
        %v3347 = vrot.slane %v3320, 4
        %v3348 = vadd.f32 %v3320, %v3347
        %v3349 = vrot.slane %v3348, 2
        %v3350 = vadd.f32 %v3348, %v3349
        %v3351 = vrot.slane %v3350, 1
        %v3352 = vadd.f32 %v3350, %v3351
        %v3353 = vrot.slane %v3321, 4
        %v3354 = vadd.f32 %v3321, %v3353
        %v3355 = vrot.slane %v3354, 2
        %v3356 = vadd.f32 %v3354, %v3355
        %v3357 = vrot.slane %v3356, 1
        %v3358 = vadd.f32 %v3356, %v3357
        %v3359 = vsel %vm2609, %v3322, 0.0
        %v3360 = vrot.slane %v3359, 4
        %v3361 = vadd.f32 %v3359, %v3360
        %v3362 = vrot.slane %v3361, 2
        %v3363 = vadd.f32 %v3361, %v3362
        %v3364 = vrot.slane %v3363, 1
        %v3365 = vadd.f32 %v3363, %v3364
        %v3366 = vmul.f32 %v3328, %v3308
        %v3367 = vmul.f32 %v3334, %v3308
        %v3368 = vmul.f32 %v3340, %v3308
        %v3369 = vmul.f32 %v3346, %v3308
        %v3370 = vmul.f32 %v3352, %v3308
        %v3371 = vmul.f32 %v3358, %v3308
        %v3372 = vmul.f32 %v3365, %v3308
        %v3373 = vmul.f32 %v3309, %v3309
        %v3374 = vmul.f32 %v3310, %v3310
        %v3375 = vmul.f32 %v3311, %v3311
        %v3376 = vmul.f32 %v3312, %v3312
        %v3377 = vmul.f32 %v3313, %v3313
        %v3378 = vmul.f32 %v3314, %v3314
        %v3379 = vmul.f32 %v3315, %v3315
        %v3380 = vsub.f32 %v3366, %v3373
        %v3381 = vsub.f32 %v3367, %v3374
        %v3382 = vsub.f32 %v3368, %v3375
        %v3383 = vsub.f32 %v3369, %v3376
        %v3384 = vsub.f32 %v3370, %v3377
        %v3385 = vsub.f32 %v3371, %v3378
        %v3386 = vsub.f32 %v3372, %v3379
        %v3387 = vadd.f32 %v3380, 1e-05
        %v3388 = vadd.f32 %v3381, 1e-05
        %v3389 = vadd.f32 %v3382, 1e-05
        %v3390 = vadd.f32 %v3383, 1e-05
        %v3391 = vadd.f32 %v3384, 1e-05
        %v3392 = vadd.f32 %v3385, 1e-05
        %v3393 = vadd.f32 %v3386, 1e-05
        %v3394 = vrsqrt.pop %v3387
        %v3395 = vrsqrt.pop %v3388
        %v3396 = vrsqrt.pop %v3389
        %v3397 = vrsqrt.pop %v3390
        %v3398 = vrsqrt.pop %v3391
        %v3399 = vrsqrt.pop %v3392
        %v3400 = vrsqrt.pop %v3393
        %v3407 = vcombine.low %v3394, %v3395
        %v3408 = vcombine.low %v3396, %v3397
        %v3409 = vcombine.low %v3398, %v3399
        %v3413 = vmul.f32 %v398, %v3407
        %v3414 = vmul.f32 %v399, %v3408
        %v3415 = vmul.f32 %v400, %v3409
        %v3416 = vmul.f32 %v401, %v3400
        %v3421 = vlaneseq
        %v3422 = vshrl.u32 %v3421, 7
        %v3423 = vsub.s32 0, %v3422
        %v3424 = vrot.slane %v3413, %v3423
        %v3425 = vlaneseq
        %v3426 = vshrl.u32 %v3425, 7
        %v3427 = vsub.s32 4, %v3426
        %v3428 = vrot.slane %v3413, %v3427
        %v3429 = vlaneseq
        %v3430 = vshrl.u32 %v3429, 7
        %v3431 = vsub.s32 0, %v3430
        %v3432 = vrot.slane %v3414, %v3431
        %v3433 = vlaneseq
        %v3434 = vshrl.u32 %v3433, 7
        %v3435 = vsub.s32 4, %v3434
        %v3436 = vrot.slane %v3414, %v3435
        %v3437 = vlaneseq
        %v3438 = vshrl.u32 %v3437, 7
        %v3439 = vsub.s32 0, %v3438
        %v3440 = vrot.slane %v3415, %v3439
        %v3441 = vlaneseq
        %v3442 = vshrl.u32 %v3441, 7
        %v3443 = vsub.s32 4, %v3442
        %v3444 = vrot.slane %v3415, %v3443
        %v3445 = vlaneseq
        %v3446 = vshrl.u32 %v3445, 7
        %v3447 = vsub.s32 0, %v3446
        %v3448 = vrot.slane %v3416, %v3447
        %v3456 = vmul.f32 %v3309, %v3424
        %v3457 = vmul.f32 %v3310, %v3428
        %v3458 = vmul.f32 %v3311, %v3432
        %v3459 = vmul.f32 %v3312, %v3436
        %v3460 = vmul.f32 %v3313, %v3440
        %v3461 = vmul.f32 %v3314, %v3444
        %v3462 = vmul.f32 %v3315, %v3448
        %v3470 = vcombine.low %v3456, %v3457
        %v3471 = vcombine.low %v3458, %v3459
        %v3472 = vcombine.low %v3460, %v3461
        %v3473 = vrot.slane %v3470, 7
        %v3474 = vrot.slane %v3471, 7
        %v3475 = vrot.slane %v3472, 7
        %v3476 = vrot.slane %v3462, 7
        %v3481 = vsub.f32 %v398, %v3473
        %v3482 = vsub.f32 %v399, %v3474
        %v3483 = vsub.f32 %v400, %v3475
        %v3484 = vsub.f32 %v401, %v3476
        %v3485 = vlaneseq
        %v3486 = vshrl.u32 %v3485, 7
        %v3487 = vsub.s32 0, %v3486
        %v3488 = vrot.slane %v3424, %v3487
        %v3489 = vlaneseq
        %v3490 = vshrl.u32 %v3489, 7
        %v3491 = vsub.s32 0, %v3490
        %v3492 = vrot.slane %v3428, %v3491
        %v3493 = vlaneseq
        %v3494 = vshrl.u32 %v3493, 7
        %v3495 = vsub.s32 0, %v3494
        %v3496 = vrot.slane %v3432, %v3495
        %v3497 = vlaneseq
        %v3498 = vshrl.u32 %v3497, 7
        %v3499 = vsub.s32 0, %v3498
        %v3500 = vrot.slane %v3436, %v3499
        %v3501 = vlaneseq
        %v3502 = vshrl.u32 %v3501, 7
        %v3503 = vsub.s32 0, %v3502
        %v3504 = vrot.slane %v3440, %v3503
        %v3505 = vlaneseq
        %v3506 = vshrl.u32 %v3505, 7
        %v3507 = vsub.s32 0, %v3506
        %v3508 = vrot.slane %v3444, %v3507
        %v3509 = vlaneseq
        %v3510 = vshrl.u32 %v3509, 7
        %v3511 = vsub.s32 0, %v3510
        %v3512 = vrot.slane %v3448, %v3511
        %v3513 = vmul.f32 %v2771, %v3488
        %v3514 = vmul.f32 %v2773, %v3492
        %v3515 = vmul.f32 %v2935, %v3496
        %v3516 = vmul.f32 %v2937, %v3500
        %v3517 = vmul.f32 %v3099, %v3504
        %v3518 = vmul.f32 %v3101, %v3508
        %v3519 = vmul.f32 %v3260, %v3512
        %v3524 = vlaneseq
        %v3525 = vshrl.u32 %v3524, 7
        %v3526 = vsub.s32 1, %v3525
        %v3527 = vrot.slane %v3481, %v3526
        %v3528 = vlaneseq
        %v3529 = vshrl.u32 %v3528, 7
        %v3530 = vsub.s32 5, %v3529
        %v3531 = vrot.slane %v3481, %v3530
        %v3532 = vlaneseq
        %v3533 = vshrl.u32 %v3532, 7
        %v3534 = vsub.s32 1, %v3533
        %v3535 = vrot.slane %v3482, %v3534
        %v3536 = vlaneseq
        %v3537 = vshrl.u32 %v3536, 7
        %v3538 = vsub.s32 5, %v3537
        %v3539 = vrot.slane %v3482, %v3538
        %v3540 = vlaneseq
        %v3541 = vshrl.u32 %v3540, 7
        %v3542 = vsub.s32 1, %v3541
        %v3543 = vrot.slane %v3483, %v3542
        %v3544 = vlaneseq
        %v3545 = vshrl.u32 %v3544, 7
        %v3546 = vsub.s32 5, %v3545
        %v3547 = vrot.slane %v3483, %v3546
        %v3548 = vlaneseq
        %v3549 = vshrl.u32 %v3548, 7
        %v3550 = vsub.s32 1, %v3549
        %v3551 = vrot.slane %v3484, %v3550
        %v3559 = vlaneseq
        %v3560 = vshrl.u32 %v3559, 7
        %v3561 = vsub.s32 1, %v3560
        %v3562 = vrot.slane %v3527, %v3561
        %v3563 = vlaneseq
        %v3564 = vshrl.u32 %v3563, 7
        %v3565 = vsub.s32 1, %v3564
        %v3566 = vrot.slane %v3531, %v3565
        %v3567 = vlaneseq
        %v3568 = vshrl.u32 %v3567, 7
        %v3569 = vsub.s32 1, %v3568
        %v3570 = vrot.slane %v3535, %v3569
        %v3571 = vlaneseq
        %v3572 = vshrl.u32 %v3571, 7
        %v3573 = vsub.s32 1, %v3572
        %v3574 = vrot.slane %v3539, %v3573
        %v3575 = vlaneseq
        %v3576 = vshrl.u32 %v3575, 7
        %v3577 = vsub.s32 1, %v3576
        %v3578 = vrot.slane %v3543, %v3577
        %v3579 = vlaneseq
        %v3580 = vshrl.u32 %v3579, 7
        %v3581 = vsub.s32 1, %v3580
        %v3582 = vrot.slane %v3547, %v3581
        %v3583 = vlaneseq
        %v3584 = vshrl.u32 %v3583, 7
        %v3585 = vsub.s32 1, %v3584
        %v3586 = vrot.slane %v3551, %v3585
        %v3587 = vadd.f32 %v3513, %v3562
        %v3588 = vadd.f32 %v3514, %v3566
        %v3589 = vadd.f32 %v3515, %v3570
        %v3590 = vadd.f32 %v3516, %v3574
        %v3591 = vadd.f32 %v3517, %v3578
        %v3592 = vadd.f32 %v3518, %v3582
        %v3593 = vadd.f32 %v3519, %v3586
        %v3594 = vmax.f32 %v3587, 0.0
        %v3595 = vmax.f32 %v3588, 0.0
        %v3596 = vmax.f32 %v3589, 0.0
        %v3597 = vmax.f32 %v3590, 0.0
        %v3598 = vmax.f32 %v3591, 0.0
        %v3599 = vmax.f32 %v3592, 0.0
        %v3600 = vmax.f32 %v3593, 0.0
        %v3601 = vpack.c.bf16 %v3594, %v3594
        %v3602 = vpack.c.bf16 %v3595, %v3595
        %v3603 = vpack.c.bf16 %v3596, %v3596
        %v3604 = vpack.c.bf16 %v3597, %v3597
        %v3605 = vpack.c.bf16 %v3598, %v3598
        %v3606 = vpack.c.bf16 %v3599, %v3599
        %v3607 = vpack.c.bf16 %v3600, %v3600
        %v3608 = vld [vmem:[%s322] sm:$0xff]
        %v3609 = vld [vmem:[%s322 + $0x8] sm:$0xff]
        %v3610 = vld [vmem:[%s322 + $0x10] sm:$0xff]
        %v3611 = vld [vmem:[%s322 + $0x18] sm:$0xf]
        %v3612 = vld [vmem:[%s322 + $0x1c] sm:$0xff]
        %v3613 = vld [vmem:[%s322 + $0x24] sm:$0xff]
        %v3614 = vld [vmem:[%s322 + $0x2c] sm:$0xff]
        %v3615 = vld [vmem:[%s322 + $0x34] sm:$0xf]
        %v3616 = vld [vmem:[%s322 + $0x38] sm:$0xff]
        %v3617 = vld [vmem:[%s322 + $0x40] sm:$0xff]
        %v3618 = vld [vmem:[%s322 + $0x48] sm:$0xff]
        %v3619 = vld [vmem:[%s322 + $0x50] sm:$0xf]
        %v3620 = vld [vmem:[%s322 + $0x54] sm:$0xff]
        %v3621 = vld [vmem:[%s322 + $0x5c] sm:$0xff]
        %v3622 = vld [vmem:[%s322 + $0x64] sm:$0xff]
        %v3623 = vld [vmem:[%s322 + $0x6c] sm:$0xf]
        %v3624 = vld [vmem:[%s322 + $0x70] sm:$0xff]
        %v3625 = vld [vmem:[%s322 + $0x78] sm:$0xff]
        %v3626 = vld [vmem:[%s322 + $0x80] sm:$0xff]
        %v3627 = vld [vmem:[%s322 + $0x88] sm:$0xf]
        %v3628 = vld [vmem:[%s322 + $0x8c] sm:$0xff]
        %v3629 = vld [vmem:[%s322 + $0x94] sm:$0xff]
        %v3630 = vld [vmem:[%s322 + $0x9c] sm:$0xff]
        %v3631 = vld [vmem:[%s322 + $0xa4] sm:$0xf]
        %v3632 = vld [vmem:[%s322 + $0xa8] sm:$0xff]
        %v3633 = vld [vmem:[%s322 + $0xb0] sm:$0xff]
        %v3634 = vld [vmem:[%s322 + $0xb8] sm:$0xff]
        %v3635 = vld [vmem:[%s322 + $0xc0] sm:$0xf]
        %v3636 = vld [vmem:[%s322 + $0xc4] sm:$0xff]
        %v3637 = vld [vmem:[%s322 + $0xcc] sm:$0xff]
        %v3638 = vld [vmem:[%s322 + $0xd4] sm:$0xff]
        %v3639 = vld [vmem:[%s322 + $0xdc] sm:$0xf]
        %v3640 = vld [vmem:[%s322 + $0xe0] sm:$0xff]
        %v3641 = vld [vmem:[%s322 + $0xe8] sm:$0xff]
        %v3642 = vld [vmem:[%s322 + $0xf0] sm:$0xff]
        %v3643 = vld [vmem:[%s322 + $0xf8] sm:$0xf]
        %v3644 = vld [vmem:[%s322 + $0xfc] sm:$0xff]
        %v3645 = vld [vmem:[%s322 + $0x104] sm:$0xff]
        %v3646 = vld [vmem:[%s322 + $0x10c] sm:$0xff]
        %v3647 = vld [vmem:[%s322 + $0x114] sm:$0xf]
        %v3648 = vld [vmem:[%s322 + $0x118] sm:$0xff]
        %v3649 = vld [vmem:[%s322 + $0x120] sm:$0xff]
        %v3650 = vld [vmem:[%s322 + $0x128] sm:$0xff]
        %v3651 = vld [vmem:[%s322 + $0x130] sm:$0xf]
        %v3652 = vld [vmem:[%s322 + $0x134] sm:$0xff]
        %v3653 = vld [vmem:[%s322 + $0x13c] sm:$0xff]
        %v3654 = vld [vmem:[%s322 + $0x144] sm:$0xff]
        %v3655 = vld [vmem:[%s322 + $0x14c] sm:$0xf]
        %v3656 = vld [vmem:[%s322 + $0x150] sm:$0xff]
        %v3657 = vld [vmem:[%s322 + $0x158] sm:$0xff]
        %v3658 = vld [vmem:[%s322 + $0x160] sm:$0xff]
        %v3659 = vld [vmem:[%s322 + $0x168] sm:$0xf]
        %v3660 = vld [vmem:[%s322 + $0x16c] sm:$0xff]
        %v3661 = vld [vmem:[%s322 + $0x174] sm:$0xff]
        %v3662 = vld [vmem:[%s322 + $0x17c] sm:$0xff]
        %v3663 = vld [vmem:[%s322 + $0x184] sm:$0xf]
        %v3664 = vld [vmem:[%s322 + $0x188] sm:$0xff]
        %v3665 = vld [vmem:[%s322 + $0x190] sm:$0xff]
        %v3666 = vld [vmem:[%s322 + $0x198] sm:$0xff]
        %v3667 = vld [vmem:[%s322 + $0x1a0] sm:$0xf]
        %v3668 = vld [vmem:[%s322 + $0x1a4] sm:$0xff]
        %v3669 = vld [vmem:[%s322 + $0x1ac] sm:$0xff]
        %v3670 = vld [vmem:[%s322 + $0x1b4] sm:$0xff]
        %v3671 = vld [vmem:[%s322 + $0x1bc] sm:$0xf]
        %v3672 = vld [vmem:[%s322 + $0x1c0] sm:$0xff]
        %v3673 = vld [vmem:[%s322 + $0x1c8] sm:$0xff]
        %v3674 = vld [vmem:[%s322 + $0x1d0] sm:$0xff]
        %v3675 = vld [vmem:[%s322 + $0x1d8] sm:$0xf]
        %v3676 = vld [vmem:[%s322 + $0x1dc] sm:$0xff]
        %v3677 = vld [vmem:[%s322 + $0x1e4] sm:$0xff]
        %v3678 = vld [vmem:[%s322 + $0x1ec] sm:$0xff]
        %v3679 = vld [vmem:[%s322 + $0x1f4] sm:$0xf]
        %v3680 = vld [vmem:[%s322 + $0x1f8] sm:$0xff]
        %v3681 = vld [vmem:[%s322 + $0x200] sm:$0xff]
        %v3682 = vld [vmem:[%s322 + $0x208] sm:$0xff]
        %v3683 = vld [vmem:[%s322 + $0x210] sm:$0xf]
        %v3684 = vld [vmem:[%s322 + $0x214] sm:$0xff]
        %v3685 = vld [vmem:[%s322 + $0x21c] sm:$0xff]
        %v3686 = vld [vmem:[%s322 + $0x224] sm:$0xff]
        %v3687 = vld [vmem:[%s322 + $0x22c] sm:$0xf]
        %v3688 = vld [vmem:[%s322 + $0x230] sm:$0xff]
        %v3689 = vld [vmem:[%s322 + $0x238] sm:$0xff]
        %v3690 = vld [vmem:[%s322 + $0x240] sm:$0xff]
        %v3691 = vld [vmem:[%s322 + $0x248] sm:$0xf]
        %v3692 = vld [vmem:[%s322 + $0x24c] sm:$0xff]
        %v3693 = vld [vmem:[%s322 + $0x254] sm:$0xff]
        %v3694 = vld [vmem:[%s322 + $0x25c] sm:$0xff]
        %v3695 = vld [vmem:[%s322 + $0x264] sm:$0xf]
        %v3696 = vld [vmem:[%s322 + $0x268] sm:$0xff]
        %v3697 = vld [vmem:[%s322 + $0x270] sm:$0xff]
        %v3698 = vld [vmem:[%s322 + $0x278] sm:$0xff]
        %v3699 = vld [vmem:[%s322 + $0x280] sm:$0xf]
        %v3700 = vld [vmem:[%s322 + $0x284] sm:$0xff]
        %v3701 = vld [vmem:[%s322 + $0x28c] sm:$0xff]
        %v3702 = vld [vmem:[%s322 + $0x294] sm:$0xff]
        %v3703 = vld [vmem:[%s322 + $0x29c] sm:$0xf]
        %v3704 = vld [vmem:[%s322 + $0x2a0] sm:$0xff]
        %v3705 = vld [vmem:[%s322 + $0x2a8] sm:$0xff]
        %v3706 = vld [vmem:[%s322 + $0x2b0] sm:$0xff]
        %v3707 = vld [vmem:[%s322 + $0x2b8] sm:$0xf]
        %v3708 = vld [vmem:[%s322 + $0x2bc] sm:$0xff]
        %v3709 = vld [vmem:[%s322 + $0x2c4] sm:$0xff]
        %v3710 = vld [vmem:[%s322 + $0x2cc] sm:$0xff]
        %v3711 = vld [vmem:[%s322 + $0x2d4] sm:$0xf]
        %v3712 = vld [vmem:[%s322 + $0x2d8] sm:$0xff]
        %v3713 = vld [vmem:[%s322 + $0x2e0] sm:$0xff]
        %v3714 = vld [vmem:[%s322 + $0x2e8] sm:$0xff]
        %v3715 = vld [vmem:[%s322 + $0x2f0] sm:$0xf]
        %v3716 = vld [vmem:[%s322 + $0x2f4] sm:$0xff]
        %v3717 = vld [vmem:[%s322 + $0x2fc] sm:$0xff]
        %v3718 = vld [vmem:[%s322 + $0x304] sm:$0xff]
        %v3719 = vld [vmem:[%s322 + $0x30c] sm:$0xf]
        %v3720 = vld [vmem:[%s322 + $0x310] sm:$0xff]
        %v3721 = vld [vmem:[%s322 + $0x318] sm:$0xff]
        %v3722 = vld [vmem:[%s322 + $0x320] sm:$0xff]
        %v3723 = vld [vmem:[%s322 + $0x328] sm:$0xf]
        %v3724 = vld [vmem:[%s322 + $0x32c] sm:$0xff]
        %v3725 = vld [vmem:[%s322 + $0x334] sm:$0xff]
        %v3726 = vld [vmem:[%s322 + $0x33c] sm:$0xff]
        %v3727 = vld [vmem:[%s322 + $0x344] sm:$0xf]
        %v3728 = vld [vmem:[%s322 + $0x348] sm:$0xff]
        %v3729 = vld [vmem:[%s322 + $0x350] sm:$0xff]
        %v3730 = vld [vmem:[%s322 + $0x358] sm:$0xff]
        %v3731 = vld [vmem:[%s322 + $0x360] sm:$0xf]
        %v3732 = vld [vmem:[%s322 + $0x364] sm:$0xff]
        %v3733 = vld [vmem:[%s322 + $0x36c] sm:$0xff]
        %v3734 = vld [vmem:[%s322 + $0x374] sm:$0xff]
        %v3735 = vld [vmem:[%s322 + $0x37c] sm:$0xf]
        %v3736 = vld [vmem:[%s322 + $0x380] sm:$0xff]
        %v3737 = vld [vmem:[%s322 + $0x388] sm:$0xff]
        %v3738 = vld [vmem:[%s322 + $0x390] sm:$0xff]
        %v3739 = vld [vmem:[%s322 + $0x398] sm:$0xf]
        %v3740 = vld [vmem:[%s322 + $0x39c] sm:$0xff]
        %v3741 = vld [vmem:[%s322 + $0x3a4] sm:$0xff]
        %v3742 = vld [vmem:[%s322 + $0x3ac] sm:$0xff]
        %v3743 = vld [vmem:[%s322 + $0x3b4] sm:$0xf]
        %v3744 = vld [vmem:[%s322 + $0x3b8] sm:$0xff]
        %v3745 = vld [vmem:[%s322 + $0x3c0] sm:$0xff]
        %v3746 = vld [vmem:[%s322 + $0x3c8] sm:$0xff]
        %v3747 = vld [vmem:[%s322 + $0x3d0] sm:$0xf]
        %v3748 = vld [vmem:[%s322 + $0x3d4] sm:$0xff]
        %v3749 = vld [vmem:[%s322 + $0x3dc] sm:$0xff]
        %v3750 = vld [vmem:[%s322 + $0x3e4] sm:$0xff]
        %v3751 = vld [vmem:[%s322 + $0x3ec] sm:$0xf]
        %v3752 = vld [vmem:[%s322 + $0x3f0] sm:$0xff]
        %v3753 = vld [vmem:[%s322 + $0x3f8] sm:$0xff]
        %v3754 = vld [vmem:[%s322 + $0x400] sm:$0xff]
        %v3755 = vld [vmem:[%s322 + $0x408] sm:$0xf]
        %v3756 = vld [vmem:[%s322 + $0x40c] sm:$0xff]
        %v3757 = vld [vmem:[%s322 + $0x414] sm:$0xff]
        %v3758 = vld [vmem:[%s322 + $0x41c] sm:$0xff]
        %v3759 = vld [vmem:[%s322 + $0x424] sm:$0xf]
        %v3760 = vld [vmem:[%s322 + $0x428] sm:$0xff]
        %v3761 = vld [vmem:[%s322 + $0x430] sm:$0xff]
        %v3762 = vld [vmem:[%s322 + $0x438] sm:$0xff]
        %v3763 = vld [vmem:[%s322 + $0x440] sm:$0xf]
        %v3764 = vld [vmem:[%s322 + $0x444] sm:$0xff]
        %v3765 = vld [vmem:[%s322 + $0x44c] sm:$0xff]
        %v3766 = vld [vmem:[%s322 + $0x454] sm:$0xff]
        %v3767 = vld [vmem:[%s322 + $0x45c] sm:$0xf]
        %v3768 = vld [vmem:[%s322 + $0x460] sm:$0xff]
        %v3769 = vld [vmem:[%s322 + $0x468] sm:$0xff]
        %v3770 = vld [vmem:[%s322 + $0x470] sm:$0xff]
        %v3771 = vld [vmem:[%s322 + $0x478] sm:$0xf]
        %v3772 = vld [vmem:[%s322 + $0x47c] sm:$0xff]
        %v3773 = vld [vmem:[%s322 + $0x484] sm:$0xff]
        %v3774 = vld [vmem:[%s322 + $0x48c] sm:$0xff]
        %v3775 = vld [vmem:[%s322 + $0x494] sm:$0xf]
        %v3776 = vld [vmem:[%s322 + $0x498] sm:$0xff]
        %v3777 = vld [vmem:[%s322 + $0x4a0] sm:$0xff]
        %v3778 = vld [vmem:[%s322 + $0x4a8] sm:$0xff]
        %v3779 = vld [vmem:[%s322 + $0x4b0] sm:$0xf]
        %v3780 = vld [vmem:[%s322 + $0x4b4] sm:$0xff]
        %v3781 = vld [vmem:[%s322 + $0x4bc] sm:$0xff]
        %v3782 = vld [vmem:[%s322 + $0x4c4] sm:$0xff]
        %v3783 = vld [vmem:[%s322 + $0x4cc] sm:$0xf]
        %v3784 = vld [vmem:[%s322 + $0x4d0] sm:$0xff]
        %v3785 = vld [vmem:[%s322 + $0x4d8] sm:$0xff]
        %v3786 = vld [vmem:[%s322 + $0x4e0] sm:$0xff]
        %v3787 = vld [vmem:[%s322 + $0x4e8] sm:$0xf]
        %v3788 = vld [vmem:[%s322 + $0x4ec] sm:$0xff]
        %v3789 = vld [vmem:[%s322 + $0x4f4] sm:$0xff]
        %v3790 = vld [vmem:[%s322 + $0x4fc] sm:$0xff]
        %v3791 = vld [vmem:[%s322 + $0x504] sm:$0xf]
        %v3792 = vld [vmem:[%s322 + $0x508] sm:$0xff]
        %v3793 = vld [vmem:[%s322 + $0x510] sm:$0xff]
        %v3794 = vld [vmem:[%s322 + $0x518] sm:$0xff]
        %v3795 = vld [vmem:[%s322 + $0x520] sm:$0xf]
        %v3796 = vld [vmem:[%s322 + $0x524] sm:$0xff]
        %v3797 = vld [vmem:[%s322 + $0x52c] sm:$0xff]
        %v3798 = vld [vmem:[%s322 + $0x534] sm:$0xff]
        %v3799 = vld [vmem:[%s322 + $0x53c] sm:$0xf]
        %v3800 = vld [vmem:[%s322 + $0x540] sm:$0xff]
        %v3801 = vld [vmem:[%s322 + $0x548] sm:$0xff]
        %v3802 = vld [vmem:[%s322 + $0x550] sm:$0xff]
        %v3803 = vld [vmem:[%s322 + $0x558] sm:$0xf]
        %v3804 = vld [vmem:[%s322 + $0x55c] sm:$0xff]
        %v3805 = vld [vmem:[%s322 + $0x564] sm:$0xff]
        %v3806 = vld [vmem:[%s322 + $0x56c] sm:$0xff]
        %v3807 = vld [vmem:[%s322 + $0x574] sm:$0xf]
        %v3808 = vld [vmem:[%s322 + $0x578] sm:$0xff]
        %v3809 = vld [vmem:[%s322 + $0x580] sm:$0xff]
        %v3810 = vld [vmem:[%s322 + $0x588] sm:$0xff]
        %v3811 = vld [vmem:[%s322 + $0x590] sm:$0xf]
        %v3812 = vld [vmem:[%s322 + $0x594] sm:$0xff]
        %v3813 = vld [vmem:[%s322 + $0x59c] sm:$0xff]
        %v3814 = vld [vmem:[%s322 + $0x5a4] sm:$0xff]
        %v3815 = vld [vmem:[%s322 + $0x5ac] sm:$0xf]
        %v3816 = vld [vmem:[%s322 + $0x5b0] sm:$0xff]
        %v3817 = vld [vmem:[%s322 + $0x5b8] sm:$0xff]
        %v3818 = vld [vmem:[%s322 + $0x5c0] sm:$0xff]
        %v3819 = vld [vmem:[%s322 + $0x5c8] sm:$0xf]
        %v3820 = vld [vmem:[%s322 + $0x5cc] sm:$0xff]
        %v3821 = vld [vmem:[%s322 + $0x5d4] sm:$0xff]
        %v3822 = vld [vmem:[%s322 + $0x5dc] sm:$0xff]
        %v3823 = vld [vmem:[%s322 + $0x5e4] sm:$0xf]
        %v3824 = vld [vmem:[%s322 + $0x5e8] sm:$0xff]
        %v3825 = vld [vmem:[%s322 + $0x5f0] sm:$0xff]
        %v3826 = vld [vmem:[%s322 + $0x5f8] sm:$0xff]
        %v3827 = vld [vmem:[%s322 + $0x600] sm:$0xf]
        %v3828 = vld [vmem:[%s322 + $0x604] sm:$0xff]
        %v3829 = vld [vmem:[%s322 + $0x60c] sm:$0xff]
        %v3830 = vld [vmem:[%s322 + $0x614] sm:$0xff]
        %v3831 = vld [vmem:[%s322 + $0x61c] sm:$0xf]
        %v3832 = vld [vmem:[%s322 + $0x620] sm:$0xff]
        %v3833 = vld [vmem:[%s322 + $0x628] sm:$0xff]
        %v3834 = vld [vmem:[%s322 + $0x630] sm:$0xff]
        %v3835 = vld [vmem:[%s322 + $0x638] sm:$0xf]
        %v3836 = vld [vmem:[%s322 + $0x63c] sm:$0xff]
        %v3837 = vld [vmem:[%s322 + $0x644] sm:$0xff]
        %v3838 = vld [vmem:[%s322 + $0x64c] sm:$0xff]
        %v3839 = vld [vmem:[%s322 + $0x654] sm:$0xf]
        %v3840 = vld [vmem:[%s322 + $0x658] sm:$0xff]
        %v3841 = vld [vmem:[%s322 + $0x660] sm:$0xff]
        %v3842 = vld [vmem:[%s322 + $0x668] sm:$0xff]
        %v3843 = vld [vmem:[%s322 + $0x670] sm:$0xf]
        %v3844 = vld [vmem:[%s322 + $0x674] sm:$0xff]
        %v3845 = vld [vmem:[%s322 + $0x67c] sm:$0xff]
        %v3846 = vld [vmem:[%s322 + $0x684] sm:$0xff]
        %v3847 = vld [vmem:[%s322 + $0x68c] sm:$0xf]
        %v3848 = vld [vmem:[%s322 + $0x690] sm:$0xff]
        %v3849 = vld [vmem:[%s322 + $0x698] sm:$0xff]
        %v3850 = vld [vmem:[%s322 + $0x6a0] sm:$0xff]
        %v3851 = vld [vmem:[%s322 + $0x6a8] sm:$0xf]
        %v3852 = vld [vmem:[%s322 + $0x6ac] sm:$0xff]
        %v3853 = vld [vmem:[%s322 + $0x6b4] sm:$0xff]
        %v3854 = vld [vmem:[%s322 + $0x6bc] sm:$0xff]
        %v3855 = vld [vmem:[%s322 + $0x6c4] sm:$0xf]
        %v3856 = vld [vmem:[%s322 + $0x6c8] sm:$0xff]
        %v3857 = vld [vmem:[%s322 + $0x6d0] sm:$0xff]
        %v3858 = vld [vmem:[%s322 + $0x6d8] sm:$0xff]
        %v3859 = vld [vmem:[%s322 + $0x6e0] sm:$0xf]
        %v3860 = vld [vmem:[%s322 + $0x6e4] sm:$0xff]
        %v3861 = vld [vmem:[%s322 + $0x6ec] sm:$0xff]
        %v3862 = vld [vmem:[%s322 + $0x6f4] sm:$0xff]
        %v3863 = vld [vmem:[%s322 + $0x6fc] sm:$0xf]
        %v3864 = vld [vmem:[%s322 + $0x700] sm:$0xff]
        %v3865 = vld [vmem:[%s322 + $0x708] sm:$0xff]
        %v3866 = vld [vmem:[%s322 + $0x710] sm:$0xff]
        %v3867 = vld [vmem:[%s322 + $0x718] sm:$0xf]
        %v3868 = vld [vmem:[%s322 + $0x71c] sm:$0xff]
        %v3869 = vld [vmem:[%s322 + $0x724] sm:$0xff]
        %v3870 = vld [vmem:[%s322 + $0x72c] sm:$0xff]
        %v3871 = vld [vmem:[%s322 + $0x734] sm:$0xf]
        %v3872 = vld [vmem:[%s322 + $0x738] sm:$0xff]
        %v3873 = vld [vmem:[%s322 + $0x740] sm:$0xff]
        %v3874 = vld [vmem:[%s322 + $0x748] sm:$0xff]
        %v3875 = vld [vmem:[%s322 + $0x750] sm:$0xf]
        %v3876 = vld [vmem:[%s322 + $0x754] sm:$0xff]
        %v3877 = vld [vmem:[%s322 + $0x75c] sm:$0xff]
        %v3878 = vld [vmem:[%s322 + $0x764] sm:$0xff]
        %v3879 = vld [vmem:[%s322 + $0x76c] sm:$0xf]
        %v3880 = vld [vmem:[%s322 + $0x770] sm:$0xff]
        %v3881 = vld [vmem:[%s322 + $0x778] sm:$0xff]
        %v3882 = vld [vmem:[%s322 + $0x780] sm:$0xff]
        %v3883 = vld [vmem:[%s322 + $0x788] sm:$0xf]
        %v3884 = vld [vmem:[%s322 + $0x78c] sm:$0xff]
        %v3885 = vld [vmem:[%s322 + $0x794] sm:$0xff]
        %v3886 = vld [vmem:[%s322 + $0x79c] sm:$0xff]
        %v3887 = vld [vmem:[%s322 + $0x7a4] sm:$0xf]
        %v3888 = vld [vmem:[%s322 + $0x7a8] sm:$0xff]
        %v3889 = vld [vmem:[%s322 + $0x7b0] sm:$0xff]
        %v3890 = vld [vmem:[%s322 + $0x7b8] sm:$0xff]
        %v3891 = vld [vmem:[%s322 + $0x7c0] sm:$0xf]
        %v3892 = vld [vmem:[%s322 + $0x7c4] sm:$0xff]
        %v3893 = vld [vmem:[%s322 + $0x7cc] sm:$0xff]
        %v3894 = vld [vmem:[%s322 + $0x7d4] sm:$0xff]
        %v3895 = vld [vmem:[%s322 + $0x7dc] sm:$0xf]
        %v3896 = vld [vmem:[%s322 + $0x7e0] sm:$0xff]
        %v3897 = vld [vmem:[%s322 + $0x7e8] sm:$0xff]
        %v3898 = vld [vmem:[%s322 + $0x7f0] sm:$0xff]
        %v3899 = vld [vmem:[%s322 + $0x7f8] sm:$0xf]
        %v3900 = vld [vmem:[%s322 + $0x7fc] sm:$0xff]
        %v3901 = vld [vmem:[%s322 + $0x804] sm:$0xff]
        %v3902 = vld [vmem:[%s322 + $0x80c] sm:$0xff]
        %v3903 = vld [vmem:[%s322 + $0x814] sm:$0xf]
        %v3904 = vld [vmem:[%s322 + $0x818] sm:$0xff]
        %v3905 = vld [vmem:[%s322 + $0x820] sm:$0xff]
        %v3906 = vld [vmem:[%s322 + $0x828] sm:$0xff]
        %v3907 = vld [vmem:[%s322 + $0x830] sm:$0xf]
        %v3908 = vld [vmem:[%s322 + $0x834] sm:$0xff]
        %v3909 = vld [vmem:[%s322 + $0x83c] sm:$0xff]
        %v3910 = vld [vmem:[%s322 + $0x844] sm:$0xff]
        %v3911 = vld [vmem:[%s322 + $0x84c] sm:$0xf]
        %v3912 = vld [vmem:[%s322 + $0x850] sm:$0xff]
        %v3913 = vld [vmem:[%s322 + $0x858] sm:$0xff]
        %v3914 = vld [vmem:[%s322 + $0x860] sm:$0xff]
        %v3915 = vld [vmem:[%s322 + $0x868] sm:$0xf]
        %v3916 = vld [vmem:[%s322 + $0x86c] sm:$0xff]
        %v3917 = vld [vmem:[%s322 + $0x874] sm:$0xff]
        %v3918 = vld [vmem:[%s322 + $0x87c] sm:$0xff]
        %v3919 = vld [vmem:[%s322 + $0x884] sm:$0xf]
        %v3920 = vld [vmem:[%s322 + $0x888] sm:$0xff]
        %v3921 = vld [vmem:[%s322 + $0x890] sm:$0xff]
        %v3922 = vld [vmem:[%s322 + $0x898] sm:$0xff]
        %v3923 = vld [vmem:[%s322 + $0x8a0] sm:$0xf]
        %v3924 = vld [vmem:[%s322 + $0x8a4] sm:$0xff]
        %v3925 = vld [vmem:[%s322 + $0x8ac] sm:$0xff]
        %v3926 = vld [vmem:[%s322 + $0x8b4] sm:$0xff]
        %v3927 = vld [vmem:[%s322 + $0x8bc] sm:$0xf]
        %v3928 = vld [vmem:[%s322 + $0x8c0] sm:$0xff]
        %v3929 = vld [vmem:[%s322 + $0x8c8] sm:$0xff]
        %v3930 = vld [vmem:[%s322 + $0x8d0] sm:$0xff]
        %v3931 = vld [vmem:[%s322 + $0x8d8] sm:$0xf]
        %v3932 = vld [vmem:[%s322 + $0x8dc] sm:$0xff]
        %v3933 = vld [vmem:[%s322 + $0x8e4] sm:$0xff]
        %v3934 = vld [vmem:[%s322 + $0x8ec] sm:$0xff]
        %v3935 = vld [vmem:[%s322 + $0x8f4] sm:$0xf]
        %v3936 = vld [vmem:[%s322 + $0x8f8] sm:$0xff]
        %v3937 = vld [vmem:[%s322 + $0x900] sm:$0xff]
        %v3938 = vld [vmem:[%s322 + $0x908] sm:$0xff]
        %v3939 = vld [vmem:[%s322 + $0x910] sm:$0xf]
        %v3940 = vld [vmem:[%s322 + $0x914] sm:$0xff]
        %v3941 = vld [vmem:[%s322 + $0x91c] sm:$0xff]
        %v3942 = vld [vmem:[%s322 + $0x924] sm:$0xff]
        %v3943 = vld [vmem:[%s322 + $0x92c] sm:$0xf]
        %v3944 = vld [vmem:[%s322 + $0x930] sm:$0xff]
        %v3945 = vld [vmem:[%s322 + $0x938] sm:$0xff]
        %v3946 = vld [vmem:[%s322 + $0x940] sm:$0xff]
        %v3947 = vld [vmem:[%s322 + $0x948] sm:$0xf]
        %v3948 = vld [vmem:[%s322 + $0x94c] sm:$0xff]
        %v3949 = vld [vmem:[%s322 + $0x954] sm:$0xff]
        %v3950 = vld [vmem:[%s322 + $0x95c] sm:$0xff]
        %v3951 = vld [vmem:[%s322 + $0x964] sm:$0xf]
        %v3952 = vld [vmem:[%s322 + $0x968] sm:$0xff]
        %v3953 = vld [vmem:[%s322 + $0x970] sm:$0xff]
        %v3954 = vld [vmem:[%s322 + $0x978] sm:$0xff]
        %v3955 = vld [vmem:[%s322 + $0x980] sm:$0xf]
        %v3956 = vld [vmem:[%s322 + $0x984] sm:$0xff]
        %v3957 = vld [vmem:[%s322 + $0x98c] sm:$0xff]
        %v3958 = vld [vmem:[%s322 + $0x994] sm:$0xff]
        %v3959 = vld [vmem:[%s322 + $0x99c] sm:$0xf]
        %v3960 = vld [vmem:[%s322 + $0x9a0] sm:$0xff]
        %v3961 = vld [vmem:[%s322 + $0x9a8] sm:$0xff]
        %v3962 = vld [vmem:[%s322 + $0x9b0] sm:$0xff]
        %v3963 = vld [vmem:[%s322 + $0x9b8] sm:$0xf]
        %v3964 = vld [vmem:[%s322 + $0x9bc] sm:$0xff]
        %v3965 = vld [vmem:[%s322 + $0x9c4] sm:$0xff]
        %v3966 = vld [vmem:[%s322 + $0x9cc] sm:$0xff]
        %v3967 = vld [vmem:[%s322 + $0x9d4] sm:$0xf]
        %v3968 = vld [vmem:[%s322 + $0x9d8] sm:$0xff]
        %v3969 = vld [vmem:[%s322 + $0x9e0] sm:$0xff]
        %v3970 = vld [vmem:[%s322 + $0x9e8] sm:$0xff]
        %v3971 = vld [vmem:[%s322 + $0x9f0] sm:$0xf]
        %v3972 = vld [vmem:[%s322 + $0x9f4] sm:$0xff]
        %v3973 = vld [vmem:[%s322 + $0x9fc] sm:$0xff]
        %v3974 = vld [vmem:[%s322 + $0xa04] sm:$0xff]
        %v3975 = vld [vmem:[%s322 + $0xa0c] sm:$0xf]
        %v3976 = vld [vmem:[%s322 + $0xa10] sm:$0xff]
        %v3977 = vld [vmem:[%s322 + $0xa18] sm:$0xff]
        %v3978 = vld [vmem:[%s322 + $0xa20] sm:$0xff]
        %v3979 = vld [vmem:[%s322 + $0xa28] sm:$0xf]
        %v3980 = vld [vmem:[%s322 + $0xa2c] sm:$0xff]
        %v3981 = vld [vmem:[%s322 + $0xa34] sm:$0xff]
        %v3982 = vld [vmem:[%s322 + $0xa3c] sm:$0xff]
        %v3983 = vld [vmem:[%s322 + $0xa44] sm:$0xf]
        %v3984 = vld [vmem:[%s322 + $0xa48] sm:$0xff]
        %v3985 = vld [vmem:[%s322 + $0xa50] sm:$0xff]
        %v3986 = vld [vmem:[%s322 + $0xa58] sm:$0xff]
        %v3987 = vld [vmem:[%s322 + $0xa60] sm:$0xf]
        %v3988 = vld [vmem:[%s322 + $0xa64] sm:$0xff]
        %v3989 = vld [vmem:[%s322 + $0xa6c] sm:$0xff]
        %v3990 = vld [vmem:[%s322 + $0xa74] sm:$0xff]
        %v3991 = vld [vmem:[%s322 + $0xa7c] sm:$0xf]
        %v3992 = vld [vmem:[%s322 + $0xa80] sm:$0xff]
        %v3993 = vld [vmem:[%s322 + $0xa88] sm:$0xff]
        %v3994 = vld [vmem:[%s322 + $0xa90] sm:$0xff]
        %v3995 = vld [vmem:[%s322 + $0xa98] sm:$0xf]
        %v3996 = vld [vmem:[%s322 + $0xa9c] sm:$0xff]
        %v3997 = vld [vmem:[%s322 + $0xaa4] sm:$0xff]
        %v3998 = vld [vmem:[%s322 + $0xaac] sm:$0xff]
        %v3999 = vld [vmem:[%s322 + $0xab4] sm:$0xf]
        %v4000 = vld [vmem:[%s322 + $0xab8] sm:$0xff]
        %v4001 = vld [vmem:[%s322 + $0xac0] sm:$0xff]
        %v4002 = vld [vmem:[%s322 + $0xac8] sm:$0xff]
        %v4003 = vld [vmem:[%s322 + $0xad0] sm:$0xf]
        %v4004 = vld [vmem:[%s322 + $0xad4] sm:$0xff]
        %v4005 = vld [vmem:[%s322 + $0xadc] sm:$0xff]
        %v4006 = vld [vmem:[%s322 + $0xae4] sm:$0xff]
        %v4007 = vld [vmem:[%s322 + $0xaec] sm:$0xf]
        %v4408 = vunpack.c.l.b16 %v3608
        %v4409 = vunpack.c.h.b16 %v3608
        %v4410 = vunpack.c.l.b16 %v3609
        %v4411 = vunpack.c.h.b16 %v3609
        %v4412 = vunpack.c.l.b16 %v3610
        %v4413 = vunpack.c.h.b16 %v3610
        %v4414 = vunpack.c.l.b16 %v3611
        %v4415 = vunpack.c.l.b16 %v3612
        %v4416 = vunpack.c.h.b16 %v3612
        %v4417 = vunpack.c.l.b16 %v3613
        %v4418 = vunpack.c.h.b16 %v3613
        %v4419 = vunpack.c.l.b16 %v3614
        %v4420 = vunpack.c.h.b16 %v3614
        %v4421 = vunpack.c.l.b16 %v3615
        %v4422 = vunpack.c.l.b16 %v3616
        %v4423 = vunpack.c.h.b16 %v3616
        %v4424 = vunpack.c.l.b16 %v3617
        %v4425 = vunpack.c.h.b16 %v3617
        %v4426 = vunpack.c.l.b16 %v3618
        %v4427 = vunpack.c.h.b16 %v3618
        %v4428 = vunpack.c.l.b16 %v3619
        %v4429 = vunpack.c.l.b16 %v3620
        %v4430 = vunpack.c.h.b16 %v3620
        %v4431 = vunpack.c.l.b16 %v3621
        %v4432 = vunpack.c.h.b16 %v3621
        %v4433 = vunpack.c.l.b16 %v3622
        %v4434 = vunpack.c.h.b16 %v3622
        %v4435 = vunpack.c.l.b16 %v3623
        %v4436 = vunpack.c.l.b16 %v3624
        %v4437 = vunpack.c.h.b16 %v3624
        %v4438 = vunpack.c.l.b16 %v3625
        %v4439 = vunpack.c.h.b16 %v3625
        %v4440 = vunpack.c.l.b16 %v3626
        %v4441 = vunpack.c.h.b16 %v3626
        %v4442 = vunpack.c.l.b16 %v3627
        %v4443 = vunpack.c.l.b16 %v3628
        %v4444 = vunpack.c.h.b16 %v3628
        %v4445 = vunpack.c.l.b16 %v3629
        %v4446 = vunpack.c.h.b16 %v3629
        %v4447 = vunpack.c.l.b16 %v3630
        %v4448 = vunpack.c.h.b16 %v3630
        %v4449 = vunpack.c.l.b16 %v3631
        %v4450 = vunpack.c.l.b16 %v3632
        %v4451 = vunpack.c.h.b16 %v3632
        %v4452 = vunpack.c.l.b16 %v3633
        %v4453 = vunpack.c.h.b16 %v3633
        %v4454 = vunpack.c.l.b16 %v3634
        %v4455 = vunpack.c.h.b16 %v3634
        %v4456 = vunpack.c.l.b16 %v3635
        %v4457 = vunpack.c.l.b16 %v3636
        %v4458 = vunpack.c.h.b16 %v3636
        %v4459 = vunpack.c.l.b16 %v3637
        %v4460 = vunpack.c.h.b16 %v3637
        %v4461 = vunpack.c.l.b16 %v3638
        %v4462 = vunpack.c.h.b16 %v3638
        %v4463 = vunpack.c.l.b16 %v3639
        %v4464 = vunpack.c.l.b16 %v3640
        %v4465 = vunpack.c.h.b16 %v3640
        %v4466 = vunpack.c.l.b16 %v3641
        %v4467 = vunpack.c.h.b16 %v3641
        %v4468 = vunpack.c.l.b16 %v3642
        %v4469 = vunpack.c.h.b16 %v3642
        %v4470 = vunpack.c.l.b16 %v3643
        %v4471 = vunpack.c.l.b16 %v3644
        %v4472 = vunpack.c.h.b16 %v3644
        %v4473 = vunpack.c.l.b16 %v3645
        %v4474 = vunpack.c.h.b16 %v3645
        %v4475 = vunpack.c.l.b16 %v3646
        %v4476 = vunpack.c.h.b16 %v3646
        %v4477 = vunpack.c.l.b16 %v3647
        %v4478 = vunpack.c.l.b16 %v3648
        %v4479 = vunpack.c.h.b16 %v3648
        %v4480 = vunpack.c.l.b16 %v3649
        %v4481 = vunpack.c.h.b16 %v3649
        %v4482 = vunpack.c.l.b16 %v3650
        %v4483 = vunpack.c.h.b16 %v3650
        %v4484 = vunpack.c.l.b16 %v3651
        %v4485 = vunpack.c.l.b16 %v3652
        %v4486 = vunpack.c.h.b16 %v3652
        %v4487 = vunpack.c.l.b16 %v3653
        %v4488 = vunpack.c.h.b16 %v3653
        %v4489 = vunpack.c.l.b16 %v3654
        %v4490 = vunpack.c.h.b16 %v3654
        %v4491 = vunpack.c.l.b16 %v3655
        %v4492 = vunpack.c.l.b16 %v3656
        %v4493 = vunpack.c.h.b16 %v3656
        %v4494 = vunpack.c.l.b16 %v3657
        %v4495 = vunpack.c.h.b16 %v3657
        %v4496 = vunpack.c.l.b16 %v3658
        %v4497 = vunpack.c.h.b16 %v3658
        %v4498 = vunpack.c.l.b16 %v3659
        %v4499 = vunpack.c.l.b16 %v3660
        %v4500 = vunpack.c.h.b16 %v3660
        %v4501 = vunpack.c.l.b16 %v3661
        %v4502 = vunpack.c.h.b16 %v3661
        %v4503 = vunpack.c.l.b16 %v3662
        %v4504 = vunpack.c.h.b16 %v3662
        %v4505 = vunpack.c.l.b16 %v3663
        %v4506 = vunpack.c.l.b16 %v3664
        %v4507 = vunpack.c.h.b16 %v3664
        %v4508 = vunpack.c.l.b16 %v3665
        %v4509 = vunpack.c.h.b16 %v3665
        %v4510 = vunpack.c.l.b16 %v3666
        %v4511 = vunpack.c.h.b16 %v3666
        %v4512 = vunpack.c.l.b16 %v3667
        %v4513 = vunpack.c.l.b16 %v3668
        %v4514 = vunpack.c.h.b16 %v3668
        %v4515 = vunpack.c.l.b16 %v3669
        %v4516 = vunpack.c.h.b16 %v3669
        %v4517 = vunpack.c.l.b16 %v3670
        %v4518 = vunpack.c.h.b16 %v3670
        %v4519 = vunpack.c.l.b16 %v3671
        %v4520 = vunpack.c.l.b16 %v3672
        %v4521 = vunpack.c.h.b16 %v3672
        %v4522 = vunpack.c.l.b16 %v3673
        %v4523 = vunpack.c.h.b16 %v3673
        %v4524 = vunpack.c.l.b16 %v3674
        %v4525 = vunpack.c.h.b16 %v3674
        %v4526 = vunpack.c.l.b16 %v3675
        %v4527 = vunpack.c.l.b16 %v3676
        %v4528 = vunpack.c.h.b16 %v3676
        %v4529 = vunpack.c.l.b16 %v3677
        %v4530 = vunpack.c.h.b16 %v3677
        %v4531 = vunpack.c.l.b16 %v3678
        %v4532 = vunpack.c.h.b16 %v3678
        %v4533 = vunpack.c.l.b16 %v3679
        %v4534 = vunpack.c.l.b16 %v3680
        %v4535 = vunpack.c.h.b16 %v3680
        %v4536 = vunpack.c.l.b16 %v3681
        %v4537 = vunpack.c.h.b16 %v3681
        %v4538 = vunpack.c.l.b16 %v3682
        %v4539 = vunpack.c.h.b16 %v3682
        %v4540 = vunpack.c.l.b16 %v3683
        %v4541 = vunpack.c.l.b16 %v3684
        %v4542 = vunpack.c.h.b16 %v3684
        %v4543 = vunpack.c.l.b16 %v3685
        %v4544 = vunpack.c.h.b16 %v3685
        %v4545 = vunpack.c.l.b16 %v3686
        %v4546 = vunpack.c.h.b16 %v3686
        %v4547 = vunpack.c.l.b16 %v3687
        %v4548 = vunpack.c.l.b16 %v3688
        %v4549 = vunpack.c.h.b16 %v3688
        %v4550 = vunpack.c.l.b16 %v3689
        %v4551 = vunpack.c.h.b16 %v3689
        %v4552 = vunpack.c.l.b16 %v3690
        %v4553 = vunpack.c.h.b16 %v3690
        %v4554 = vunpack.c.l.b16 %v3691
        %v4555 = vunpack.c.l.b16 %v3692
        %v4556 = vunpack.c.h.b16 %v3692
        %v4557 = vunpack.c.l.b16 %v3693
        %v4558 = vunpack.c.h.b16 %v3693
        %v4559 = vunpack.c.l.b16 %v3694
        %v4560 = vunpack.c.h.b16 %v3694
        %v4561 = vunpack.c.l.b16 %v3695
        %v4562 = vunpack.c.l.b16 %v3696
        %v4563 = vunpack.c.h.b16 %v3696
        %v4564 = vunpack.c.l.b16 %v3697
        %v4565 = vunpack.c.h.b16 %v3697
        %v4566 = vunpack.c.l.b16 %v3698
        %v4567 = vunpack.c.h.b16 %v3698
        %v4568 = vunpack.c.l.b16 %v3699
        %v4569 = vunpack.c.l.b16 %v3700
        %v4570 = vunpack.c.h.b16 %v3700
        %v4571 = vunpack.c.l.b16 %v3701
        %v4572 = vunpack.c.h.b16 %v3701
        %v4573 = vunpack.c.l.b16 %v3702
        %v4574 = vunpack.c.h.b16 %v3702
        %v4575 = vunpack.c.l.b16 %v3703
        %v4576 = vunpack.c.l.b16 %v3704
        %v4577 = vunpack.c.h.b16 %v3704
        %v4578 = vunpack.c.l.b16 %v3705
        %v4579 = vunpack.c.h.b16 %v3705
        %v4580 = vunpack.c.l.b16 %v3706
        %v4581 = vunpack.c.h.b16 %v3706
        %v4582 = vunpack.c.l.b16 %v3707
        %v4583 = vunpack.c.l.b16 %v3708
        %v4584 = vunpack.c.h.b16 %v3708
        %v4585 = vunpack.c.l.b16 %v3709
        %v4586 = vunpack.c.h.b16 %v3709
        %v4587 = vunpack.c.l.b16 %v3710
        %v4588 = vunpack.c.h.b16 %v3710
        %v4589 = vunpack.c.l.b16 %v3711
        %v4590 = vunpack.c.l.b16 %v3712
        %v4591 = vunpack.c.h.b16 %v3712
        %v4592 = vunpack.c.l.b16 %v3713
        %v4593 = vunpack.c.h.b16 %v3713
        %v4594 = vunpack.c.l.b16 %v3714
        %v4595 = vunpack.c.h.b16 %v3714
        %v4596 = vunpack.c.l.b16 %v3715
        %v4597 = vunpack.c.l.b16 %v3716
        %v4598 = vunpack.c.h.b16 %v3716
        %v4599 = vunpack.c.l.b16 %v3717
        %v4600 = vunpack.c.h.b16 %v3717
        %v4601 = vunpack.c.l.b16 %v3718
        %v4602 = vunpack.c.h.b16 %v3718
        %v4603 = vunpack.c.l.b16 %v3719
        %v4604 = vunpack.c.l.b16 %v3720
        %v4605 = vunpack.c.h.b16 %v3720
        %v4606 = vunpack.c.l.b16 %v3721
        %v4607 = vunpack.c.h.b16 %v3721
        %v4608 = vunpack.c.l.b16 %v3722
        %v4609 = vunpack.c.h.b16 %v3722
        %v4610 = vunpack.c.l.b16 %v3723
        %v4611 = vunpack.c.l.b16 %v3724
        %v4612 = vunpack.c.h.b16 %v3724
        %v4613 = vunpack.c.l.b16 %v3725
        %v4614 = vunpack.c.h.b16 %v3725
        %v4615 = vunpack.c.l.b16 %v3726
        %v4616 = vunpack.c.h.b16 %v3726
        %v4617 = vunpack.c.l.b16 %v3727
        %v4618 = vunpack.c.l.b16 %v3728
        %v4619 = vunpack.c.h.b16 %v3728
        %v4620 = vunpack.c.l.b16 %v3729
        %v4621 = vunpack.c.h.b16 %v3729
        %v4622 = vunpack.c.l.b16 %v3730
        %v4623 = vunpack.c.h.b16 %v3730
        %v4624 = vunpack.c.l.b16 %v3731
        %v4625 = vunpack.c.l.b16 %v3732
        %v4626 = vunpack.c.h.b16 %v3732
        %v4627 = vunpack.c.l.b16 %v3733
        %v4628 = vunpack.c.h.b16 %v3733
        %v4629 = vunpack.c.l.b16 %v3734
        %v4630 = vunpack.c.h.b16 %v3734
        %v4631 = vunpack.c.l.b16 %v3735
        %v4632 = vunpack.c.l.b16 %v3736
        %v4633 = vunpack.c.h.b16 %v3736
        %v4634 = vunpack.c.l.b16 %v3737
        %v4635 = vunpack.c.h.b16 %v3737
        %v4636 = vunpack.c.l.b16 %v3738
        %v4637 = vunpack.c.h.b16 %v3738
        %v4638 = vunpack.c.l.b16 %v3739
        %v4639 = vunpack.c.l.b16 %v3740
        %v4640 = vunpack.c.h.b16 %v3740
        %v4641 = vunpack.c.l.b16 %v3741
        %v4642 = vunpack.c.h.b16 %v3741
        %v4643 = vunpack.c.l.b16 %v3742
        %v4644 = vunpack.c.h.b16 %v3742
        %v4645 = vunpack.c.l.b16 %v3743
        %v4646 = vunpack.c.l.b16 %v3744
        %v4647 = vunpack.c.h.b16 %v3744
        %v4648 = vunpack.c.l.b16 %v3745
        %v4649 = vunpack.c.h.b16 %v3745
        %v4650 = vunpack.c.l.b16 %v3746
        %v4651 = vunpack.c.h.b16 %v3746
        %v4652 = vunpack.c.l.b16 %v3747
        %v4653 = vunpack.c.l.b16 %v3748
        %v4654 = vunpack.c.h.b16 %v3748
        %v4655 = vunpack.c.l.b16 %v3749
        %v4656 = vunpack.c.h.b16 %v3749
        %v4657 = vunpack.c.l.b16 %v3750
        %v4658 = vunpack.c.h.b16 %v3750
        %v4659 = vunpack.c.l.b16 %v3751
        %v4660 = vunpack.c.l.b16 %v3752
        %v4661 = vunpack.c.h.b16 %v3752
        %v4662 = vunpack.c.l.b16 %v3753
        %v4663 = vunpack.c.h.b16 %v3753
        %v4664 = vunpack.c.l.b16 %v3754
        %v4665 = vunpack.c.h.b16 %v3754
        %v4666 = vunpack.c.l.b16 %v3755
        %v4667 = vunpack.c.l.b16 %v3756
        %v4668 = vunpack.c.h.b16 %v3756
        %v4669 = vunpack.c.l.b16 %v3757
        %v4670 = vunpack.c.h.b16 %v3757
        %v4671 = vunpack.c.l.b16 %v3758
        %v4672 = vunpack.c.h.b16 %v3758
        %v4673 = vunpack.c.l.b16 %v3759
        %v4674 = vunpack.c.l.b16 %v3760
        %v4675 = vunpack.c.h.b16 %v3760
        %v4676 = vunpack.c.l.b16 %v3761
        %v4677 = vunpack.c.h.b16 %v3761
        %v4678 = vunpack.c.l.b16 %v3762
        %v4679 = vunpack.c.h.b16 %v3762
        %v4680 = vunpack.c.l.b16 %v3763
        %v4681 = vunpack.c.l.b16 %v3764
        %v4682 = vunpack.c.h.b16 %v3764
        %v4683 = vunpack.c.l.b16 %v3765
        %v4684 = vunpack.c.h.b16 %v3765
        %v4685 = vunpack.c.l.b16 %v3766
        %v4686 = vunpack.c.h.b16 %v3766
        %v4687 = vunpack.c.l.b16 %v3767
        %v4688 = vunpack.c.l.b16 %v3768
        %v4689 = vunpack.c.h.b16 %v3768
        %v4690 = vunpack.c.l.b16 %v3769
        %v4691 = vunpack.c.h.b16 %v3769
        %v4692 = vunpack.c.l.b16 %v3770
        %v4693 = vunpack.c.h.b16 %v3770
        %v4694 = vunpack.c.l.b16 %v3771
        %v4695 = vunpack.c.l.b16 %v3772
        %v4696 = vunpack.c.h.b16 %v3772
        %v4697 = vunpack.c.l.b16 %v3773
        %v4698 = vunpack.c.h.b16 %v3773
        %v4699 = vunpack.c.l.b16 %v3774
        %v4700 = vunpack.c.h.b16 %v3774
        %v4701 = vunpack.c.l.b16 %v3775
        %v4702 = vunpack.c.l.b16 %v3776
        %v4703 = vunpack.c.h.b16 %v3776
        %v4704 = vunpack.c.l.b16 %v3777
        %v4705 = vunpack.c.h.b16 %v3777
        %v4706 = vunpack.c.l.b16 %v3778
        %v4707 = vunpack.c.h.b16 %v3778
        %v4708 = vunpack.c.l.b16 %v3779
        %v4709 = vunpack.c.l.b16 %v3780
        %v4710 = vunpack.c.h.b16 %v3780
        %v4711 = vunpack.c.l.b16 %v3781
        %v4712 = vunpack.c.h.b16 %v3781
        %v4713 = vunpack.c.l.b16 %v3782
        %v4714 = vunpack.c.h.b16 %v3782
        %v4715 = vunpack.c.l.b16 %v3783
        %v4716 = vunpack.c.l.b16 %v3784
        %v4717 = vunpack.c.h.b16 %v3784
        %v4718 = vunpack.c.l.b16 %v3785
        %v4719 = vunpack.c.h.b16 %v3785
        %v4720 = vunpack.c.l.b16 %v3786
        %v4721 = vunpack.c.h.b16 %v3786
        %v4722 = vunpack.c.l.b16 %v3787
        %v4723 = vunpack.c.l.b16 %v3788
        %v4724 = vunpack.c.h.b16 %v3788
        %v4725 = vunpack.c.l.b16 %v3789
        %v4726 = vunpack.c.h.b16 %v3789
        %v4727 = vunpack.c.l.b16 %v3790
        %v4728 = vunpack.c.h.b16 %v3790
        %v4729 = vunpack.c.l.b16 %v3791
        %v4730 = vunpack.c.l.b16 %v3792
        %v4731 = vunpack.c.h.b16 %v3792
        %v4732 = vunpack.c.l.b16 %v3793
        %v4733 = vunpack.c.h.b16 %v3793
        %v4734 = vunpack.c.l.b16 %v3794
        %v4735 = vunpack.c.h.b16 %v3794
        %v4736 = vunpack.c.l.b16 %v3795
        %v4737 = vunpack.c.l.b16 %v3796
        %v4738 = vunpack.c.h.b16 %v3796
        %v4739 = vunpack.c.l.b16 %v3797
        %v4740 = vunpack.c.h.b16 %v3797
        %v4741 = vunpack.c.l.b16 %v3798
        %v4742 = vunpack.c.h.b16 %v3798
        %v4743 = vunpack.c.l.b16 %v3799
        %v4744 = vunpack.c.l.b16 %v3800
        %v4745 = vunpack.c.h.b16 %v3800
        %v4746 = vunpack.c.l.b16 %v3801
        %v4747 = vunpack.c.h.b16 %v3801
        %v4748 = vunpack.c.l.b16 %v3802
        %v4749 = vunpack.c.h.b16 %v3802
        %v4750 = vunpack.c.l.b16 %v3803
        %v4751 = vunpack.c.l.b16 %v3804
        %v4752 = vunpack.c.h.b16 %v3804
        %v4753 = vunpack.c.l.b16 %v3805
        %v4754 = vunpack.c.h.b16 %v3805
        %v4755 = vunpack.c.l.b16 %v3806
        %v4756 = vunpack.c.h.b16 %v3806
        %v4757 = vunpack.c.l.b16 %v3807
        %v4758 = vunpack.c.l.b16 %v3808
        %v4759 = vunpack.c.h.b16 %v3808
        %v4760 = vunpack.c.l.b16 %v3809
        %v4761 = vunpack.c.h.b16 %v3809
        %v4762 = vunpack.c.l.b16 %v3810
        %v4763 = vunpack.c.h.b16 %v3810
        %v4764 = vunpack.c.l.b16 %v3811
        %v4765 = vunpack.c.l.b16 %v3812
        %v4766 = vunpack.c.h.b16 %v3812
        %v4767 = vunpack.c.l.b16 %v3813
        %v4768 = vunpack.c.h.b16 %v3813
        %v4769 = vunpack.c.l.b16 %v3814
        %v4770 = vunpack.c.h.b16 %v3814
        %v4771 = vunpack.c.l.b16 %v3815
        %v4772 = vunpack.c.l.b16 %v3816
        %v4773 = vunpack.c.h.b16 %v3816
        %v4774 = vunpack.c.l.b16 %v3817
        %v4775 = vunpack.c.h.b16 %v3817
        %v4776 = vunpack.c.l.b16 %v3818
        %v4777 = vunpack.c.h.b16 %v3818
        %v4778 = vunpack.c.l.b16 %v3819
        %v4779 = vunpack.c.l.b16 %v3820
        %v4780 = vunpack.c.h.b16 %v3820
        %v4781 = vunpack.c.l.b16 %v3821
        %v4782 = vunpack.c.h.b16 %v3821
        %v4783 = vunpack.c.l.b16 %v3822
        %v4784 = vunpack.c.h.b16 %v3822
        %v4785 = vunpack.c.l.b16 %v3823
        %v4786 = vunpack.c.l.b16 %v3824
        %v4787 = vunpack.c.h.b16 %v3824
        %v4788 = vunpack.c.l.b16 %v3825
        %v4789 = vunpack.c.h.b16 %v3825
        %v4790 = vunpack.c.l.b16 %v3826
        %v4791 = vunpack.c.h.b16 %v3826
        %v4792 = vunpack.c.l.b16 %v3827
        %v4793 = vunpack.c.l.b16 %v3828
        %v4794 = vunpack.c.h.b16 %v3828
        %v4795 = vunpack.c.l.b16 %v3829
        %v4796 = vunpack.c.h.b16 %v3829
        %v4797 = vunpack.c.l.b16 %v3830
        %v4798 = vunpack.c.h.b16 %v3830
        %v4799 = vunpack.c.l.b16 %v3831
        %v4800 = vunpack.c.l.b16 %v3832
        %v4801 = vunpack.c.h.b16 %v3832
        %v4802 = vunpack.c.l.b16 %v3833
        %v4803 = vunpack.c.h.b16 %v3833
        %v4804 = vunpack.c.l.b16 %v3834
        %v4805 = vunpack.c.h.b16 %v3834
        %v4806 = vunpack.c.l.b16 %v3835
        %v4807 = vunpack.c.l.b16 %v3836
        %v4808 = vunpack.c.h.b16 %v3836
        %v4809 = vunpack.c.l.b16 %v3837
        %v4810 = vunpack.c.h.b16 %v3837
        %v4811 = vunpack.c.l.b16 %v3838
        %v4812 = vunpack.c.h.b16 %v3838
        %v4813 = vunpack.c.l.b16 %v3839
        %v4814 = vunpack.c.l.b16 %v3840
        %v4815 = vunpack.c.h.b16 %v3840
        %v4816 = vunpack.c.l.b16 %v3841
        %v4817 = vunpack.c.h.b16 %v3841
        %v4818 = vunpack.c.l.b16 %v3842
        %v4819 = vunpack.c.h.b16 %v3842
        %v4820 = vunpack.c.l.b16 %v3843
        %v4821 = vunpack.c.l.b16 %v3844
        %v4822 = vunpack.c.h.b16 %v3844
        %v4823 = vunpack.c.l.b16 %v3845
        %v4824 = vunpack.c.h.b16 %v3845
        %v4825 = vunpack.c.l.b16 %v3846
        %v4826 = vunpack.c.h.b16 %v3846
        %v4827 = vunpack.c.l.b16 %v3847
        %v4828 = vunpack.c.l.b16 %v3848
        %v4829 = vunpack.c.h.b16 %v3848
        %v4830 = vunpack.c.l.b16 %v3849
        %v4831 = vunpack.c.h.b16 %v3849
        %v4832 = vunpack.c.l.b16 %v3850
        %v4833 = vunpack.c.h.b16 %v3850
        %v4834 = vunpack.c.l.b16 %v3851
        %v4835 = vunpack.c.l.b16 %v3852
        %v4836 = vunpack.c.h.b16 %v3852
        %v4837 = vunpack.c.l.b16 %v3853
        %v4838 = vunpack.c.h.b16 %v3853
        %v4839 = vunpack.c.l.b16 %v3854
        %v4840 = vunpack.c.h.b16 %v3854
        %v4841 = vunpack.c.l.b16 %v3855
        %v4842 = vunpack.c.l.b16 %v3856
        %v4843 = vunpack.c.h.b16 %v3856
        %v4844 = vunpack.c.l.b16 %v3857
        %v4845 = vunpack.c.h.b16 %v3857
        %v4846 = vunpack.c.l.b16 %v3858
        %v4847 = vunpack.c.h.b16 %v3858
        %v4848 = vunpack.c.l.b16 %v3859
        %v4849 = vunpack.c.l.b16 %v3860
        %v4850 = vunpack.c.h.b16 %v3860
        %v4851 = vunpack.c.l.b16 %v3861
        %v4852 = vunpack.c.h.b16 %v3861
        %v4853 = vunpack.c.l.b16 %v3862
        %v4854 = vunpack.c.h.b16 %v3862
        %v4855 = vunpack.c.l.b16 %v3863
        %v4856 = vunpack.c.l.b16 %v3864
        %v4857 = vunpack.c.h.b16 %v3864
        %v4858 = vunpack.c.l.b16 %v3865
        %v4859 = vunpack.c.h.b16 %v3865
        %v4860 = vunpack.c.l.b16 %v3866
        %v4861 = vunpack.c.h.b16 %v3866
        %v4862 = vunpack.c.l.b16 %v3867
        %v4863 = vunpack.c.l.b16 %v3868
        %v4864 = vunpack.c.h.b16 %v3868
        %v4865 = vunpack.c.l.b16 %v3869
        %v4866 = vunpack.c.h.b16 %v3869
        %v4867 = vunpack.c.l.b16 %v3870
        %v4868 = vunpack.c.h.b16 %v3870
        %v4869 = vunpack.c.l.b16 %v3871
        %v4870 = vunpack.c.l.b16 %v3872
        %v4871 = vunpack.c.h.b16 %v3872
        %v4872 = vunpack.c.l.b16 %v3873
        %v4873 = vunpack.c.h.b16 %v3873
        %v4874 = vunpack.c.l.b16 %v3874
        %v4875 = vunpack.c.h.b16 %v3874
        %v4876 = vunpack.c.l.b16 %v3875
        %v4877 = vunpack.c.l.b16 %v3876
        %v4878 = vunpack.c.h.b16 %v3876
        %v4879 = vunpack.c.l.b16 %v3877
        %v4880 = vunpack.c.h.b16 %v3877
        %v4881 = vunpack.c.l.b16 %v3878
        %v4882 = vunpack.c.h.b16 %v3878
        %v4883 = vunpack.c.l.b16 %v3879
        %v4884 = vunpack.c.l.b16 %v3880
        %v4885 = vunpack.c.h.b16 %v3880
        %v4886 = vunpack.c.l.b16 %v3881
        %v4887 = vunpack.c.h.b16 %v3881
        %v4888 = vunpack.c.l.b16 %v3882
        %v4889 = vunpack.c.h.b16 %v3882
        %v4890 = vunpack.c.l.b16 %v3883
        %v4891 = vunpack.c.l.b16 %v3884
        %v4892 = vunpack.c.h.b16 %v3884
        %v4893 = vunpack.c.l.b16 %v3885
        %v4894 = vunpack.c.h.b16 %v3885
        %v4895 = vunpack.c.l.b16 %v3886
        %v4896 = vunpack.c.h.b16 %v3886
        %v4897 = vunpack.c.l.b16 %v3887
        %v4898 = vunpack.c.l.b16 %v3888
        %v4899 = vunpack.c.h.b16 %v3888
        %v4900 = vunpack.c.l.b16 %v3889
        %v4901 = vunpack.c.h.b16 %v3889
        %v4902 = vunpack.c.l.b16 %v3890
        %v4903 = vunpack.c.h.b16 %v3890
        %v4904 = vunpack.c.l.b16 %v3891
        %v4905 = vunpack.c.l.b16 %v3892
        %v4906 = vunpack.c.h.b16 %v3892
        %v4907 = vunpack.c.l.b16 %v3893
        %v4908 = vunpack.c.h.b16 %v3893
        %v4909 = vunpack.c.l.b16 %v3894
        %v4910 = vunpack.c.h.b16 %v3894
        %v4911 = vunpack.c.l.b16 %v3895
        %v4912 = vunpack.c.l.b16 %v3896
        %v4913 = vunpack.c.h.b16 %v3896
        %v4914 = vunpack.c.l.b16 %v3897
        %v4915 = vunpack.c.h.b16 %v3897
        %v4916 = vunpack.c.l.b16 %v3898
        %v4917 = vunpack.c.h.b16 %v3898
        %v4918 = vunpack.c.l.b16 %v3899
        %v4919 = vunpack.c.l.b16 %v3900
        %v4920 = vunpack.c.h.b16 %v3900
        %v4921 = vunpack.c.l.b16 %v3901
        %v4922 = vunpack.c.h.b16 %v3901
        %v4923 = vunpack.c.l.b16 %v3902
        %v4924 = vunpack.c.h.b16 %v3902
        %v4925 = vunpack.c.l.b16 %v3903
        %v4926 = vunpack.c.l.b16 %v3904
        %v4927 = vunpack.c.h.b16 %v3904
        %v4928 = vunpack.c.l.b16 %v3905
        %v4929 = vunpack.c.h.b16 %v3905
        %v4930 = vunpack.c.l.b16 %v3906
        %v4931 = vunpack.c.h.b16 %v3906
        %v4932 = vunpack.c.l.b16 %v3907
        %v4933 = vunpack.c.l.b16 %v3908
        %v4934 = vunpack.c.h.b16 %v3908
        %v4935 = vunpack.c.l.b16 %v3909
        %v4936 = vunpack.c.h.b16 %v3909
        %v4937 = vunpack.c.l.b16 %v3910
        %v4938 = vunpack.c.h.b16 %v3910
        %v4939 = vunpack.c.l.b16 %v3911
        %v4940 = vunpack.c.l.b16 %v3912
        %v4941 = vunpack.c.h.b16 %v3912
        %v4942 = vunpack.c.l.b16 %v3913
        %v4943 = vunpack.c.h.b16 %v3913
        %v4944 = vunpack.c.l.b16 %v3914
        %v4945 = vunpack.c.h.b16 %v3914
        %v4946 = vunpack.c.l.b16 %v3915
        %v4947 = vunpack.c.l.b16 %v3916
        %v4948 = vunpack.c.h.b16 %v3916
        %v4949 = vunpack.c.l.b16 %v3917
        %v4950 = vunpack.c.h.b16 %v3917
        %v4951 = vunpack.c.l.b16 %v3918
        %v4952 = vunpack.c.h.b16 %v3918
        %v4953 = vunpack.c.l.b16 %v3919
        %v4954 = vunpack.c.l.b16 %v3920
        %v4955 = vunpack.c.h.b16 %v3920
        %v4956 = vunpack.c.l.b16 %v3921
        %v4957 = vunpack.c.h.b16 %v3921
        %v4958 = vunpack.c.l.b16 %v3922
        %v4959 = vunpack.c.h.b16 %v3922
        %v4960 = vunpack.c.l.b16 %v3923
        %v4961 = vunpack.c.l.b16 %v3924
        %v4962 = vunpack.c.h.b16 %v3924
        %v4963 = vunpack.c.l.b16 %v3925
        %v4964 = vunpack.c.h.b16 %v3925
        %v4965 = vunpack.c.l.b16 %v3926
        %v4966 = vunpack.c.h.b16 %v3926
        %v4967 = vunpack.c.l.b16 %v3927
        %v4968 = vunpack.c.l.b16 %v3928
        %v4969 = vunpack.c.h.b16 %v3928
        %v4970 = vunpack.c.l.b16 %v3929
        %v4971 = vunpack.c.h.b16 %v3929
        %v4972 = vunpack.c.l.b16 %v3930
        %v4973 = vunpack.c.h.b16 %v3930
        %v4974 = vunpack.c.l.b16 %v3931
        %v4975 = vunpack.c.l.b16 %v3932
        %v4976 = vunpack.c.h.b16 %v3932
        %v4977 = vunpack.c.l.b16 %v3933
        %v4978 = vunpack.c.h.b16 %v3933
        %v4979 = vunpack.c.l.b16 %v3934
        %v4980 = vunpack.c.h.b16 %v3934
        %v4981 = vunpack.c.l.b16 %v3935
        %v4982 = vunpack.c.l.b16 %v3936
        %v4983 = vunpack.c.h.b16 %v3936
        %v4984 = vunpack.c.l.b16 %v3937
        %v4985 = vunpack.c.h.b16 %v3937
        %v4986 = vunpack.c.l.b16 %v3938
        %v4987 = vunpack.c.h.b16 %v3938
        %v4988 = vunpack.c.l.b16 %v3939
        %v4989 = vunpack.c.l.b16 %v3940
        %v4990 = vunpack.c.h.b16 %v3940
        %v4991 = vunpack.c.l.b16 %v3941
        %v4992 = vunpack.c.h.b16 %v3941
        %v4993 = vunpack.c.l.b16 %v3942
        %v4994 = vunpack.c.h.b16 %v3942
        %v4995 = vunpack.c.l.b16 %v3943
        %v4996 = vunpack.c.l.b16 %v3944
        %v4997 = vunpack.c.h.b16 %v3944
        %v4998 = vunpack.c.l.b16 %v3945
        %v4999 = vunpack.c.h.b16 %v3945
        %v5000 = vunpack.c.l.b16 %v3946
        %v5001 = vunpack.c.h.b16 %v3946
        %v5002 = vunpack.c.l.b16 %v3947
        %v5003 = vunpack.c.l.b16 %v3948
        %v5004 = vunpack.c.h.b16 %v3948
        %v5005 = vunpack.c.l.b16 %v3949
        %v5006 = vunpack.c.h.b16 %v3949
        %v5007 = vunpack.c.l.b16 %v3950
        %v5008 = vunpack.c.h.b16 %v3950
        %v5009 = vunpack.c.l.b16 %v3951
        %v5010 = vunpack.c.l.b16 %v3952
        %v5011 = vunpack.c.h.b16 %v3952
        %v5012 = vunpack.c.l.b16 %v3953
        %v5013 = vunpack.c.h.b16 %v3953
        %v5014 = vunpack.c.l.b16 %v3954
        %v5015 = vunpack.c.h.b16 %v3954
        %v5016 = vunpack.c.l.b16 %v3955
        %v5017 = vunpack.c.l.b16 %v3956
        %v5018 = vunpack.c.h.b16 %v3956
        %v5019 = vunpack.c.l.b16 %v3957
        %v5020 = vunpack.c.h.b16 %v3957
        %v5021 = vunpack.c.l.b16 %v3958
        %v5022 = vunpack.c.h.b16 %v3958
        %v5023 = vunpack.c.l.b16 %v3959
        %v5024 = vunpack.c.l.b16 %v3960
        %v5025 = vunpack.c.h.b16 %v3960
        %v5026 = vunpack.c.l.b16 %v3961
        %v5027 = vunpack.c.h.b16 %v3961
        %v5028 = vunpack.c.l.b16 %v3962
        %v5029 = vunpack.c.h.b16 %v3962
        %v5030 = vunpack.c.l.b16 %v3963
        %v5031 = vunpack.c.l.b16 %v3964
        %v5032 = vunpack.c.h.b16 %v3964
        %v5033 = vunpack.c.l.b16 %v3965
        %v5034 = vunpack.c.h.b16 %v3965
        %v5035 = vunpack.c.l.b16 %v3966
        %v5036 = vunpack.c.h.b16 %v3966
        %v5037 = vunpack.c.l.b16 %v3967
        %v5038 = vunpack.c.l.b16 %v3968
        %v5039 = vunpack.c.h.b16 %v3968
        %v5040 = vunpack.c.l.b16 %v3969
        %v5041 = vunpack.c.h.b16 %v3969
        %v5042 = vunpack.c.l.b16 %v3970
        %v5043 = vunpack.c.h.b16 %v3970
        %v5044 = vunpack.c.l.b16 %v3971
        %v5045 = vunpack.c.l.b16 %v3972
        %v5046 = vunpack.c.h.b16 %v3972
        %v5047 = vunpack.c.l.b16 %v3973
        %v5048 = vunpack.c.h.b16 %v3973
        %v5049 = vunpack.c.l.b16 %v3974
        %v5050 = vunpack.c.h.b16 %v3974
        %v5051 = vunpack.c.l.b16 %v3975
        %v5052 = vunpack.c.l.b16 %v3976
        %v5053 = vunpack.c.h.b16 %v3976
        %v5054 = vunpack.c.l.b16 %v3977
        %v5055 = vunpack.c.h.b16 %v3977
        %v5056 = vunpack.c.l.b16 %v3978
        %v5057 = vunpack.c.h.b16 %v3978
        %v5058 = vunpack.c.l.b16 %v3979
        %v5059 = vunpack.c.l.b16 %v3980
        %v5060 = vunpack.c.h.b16 %v3980
        %v5061 = vunpack.c.l.b16 %v3981
        %v5062 = vunpack.c.h.b16 %v3981
        %v5063 = vunpack.c.l.b16 %v3982
        %v5064 = vunpack.c.h.b16 %v3982
        %v5065 = vunpack.c.l.b16 %v3983
        %v5066 = vunpack.c.l.b16 %v3984
        %v5067 = vunpack.c.h.b16 %v3984
        %v5068 = vunpack.c.l.b16 %v3985
        %v5069 = vunpack.c.h.b16 %v3985
        %v5070 = vunpack.c.l.b16 %v3986
        %v5071 = vunpack.c.h.b16 %v3986
        %v5072 = vunpack.c.l.b16 %v3987
        %v5073 = vunpack.c.l.b16 %v3988
        %v5074 = vunpack.c.h.b16 %v3988
        %v5075 = vunpack.c.l.b16 %v3989
        %v5076 = vunpack.c.h.b16 %v3989
        %v5077 = vunpack.c.l.b16 %v3990
        %v5078 = vunpack.c.h.b16 %v3990
        %v5079 = vunpack.c.l.b16 %v3991
        %v5080 = vunpack.c.l.b16 %v3992
        %v5081 = vunpack.c.h.b16 %v3992
        %v5082 = vunpack.c.l.b16 %v3993
        %v5083 = vunpack.c.h.b16 %v3993
        %v5084 = vunpack.c.l.b16 %v3994
        %v5085 = vunpack.c.h.b16 %v3994
        %v5086 = vunpack.c.l.b16 %v3995
        %v5087 = vunpack.c.l.b16 %v3996
        %v5088 = vunpack.c.h.b16 %v3996
        %v5089 = vunpack.c.l.b16 %v3997
        %v5090 = vunpack.c.h.b16 %v3997
        %v5091 = vunpack.c.l.b16 %v3998
        %v5092 = vunpack.c.h.b16 %v3998
        %v5093 = vunpack.c.l.b16 %v3999
        %v5094 = vunpack.c.l.b16 %v4000
        %v5095 = vunpack.c.h.b16 %v4000
        %v5096 = vunpack.c.l.b16 %v4001
        %v5097 = vunpack.c.h.b16 %v4001
        %v5098 = vunpack.c.l.b16 %v4002
        %v5099 = vunpack.c.h.b16 %v4002
        %v5100 = vunpack.c.l.b16 %v4003
        %v5101 = vunpack.c.l.b16 %v4004
        %v5102 = vunpack.c.h.b16 %v4004
        %v5103 = vunpack.c.l.b16 %v4005
        %v5104 = vunpack.c.h.b16 %v4005
        %v5105 = vunpack.c.l.b16 %v4006
        %v5106 = vunpack.c.h.b16 %v4006
        %v5107 = vunpack.c.l.b16 %v4007
        %v5108 = vpack.c.b16 %v4415, %v4408
        %v5109 = vpack.c.b16 %v4416, %v4409
        %v5110 = vpack.c.b16 %v4417, %v4410
        %v5111 = vpack.c.b16 %v4418, %v4411
        %v5112 = vpack.c.b16 %v4419, %v4412
        %v5113 = vpack.c.b16 %v4420, %v4413
        %v5114 = vpack.c.b16 %v4421, %v4414
        %v5115 = vpack.c.b16 %v4429, %v4422
        %v5116 = vpack.c.b16 %v4430, %v4423
        %v5117 = vpack.c.b16 %v4431, %v4424
        %v5118 = vpack.c.b16 %v4432, %v4425
        %v5119 = vpack.c.b16 %v4433, %v4426
        %v5120 = vpack.c.b16 %v4434, %v4427
        %v5121 = vpack.c.b16 %v4435, %v4428
        %v5122 = vpack.c.b16 %v4443, %v4436
        %v5123 = vpack.c.b16 %v4444, %v4437
        %v5124 = vpack.c.b16 %v4445, %v4438
        %v5125 = vpack.c.b16 %v4446, %v4439
        %v5126 = vpack.c.b16 %v4447, %v4440
        %v5127 = vpack.c.b16 %v4448, %v4441
        %v5128 = vpack.c.b16 %v4449, %v4442
        %v5129 = vpack.c.b16 %v4457, %v4450
        %v5130 = vpack.c.b16 %v4458, %v4451
        %v5131 = vpack.c.b16 %v4459, %v4452
        %v5132 = vpack.c.b16 %v4460, %v4453
        %v5133 = vpack.c.b16 %v4461, %v4454
        %v5134 = vpack.c.b16 %v4462, %v4455
        %v5135 = vpack.c.b16 %v4463, %v4456
        %v5136 = vpack.c.b16 %v4471, %v4464
        %v5137 = vpack.c.b16 %v4472, %v4465
        %v5138 = vpack.c.b16 %v4473, %v4466
        %v5139 = vpack.c.b16 %v4474, %v4467
        %v5140 = vpack.c.b16 %v4475, %v4468
        %v5141 = vpack.c.b16 %v4476, %v4469
        %v5142 = vpack.c.b16 %v4477, %v4470
        %v5143 = vpack.c.b16 %v4485, %v4478
        %v5144 = vpack.c.b16 %v4486, %v4479
        %v5145 = vpack.c.b16 %v4487, %v4480
        %v5146 = vpack.c.b16 %v4488, %v4481
        %v5147 = vpack.c.b16 %v4489, %v4482
        %v5148 = vpack.c.b16 %v4490, %v4483
        %v5149 = vpack.c.b16 %v4491, %v4484
        %v5150 = vpack.c.b16 %v4499, %v4492
        %v5151 = vpack.c.b16 %v4500, %v4493
        %v5152 = vpack.c.b16 %v4501, %v4494
        %v5153 = vpack.c.b16 %v4502, %v4495
        %v5154 = vpack.c.b16 %v4503, %v4496
        %v5155 = vpack.c.b16 %v4504, %v4497
        %v5156 = vpack.c.b16 %v4505, %v4498
        %v5157 = vpack.c.b16 %v4513, %v4506
        %v5158 = vpack.c.b16 %v4514, %v4507
        %v5159 = vpack.c.b16 %v4515, %v4508
        %v5160 = vpack.c.b16 %v4516, %v4509
        %v5161 = vpack.c.b16 %v4517, %v4510
        %v5162 = vpack.c.b16 %v4518, %v4511
        %v5163 = vpack.c.b16 %v4519, %v4512
        %v5164 = vpack.c.b16 %v4527, %v4520
        %v5165 = vpack.c.b16 %v4528, %v4521
        %v5166 = vpack.c.b16 %v4529, %v4522
        %v5167 = vpack.c.b16 %v4530, %v4523
        %v5168 = vpack.c.b16 %v4531, %v4524
        %v5169 = vpack.c.b16 %v4532, %v4525
        %v5170 = vpack.c.b16 %v4533, %v4526
        %v5171 = vpack.c.b16 %v4541, %v4534
        %v5172 = vpack.c.b16 %v4542, %v4535
        %v5173 = vpack.c.b16 %v4543, %v4536
        %v5174 = vpack.c.b16 %v4544, %v4537
        %v5175 = vpack.c.b16 %v4545, %v4538
        %v5176 = vpack.c.b16 %v4546, %v4539
        %v5177 = vpack.c.b16 %v4547, %v4540
        %v5178 = vpack.c.b16 %v4555, %v4548
        %v5179 = vpack.c.b16 %v4556, %v4549
        %v5180 = vpack.c.b16 %v4557, %v4550
        %v5181 = vpack.c.b16 %v4558, %v4551
        %v5182 = vpack.c.b16 %v4559, %v4552
        %v5183 = vpack.c.b16 %v4560, %v4553
        %v5184 = vpack.c.b16 %v4561, %v4554
        %v5185 = vpack.c.b16 %v4569, %v4562
        %v5186 = vpack.c.b16 %v4570, %v4563
        %v5187 = vpack.c.b16 %v4571, %v4564
        %v5188 = vpack.c.b16 %v4572, %v4565
        %v5189 = vpack.c.b16 %v4573, %v4566
        %v5190 = vpack.c.b16 %v4574, %v4567
        %v5191 = vpack.c.b16 %v4575, %v4568
        %v5192 = vpack.c.b16 %v4583, %v4576
        %v5193 = vpack.c.b16 %v4584, %v4577
        %v5194 = vpack.c.b16 %v4585, %v4578
        %v5195 = vpack.c.b16 %v4586, %v4579
        %v5196 = vpack.c.b16 %v4587, %v4580
        %v5197 = vpack.c.b16 %v4588, %v4581
        %v5198 = vpack.c.b16 %v4589, %v4582
        %v5199 = vpack.c.b16 %v4597, %v4590
        %v5200 = vpack.c.b16 %v4598, %v4591
        %v5201 = vpack.c.b16 %v4599, %v4592
        %v5202 = vpack.c.b16 %v4600, %v4593
        %v5203 = vpack.c.b16 %v4601, %v4594
        %v5204 = vpack.c.b16 %v4602, %v4595
        %v5205 = vpack.c.b16 %v4603, %v4596
        %v5206 = vpack.c.b16 %v4611, %v4604
        %v5207 = vpack.c.b16 %v4612, %v4605
        %v5208 = vpack.c.b16 %v4613, %v4606
        %v5209 = vpack.c.b16 %v4614, %v4607
        %v5210 = vpack.c.b16 %v4615, %v4608
        %v5211 = vpack.c.b16 %v4616, %v4609
        %v5212 = vpack.c.b16 %v4617, %v4610
        %v5213 = vpack.c.b16 %v4625, %v4618
        %v5214 = vpack.c.b16 %v4626, %v4619
        %v5215 = vpack.c.b16 %v4627, %v4620
        %v5216 = vpack.c.b16 %v4628, %v4621
        %v5217 = vpack.c.b16 %v4629, %v4622
        %v5218 = vpack.c.b16 %v4630, %v4623
        %v5219 = vpack.c.b16 %v4631, %v4624
        %v5220 = vpack.c.b16 %v4639, %v4632
        %v5221 = vpack.c.b16 %v4640, %v4633
        %v5222 = vpack.c.b16 %v4641, %v4634
        %v5223 = vpack.c.b16 %v4642, %v4635
        %v5224 = vpack.c.b16 %v4643, %v4636
        %v5225 = vpack.c.b16 %v4644, %v4637
        %v5226 = vpack.c.b16 %v4645, %v4638
        %v5227 = vpack.c.b16 %v4653, %v4646
        %v5228 = vpack.c.b16 %v4654, %v4647
        %v5229 = vpack.c.b16 %v4655, %v4648
        %v5230 = vpack.c.b16 %v4656, %v4649
        %v5231 = vpack.c.b16 %v4657, %v4650
        %v5232 = vpack.c.b16 %v4658, %v4651
        %v5233 = vpack.c.b16 %v4659, %v4652
        %v5234 = vpack.c.b16 %v4667, %v4660
        %v5235 = vpack.c.b16 %v4668, %v4661
        %v5236 = vpack.c.b16 %v4669, %v4662
        %v5237 = vpack.c.b16 %v4670, %v4663
        %v5238 = vpack.c.b16 %v4671, %v4664
        %v5239 = vpack.c.b16 %v4672, %v4665
        %v5240 = vpack.c.b16 %v4673, %v4666
        %v5241 = vpack.c.b16 %v4681, %v4674
        %v5242 = vpack.c.b16 %v4682, %v4675
        %v5243 = vpack.c.b16 %v4683, %v4676
        %v5244 = vpack.c.b16 %v4684, %v4677
        %v5245 = vpack.c.b16 %v4685, %v4678
        %v5246 = vpack.c.b16 %v4686, %v4679
        %v5247 = vpack.c.b16 %v4687, %v4680
        %v5248 = vpack.c.b16 %v4695, %v4688
        %v5249 = vpack.c.b16 %v4696, %v4689
        %v5250 = vpack.c.b16 %v4697, %v4690
        %v5251 = vpack.c.b16 %v4698, %v4691
        %v5252 = vpack.c.b16 %v4699, %v4692
        %v5253 = vpack.c.b16 %v4700, %v4693
        %v5254 = vpack.c.b16 %v4701, %v4694
        %v5255 = vpack.c.b16 %v4709, %v4702
        %v5256 = vpack.c.b16 %v4710, %v4703
        %v5257 = vpack.c.b16 %v4711, %v4704
        %v5258 = vpack.c.b16 %v4712, %v4705
        %v5259 = vpack.c.b16 %v4713, %v4706
        %v5260 = vpack.c.b16 %v4714, %v4707
        %v5261 = vpack.c.b16 %v4715, %v4708
        %v5262 = vpack.c.b16 %v4723, %v4716
        %v5263 = vpack.c.b16 %v4724, %v4717
        %v5264 = vpack.c.b16 %v4725, %v4718
        %v5265 = vpack.c.b16 %v4726, %v4719
        %v5266 = vpack.c.b16 %v4727, %v4720
        %v5267 = vpack.c.b16 %v4728, %v4721
        %v5268 = vpack.c.b16 %v4729, %v4722
        %v5269 = vpack.c.b16 %v4737, %v4730
        %v5270 = vpack.c.b16 %v4738, %v4731
        %v5271 = vpack.c.b16 %v4739, %v4732
        %v5272 = vpack.c.b16 %v4740, %v4733
        %v5273 = vpack.c.b16 %v4741, %v4734
        %v5274 = vpack.c.b16 %v4742, %v4735
        %v5275 = vpack.c.b16 %v4743, %v4736
        %v5276 = vpack.c.b16 %v4751, %v4744
        %v5277 = vpack.c.b16 %v4752, %v4745
        %v5278 = vpack.c.b16 %v4753, %v4746
        %v5279 = vpack.c.b16 %v4754, %v4747
        %v5280 = vpack.c.b16 %v4755, %v4748
        %v5281 = vpack.c.b16 %v4756, %v4749
        %v5282 = vpack.c.b16 %v4757, %v4750
        %v5283 = vpack.c.b16 %v4765, %v4758
        %v5284 = vpack.c.b16 %v4766, %v4759
        %v5285 = vpack.c.b16 %v4767, %v4760
        %v5286 = vpack.c.b16 %v4768, %v4761
        %v5287 = vpack.c.b16 %v4769, %v4762
        %v5288 = vpack.c.b16 %v4770, %v4763
        %v5289 = vpack.c.b16 %v4771, %v4764
        %v5290 = vpack.c.b16 %v4779, %v4772
        %v5291 = vpack.c.b16 %v4780, %v4773
        %v5292 = vpack.c.b16 %v4781, %v4774
        %v5293 = vpack.c.b16 %v4782, %v4775
        %v5294 = vpack.c.b16 %v4783, %v4776
        %v5295 = vpack.c.b16 %v4784, %v4777
        %v5296 = vpack.c.b16 %v4785, %v4778
        %v5297 = vpack.c.b16 %v4793, %v4786
        %v5298 = vpack.c.b16 %v4794, %v4787
        %v5299 = vpack.c.b16 %v4795, %v4788
        %v5300 = vpack.c.b16 %v4796, %v4789
        %v5301 = vpack.c.b16 %v4797, %v4790
        %v5302 = vpack.c.b16 %v4798, %v4791
        %v5303 = vpack.c.b16 %v4799, %v4792
        %v5304 = vpack.c.b16 %v4807, %v4800
        %v5305 = vpack.c.b16 %v4808, %v4801
        %v5306 = vpack.c.b16 %v4809, %v4802
        %v5307 = vpack.c.b16 %v4810, %v4803
        %v5308 = vpack.c.b16 %v4811, %v4804
        %v5309 = vpack.c.b16 %v4812, %v4805
        %v5310 = vpack.c.b16 %v4813, %v4806
        %v5311 = vpack.c.b16 %v4821, %v4814
        %v5312 = vpack.c.b16 %v4822, %v4815
        %v5313 = vpack.c.b16 %v4823, %v4816
        %v5314 = vpack.c.b16 %v4824, %v4817
        %v5315 = vpack.c.b16 %v4825, %v4818
        %v5316 = vpack.c.b16 %v4826, %v4819
        %v5317 = vpack.c.b16 %v4827, %v4820
        %v5318 = vpack.c.b16 %v4835, %v4828
        %v5319 = vpack.c.b16 %v4836, %v4829
        %v5320 = vpack.c.b16 %v4837, %v4830
        %v5321 = vpack.c.b16 %v4838, %v4831
        %v5322 = vpack.c.b16 %v4839, %v4832
        %v5323 = vpack.c.b16 %v4840, %v4833
        %v5324 = vpack.c.b16 %v4841, %v4834
        %v5325 = vpack.c.b16 %v4849, %v4842
        %v5326 = vpack.c.b16 %v4850, %v4843
        %v5327 = vpack.c.b16 %v4851, %v4844
        %v5328 = vpack.c.b16 %v4852, %v4845
        %v5329 = vpack.c.b16 %v4853, %v4846
        %v5330 = vpack.c.b16 %v4854, %v4847
        %v5331 = vpack.c.b16 %v4855, %v4848
        %v5332 = vpack.c.b16 %v4863, %v4856
        %v5333 = vpack.c.b16 %v4864, %v4857
        %v5334 = vpack.c.b16 %v4865, %v4858
        %v5335 = vpack.c.b16 %v4866, %v4859
        %v5336 = vpack.c.b16 %v4867, %v4860
        %v5337 = vpack.c.b16 %v4868, %v4861
        %v5338 = vpack.c.b16 %v4869, %v4862
        %v5339 = vpack.c.b16 %v4877, %v4870
        %v5340 = vpack.c.b16 %v4878, %v4871
        %v5341 = vpack.c.b16 %v4879, %v4872
        %v5342 = vpack.c.b16 %v4880, %v4873
        %v5343 = vpack.c.b16 %v4881, %v4874
        %v5344 = vpack.c.b16 %v4882, %v4875
        %v5345 = vpack.c.b16 %v4883, %v4876
        %v5346 = vpack.c.b16 %v4891, %v4884
        %v5347 = vpack.c.b16 %v4892, %v4885
        %v5348 = vpack.c.b16 %v4893, %v4886
        %v5349 = vpack.c.b16 %v4894, %v4887
        %v5350 = vpack.c.b16 %v4895, %v4888
        %v5351 = vpack.c.b16 %v4896, %v4889
        %v5352 = vpack.c.b16 %v4897, %v4890
        %v5353 = vpack.c.b16 %v4905, %v4898
        %v5354 = vpack.c.b16 %v4906, %v4899
        %v5355 = vpack.c.b16 %v4907, %v4900
        %v5356 = vpack.c.b16 %v4908, %v4901
        %v5357 = vpack.c.b16 %v4909, %v4902
        %v5358 = vpack.c.b16 %v4910, %v4903
        %v5359 = vpack.c.b16 %v4911, %v4904
        %v5360 = vpack.c.b16 %v4919, %v4912
        %v5361 = vpack.c.b16 %v4920, %v4913
        %v5362 = vpack.c.b16 %v4921, %v4914
        %v5363 = vpack.c.b16 %v4922, %v4915
        %v5364 = vpack.c.b16 %v4923, %v4916
        %v5365 = vpack.c.b16 %v4924, %v4917
        %v5366 = vpack.c.b16 %v4925, %v4918
        %v5367 = vpack.c.b16 %v4933, %v4926
        %v5368 = vpack.c.b16 %v4934, %v4927
        %v5369 = vpack.c.b16 %v4935, %v4928
        %v5370 = vpack.c.b16 %v4936, %v4929
        %v5371 = vpack.c.b16 %v4937, %v4930
        %v5372 = vpack.c.b16 %v4938, %v4931
        %v5373 = vpack.c.b16 %v4939, %v4932
        %v5374 = vpack.c.b16 %v4947, %v4940
        %v5375 = vpack.c.b16 %v4948, %v4941
        %v5376 = vpack.c.b16 %v4949, %v4942
        %v5377 = vpack.c.b16 %v4950, %v4943
        %v5378 = vpack.c.b16 %v4951, %v4944
        %v5379 = vpack.c.b16 %v4952, %v4945
        %v5380 = vpack.c.b16 %v4953, %v4946
        %v5381 = vpack.c.b16 %v4961, %v4954
        %v5382 = vpack.c.b16 %v4962, %v4955
        %v5383 = vpack.c.b16 %v4963, %v4956
        %v5384 = vpack.c.b16 %v4964, %v4957
        %v5385 = vpack.c.b16 %v4965, %v4958
        %v5386 = vpack.c.b16 %v4966, %v4959
        %v5387 = vpack.c.b16 %v4967, %v4960
        %v5388 = vpack.c.b16 %v4975, %v4968
        %v5389 = vpack.c.b16 %v4976, %v4969
        %v5390 = vpack.c.b16 %v4977, %v4970
        %v5391 = vpack.c.b16 %v4978, %v4971
        %v5392 = vpack.c.b16 %v4979, %v4972
        %v5393 = vpack.c.b16 %v4980, %v4973
        %v5394 = vpack.c.b16 %v4981, %v4974
        %v5395 = vpack.c.b16 %v4989, %v4982
        %v5396 = vpack.c.b16 %v4990, %v4983
        %v5397 = vpack.c.b16 %v4991, %v4984
        %v5398 = vpack.c.b16 %v4992, %v4985
        %v5399 = vpack.c.b16 %v4993, %v4986
        %v5400 = vpack.c.b16 %v4994, %v4987
        %v5401 = vpack.c.b16 %v4995, %v4988
        %v5402 = vpack.c.b16 %v5003, %v4996
        %v5403 = vpack.c.b16 %v5004, %v4997
        %v5404 = vpack.c.b16 %v5005, %v4998
        %v5405 = vpack.c.b16 %v5006, %v4999
        %v5406 = vpack.c.b16 %v5007, %v5000
        %v5407 = vpack.c.b16 %v5008, %v5001
        %v5408 = vpack.c.b16 %v5009, %v5002
        %v5409 = vpack.c.b16 %v5017, %v5010
        %v5410 = vpack.c.b16 %v5018, %v5011
        %v5411 = vpack.c.b16 %v5019, %v5012
        %v5412 = vpack.c.b16 %v5020, %v5013
        %v5413 = vpack.c.b16 %v5021, %v5014
        %v5414 = vpack.c.b16 %v5022, %v5015
        %v5415 = vpack.c.b16 %v5023, %v5016
        %v5416 = vpack.c.b16 %v5031, %v5024
        %v5417 = vpack.c.b16 %v5032, %v5025
        %v5418 = vpack.c.b16 %v5033, %v5026
        %v5419 = vpack.c.b16 %v5034, %v5027
        %v5420 = vpack.c.b16 %v5035, %v5028
        %v5421 = vpack.c.b16 %v5036, %v5029
        %v5422 = vpack.c.b16 %v5037, %v5030
        %v5423 = vpack.c.b16 %v5045, %v5038
        %v5424 = vpack.c.b16 %v5046, %v5039
        %v5425 = vpack.c.b16 %v5047, %v5040
        %v5426 = vpack.c.b16 %v5048, %v5041
        %v5427 = vpack.c.b16 %v5049, %v5042
        %v5428 = vpack.c.b16 %v5050, %v5043
        %v5429 = vpack.c.b16 %v5051, %v5044
        %v5430 = vpack.c.b16 %v5059, %v5052
        %v5431 = vpack.c.b16 %v5060, %v5053
        %v5432 = vpack.c.b16 %v5061, %v5054
        %v5433 = vpack.c.b16 %v5062, %v5055
        %v5434 = vpack.c.b16 %v5063, %v5056
        %v5435 = vpack.c.b16 %v5064, %v5057
        %v5436 = vpack.c.b16 %v5065, %v5058
        %v5437 = vpack.c.b16 %v5073, %v5066
        %v5438 = vpack.c.b16 %v5074, %v5067
        %v5439 = vpack.c.b16 %v5075, %v5068
        %v5440 = vpack.c.b16 %v5076, %v5069
        %v5441 = vpack.c.b16 %v5077, %v5070
        %v5442 = vpack.c.b16 %v5078, %v5071
        %v5443 = vpack.c.b16 %v5079, %v5072
        %v5444 = vpack.c.b16 %v5087, %v5080
        %v5445 = vpack.c.b16 %v5088, %v5081
        %v5446 = vpack.c.b16 %v5089, %v5082
        %v5447 = vpack.c.b16 %v5090, %v5083
        %v5448 = vpack.c.b16 %v5091, %v5084
        %v5449 = vpack.c.b16 %v5092, %v5085
        %v5450 = vpack.c.b16 %v5093, %v5086
        %v5451 = vpack.c.b16 %v5101, %v5094
        %v5452 = vpack.c.b16 %v5102, %v5095
        %v5453 = vpack.c.b16 %v5103, %v5096
        %v5454 = vpack.c.b16 %v5104, %v5097
        %v5455 = vpack.c.b16 %v5105, %v5098
        %v5456 = vpack.c.b16 %v5106, %v5099
        %v5457 = vpack.c.b16 %v5107, %v5100
        %v5809 = vsel %vm2609, %v3607, 0
        %5811 = vmatprep.subr.bf16.mxu0 %v5109
        %5812 = vmatpush1.bf16.msra.mxu0 %v5108
        %5813 = vmatprep.subr.bf16.mxu0 %v5116
        %5814 = vmatpush1.bf16.msra.mxu0 %v5115
        %5815 = vmatprep.subr.bf16.mxu0 %v5123
        %5816 = vmatpush1.bf16.msra.mxu0 %v5122
        %5817 = vmatprep.subr.bf16.mxu0 %v5130
        %5818 = vmatpush1.bf16.msra.mxu0 %v5129
        %5819 = vmatprep.subr.bf16.mxu0 %v5137
        %5820 = vmatpush1.bf16.msra.mxu0 %v5136
        %5821 = vmatprep.subr.bf16.mxu0 %v5144
        %5822 = vmatpush1.bf16.msra.mxu0 %v5143
        %5823 = vmatprep.subr.bf16.mxu0 %v5151
        %5824 = vmatpush1.bf16.msra.mxu0 %v5150
        %5825 = vmatprep.subr.bf16.mxu0 %v5158
        %5826 = vmatpush1.bf16.msra.mxu0 %v5157
        %5827 = vmatprep.subr.bf16.mxu0 %v5165
        %5828 = vmatpush1.bf16.msra.mxu0 %v5164
        %5829 = vmatprep.subr.bf16.mxu0 %v5172
        %5830 = vmatpush1.bf16.msra.mxu0 %v5171
        %5831 = vmatprep.subr.bf16.mxu0 %v5179
        %5832 = vmatpush1.bf16.msra.mxu0 %v5178
        %5833 = vmatprep.subr.bf16.mxu0 %v5186
        %5834 = vmatpush1.bf16.msra.mxu0 %v5185
        %5835 = vmatprep.subr.bf16.mxu0 %v5193
        %5836 = vmatpush1.bf16.msra.mxu0 %v5192
        %5837 = vmatprep.subr.bf16.mxu0 %v5200
        %5838 = vmatpush1.bf16.msra.mxu0 %v5199
        %5839 = vmatprep.subr.bf16.mxu0 %v5207
        %5840 = vmatpush1.bf16.msra.mxu0 %v5206
        %5841 = vmatprep.subr.bf16.mxu0 %v5214
        %5842 = vmatpush1.bf16.msra.mxu0 %v5213
        %5843 = vmatprep.mubr.bf16.mxu0 %v3602
        %5844 = vmatmul.mubr.bf16.gmra.mrb[0].mxu0 %v3601
        %v5845 = vpop.f32.mrb[0].mxu0
        %v5846 = vadd.f32 0.0, %v5845
        %v5847 = vpop.f32.mrb[0].mxu0
        %v5848 = vadd.f32 0.0, %v5847
        %v5849 = vpop.f32.mrb[0].mxu0
        %v5850 = vpop.f32.mrb[0].mxu0
        %5851 = vdwg.mxu0
        %5852 = vmatprep.subr.bf16.mxu0 %v5221
        %5853 = vmatpush1.bf16.msra.mxu0 %v5220
        %5854 = vmatprep.subr.bf16.mxu0 %v5228
        %5855 = vmatpush1.bf16.msra.mxu0 %v5227
        %5856 = vmatprep.subr.bf16.mxu0 %v5235
        %5857 = vmatpush1.bf16.msra.mxu0 %v5234
        %5858 = vmatprep.subr.bf16.mxu0 %v5242
        %5859 = vmatpush1.bf16.msra.mxu0 %v5241
        %5860 = vmatprep.subr.bf16.mxu0 %v5249
        %5861 = vmatpush1.bf16.msra.mxu0 %v5248
        %5862 = vmatprep.subr.bf16.mxu0 %v5256
        %5863 = vmatpush1.bf16.msra.mxu0 %v5255
        %5864 = vmatprep.subr.bf16.mxu0 %v5263
        %5865 = vmatpush1.bf16.msra.mxu0 %v5262
        %5866 = vmatprep.subr.bf16.mxu0 %v5270
        %5867 = vmatpush1.bf16.msra.mxu0 %v5269
        %5868 = vmatprep.subr.bf16.mxu0 %v5277
        %5869 = vmatpush1.bf16.msra.mxu0 %v5276
        %5870 = vmatprep.subr.bf16.mxu0 %v5284
        %5871 = vmatpush1.bf16.msra.mxu0 %v5283
        %5872 = vmatprep.subr.bf16.mxu0 %v5291
        %5873 = vmatpush1.bf16.msra.mxu0 %v5290
        %5874 = vmatprep.subr.bf16.mxu0 %v5298
        %5875 = vmatpush1.bf16.msra.mxu0 %v5297
        %5876 = vmatprep.subr.bf16.mxu0 %v5305
        %5877 = vmatpush1.bf16.msra.mxu0 %v5304
        %5878 = vmatprep.subr.bf16.mxu0 %v5312
        %5879 = vmatpush1.bf16.msra.mxu0 %v5311
        %5880 = vmatprep.subr.bf16.mxu0 %v5319
        %5881 = vmatpush1.bf16.msra.mxu0 %v5318
        %5882 = vmatprep.subr.bf16.mxu0 %v5326
        %5883 = vmatpush1.bf16.msra.mxu0 %v5325
        %5884 = vmatprep.mubr.bf16.mxu0 %v3604
        %5885 = vmatmul.mubr.bf16.gmra.mrb[0].mxu0 %v3603
        %v5886 = vpop.f32.mrb[0].mxu0
        %v5887 = vadd.f32 %v5846, %v5886
        %v5888 = vpop.f32.mrb[0].mxu0
        %v5889 = vadd.f32 %v5848, %v5888
        %v5890 = vpop.f32.mrb[0].mxu0
        %v5891 = vpop.f32.mrb[0].mxu0
        %5892 = vdwg.mxu0
        %5893 = vmatprep.subr.bf16.mxu0 %v5333
        %5894 = vmatpush1.bf16.msra.mxu0 %v5332
        %5895 = vmatprep.subr.bf16.mxu0 %v5340
        %5896 = vmatpush1.bf16.msra.mxu0 %v5339
        %5897 = vmatprep.subr.bf16.mxu0 %v5347
        %5898 = vmatpush1.bf16.msra.mxu0 %v5346
        %5899 = vmatprep.subr.bf16.mxu0 %v5354
        %5900 = vmatpush1.bf16.msra.mxu0 %v5353
        %5901 = vmatprep.subr.bf16.mxu0 %v5361
        %5902 = vmatpush1.bf16.msra.mxu0 %v5360
        %5903 = vmatprep.subr.bf16.mxu0 %v5368
        %5904 = vmatpush1.bf16.msra.mxu0 %v5367
        %5905 = vmatprep.subr.bf16.mxu0 %v5375
        %5906 = vmatpush1.bf16.msra.mxu0 %v5374
        %5907 = vmatprep.subr.bf16.mxu0 %v5382
        %5908 = vmatpush1.bf16.msra.mxu0 %v5381
        %5909 = vmatprep.subr.bf16.mxu0 %v5389
        %5910 = vmatpush1.bf16.msra.mxu0 %v5388
        %5911 = vmatprep.subr.bf16.mxu0 %v5396
        %5912 = vmatpush1.bf16.msra.mxu0 %v5395
        %5913 = vmatprep.subr.bf16.mxu0 %v5403
        %5914 = vmatpush1.bf16.msra.mxu0 %v5402
        %5915 = vmatprep.subr.bf16.mxu0 %v5410
        %5916 = vmatpush1.bf16.msra.mxu0 %v5409
        %5917 = vmatprep.subr.bf16.mxu0 %v5417
        %5918 = vmatpush1.bf16.msra.mxu0 %v5416
        %5919 = vmatprep.subr.bf16.mxu0 %v5424
        %5920 = vmatpush1.bf16.msra.mxu0 %v5423
        %5921 = vmatprep.subr.bf16.mxu0 %v5431
        %5922 = vmatpush1.bf16.msra.mxu0 %v5430
        %5923 = vmatprep.subr.bf16.mxu0 %v5438
        %5924 = vmatpush1.bf16.msra.mxu0 %v5437
        %5925 = vmatprep.mubr.bf16.mxu0 %v3606
        %5926 = vmatmul.mubr.bf16.gmra.mrb[0].mxu0 %v3605
        %v5927 = vpop.f32.mrb[0].mxu0
        %v5928 = vadd.f32 %v5887, %v5927
        %v5929 = vpop.f32.mrb[0].mxu0
        %v5930 = vadd.f32 %v5889, %v5929
        %v5931 = vpop.f32.mrb[0].mxu0
        %v5932 = vpop.f32.mrb[0].mxu0
        %5933 = vdwg.mxu0
        %5934 = vmatprep.subr.bf16.mxu0 %v5445
        %5935 = vmatpush1.bf16.msra.mxu0 %v5444
        %5936 = vmatprep.subr.bf16.mxu0 %v5452
        %5937 = vmatpush1.bf16.msra.mxu0 %v5451
        %5938 = vmatprep.subr.bf16.mxu0 0
        %5939 = vmatpush1.bf16.msra.mxu0 0
        %5940 = vmatprep.subr.bf16.mxu0 0
        %5941 = vmatpush1.bf16.msra.mxu0 0
        %5942 = vmatprep.subr.bf16.mxu0 0
        %5943 = vmatpush1.bf16.msra.mxu0 0
        %5944 = vmatprep.subr.bf16.mxu0 0
        %5945 = vmatpush1.bf16.msra.mxu0 0
        %5946 = vmatprep.subr.bf16.mxu0 0
        %5947 = vmatpush1.bf16.msra.mxu0 0
        %5948 = vmatprep.subr.bf16.mxu0 0
        %5949 = vmatpush1.bf16.msra.mxu0 0
        %5950 = vmatprep.subr.bf16.mxu0 0
        %5951 = vmatpush1.bf16.msra.mxu0 0
        %5952 = vmatprep.subr.bf16.mxu0 0
        %5953 = vmatpush1.bf16.msra.mxu0 0
        %5954 = vmatprep.subr.bf16.mxu0 0
        %5955 = vmatpush1.bf16.msra.mxu0 0
        %5956 = vmatprep.subr.bf16.mxu0 0
        %5957 = vmatpush1.bf16.msra.mxu0 0
        %5958 = vmatprep.subr.bf16.mxu0 0
        %5959 = vmatpush1.bf16.msra.mxu0 0
        %5960 = vmatprep.subr.bf16.mxu0 0
        %5961 = vmatpush1.bf16.msra.mxu0 0
        %5962 = vmatprep.subr.bf16.mxu0 0
        %5963 = vmatpush1.bf16.msra.mxu0 0
        %5964 = vmatprep.subr.bf16.mxu0 0
        %5965 = vmatpush1.bf16.msra.mxu0 0
        %5966 = vmatprep.mubr.bf16.mxu0 0
        %5967 = vmatmul.mubr.bf16.gmra.mrb[0].mxu0 %v5809
        %v5968 = vpop.f32.mrb[0].mxu0
        %v5969 = vadd.f32 %v5928, %v5968
        %v5970 = vpop.f32.mrb[0].mxu0
        %v5971 = vadd.f32 %v5930, %v5970
        %v5972 = vpop.f32.mrb[0].mxu0
        %v5973 = vpop.f32.mrb[0].mxu0
        %5974 = vdwg.mxu0
        %5975 = vmatprep.subr.bf16.mxu0 %v5111
        %5976 = vmatpush1.bf16.msra.mxu0 %v5110
        %5977 = vmatprep.subr.bf16.mxu0 %v5118
        %5978 = vmatpush1.bf16.msra.mxu0 %v5117
        %5979 = vmatprep.subr.bf16.mxu0 %v5125
        %5980 = vmatpush1.bf16.msra.mxu0 %v5124
        %5981 = vmatprep.subr.bf16.mxu0 %v5132
        %5982 = vmatpush1.bf16.msra.mxu0 %v5131
        %5983 = vmatprep.subr.bf16.mxu0 %v5139
        %5984 = vmatpush1.bf16.msra.mxu0 %v5138
        %5985 = vmatprep.subr.bf16.mxu0 %v5146
        %5986 = vmatpush1.bf16.msra.mxu0 %v5145
        %5987 = vmatprep.subr.bf16.mxu0 %v5153
        %5988 = vmatpush1.bf16.msra.mxu0 %v5152
        %5989 = vmatprep.subr.bf16.mxu0 %v5160
        %5990 = vmatpush1.bf16.msra.mxu0 %v5159
        %5991 = vmatprep.subr.bf16.mxu0 %v5167
        %5992 = vmatpush1.bf16.msra.mxu0 %v5166
        %5993 = vmatprep.subr.bf16.mxu0 %v5174
        %5994 = vmatpush1.bf16.msra.mxu0 %v5173
        %5995 = vmatprep.subr.bf16.mxu0 %v5181
        %5996 = vmatpush1.bf16.msra.mxu0 %v5180
        %5997 = vmatprep.subr.bf16.mxu0 %v5188
        %5998 = vmatpush1.bf16.msra.mxu0 %v5187
        %5999 = vmatprep.subr.bf16.mxu0 %v5195
        %6000 = vmatpush1.bf16.msra.mxu0 %v5194
        %6001 = vmatprep.subr.bf16.mxu0 %v5202
        %6002 = vmatpush1.bf16.msra.mxu0 %v5201
        %6003 = vmatprep.subr.bf16.mxu0 %v5209
        %6004 = vmatpush1.bf16.msra.mxu0 %v5208
        %6005 = vmatprep.subr.bf16.mxu0 %v5216
        %6006 = vmatpush1.bf16.msra.mxu0 %v5215
        %6007 = vmatprep.mubr.bf16.mxu0 %v3602
        %6008 = vmatmul.mubr.bf16.gmra.mrb[0].mxu0 %v3601
        %v6009 = vpop.f32.mrb[0].mxu0
        %v6010 = vadd.f32 0.0, %v6009
        %v6011 = vpop.f32.mrb[0].mxu0
        %v6012 = vadd.f32 0.0, %v6011
        %v6013 = vpop.f32.mrb[0].mxu0
        %v6014 = vpop.f32.mrb[0].mxu0
        %6015 = vdwg.mxu0
        %6016 = vmatprep.subr.bf16.mxu0 %v5223
        %6017 = vmatpush1.bf16.msra.mxu0 %v5222
        %6018 = vmatprep.subr.bf16.mxu0 %v5230
        %6019 = vmatpush1.bf16.msra.mxu0 %v5229
        %6020 = vmatprep.subr.bf16.mxu0 %v5237
        %6021 = vmatpush1.bf16.msra.mxu0 %v5236
        %6022 = vmatprep.subr.bf16.mxu0 %v5244
        %6023 = vmatpush1.bf16.msra.mxu0 %v5243
        %6024 = vmatprep.subr.bf16.mxu0 %v5251
        %6025 = vmatpush1.bf16.msra.mxu0 %v5250
        %6026 = vmatprep.subr.bf16.mxu0 %v5258
        %6027 = vmatpush1.bf16.msra.mxu0 %v5257
        %6028 = vmatprep.subr.bf16.mxu0 %v5265
        %6029 = vmatpush1.bf16.msra.mxu0 %v5264
        %6030 = vmatprep.subr.bf16.mxu0 %v5272
        %6031 = vmatpush1.bf16.msra.mxu0 %v5271
        %6032 = vmatprep.subr.bf16.mxu0 %v5279
        %6033 = vmatpush1.bf16.msra.mxu0 %v5278
        %6034 = vmatprep.subr.bf16.mxu0 %v5286
        %6035 = vmatpush1.bf16.msra.mxu0 %v5285
        %6036 = vmatprep.subr.bf16.mxu0 %v5293
        %6037 = vmatpush1.bf16.msra.mxu0 %v5292
        %6038 = vmatprep.subr.bf16.mxu0 %v5300
        %6039 = vmatpush1.bf16.msra.mxu0 %v5299
        %6040 = vmatprep.subr.bf16.mxu0 %v5307
        %6041 = vmatpush1.bf16.msra.mxu0 %v5306
        %6042 = vmatprep.subr.bf16.mxu0 %v5314
        %6043 = vmatpush1.bf16.msra.mxu0 %v5313
        %6044 = vmatprep.subr.bf16.mxu0 %v5321
        %6045 = vmatpush1.bf16.msra.mxu0 %v5320
        %6046 = vmatprep.subr.bf16.mxu0 %v5328
        %6047 = vmatpush1.bf16.msra.mxu0 %v5327
        %6048 = vmatprep.mubr.bf16.mxu0 %v3604
        %6049 = vmatmul.mubr.bf16.gmra.mrb[0].mxu0 %v3603
        %v6050 = vpop.f32.mrb[0].mxu0
        %v6051 = vadd.f32 %v6010, %v6050
        %v6052 = vpop.f32.mrb[0].mxu0
        %v6053 = vadd.f32 %v6012, %v6052
        %v6054 = vpop.f32.mrb[0].mxu0
        %v6055 = vpop.f32.mrb[0].mxu0
        %6056 = vdwg.mxu0
        %6057 = vmatprep.subr.bf16.mxu0 %v5335
        %6058 = vmatpush1.bf16.msra.mxu0 %v5334
        %6059 = vmatprep.subr.bf16.mxu0 %v5342
        %6060 = vmatpush1.bf16.msra.mxu0 %v5341
        %6061 = vmatprep.subr.bf16.mxu0 %v5349
        %6062 = vmatpush1.bf16.msra.mxu0 %v5348
        %6063 = vmatprep.subr.bf16.mxu0 %v5356
        %6064 = vmatpush1.bf16.msra.mxu0 %v5355
        %6065 = vmatprep.subr.bf16.mxu0 %v5363
        %6066 = vmatpush1.bf16.msra.mxu0 %v5362
        %6067 = vmatprep.subr.bf16.mxu0 %v5370
        %6068 = vmatpush1.bf16.msra.mxu0 %v5369
        %6069 = vmatprep.subr.bf16.mxu0 %v5377
        %6070 = vmatpush1.bf16.msra.mxu0 %v5376
        %6071 = vmatprep.subr.bf16.mxu0 %v5384
        %6072 = vmatpush1.bf16.msra.mxu0 %v5383
        %6073 = vmatprep.subr.bf16.mxu0 %v5391
        %6074 = vmatpush1.bf16.msra.mxu0 %v5390
        %6075 = vmatprep.subr.bf16.mxu0 %v5398
        %6076 = vmatpush1.bf16.msra.mxu0 %v5397
        %6077 = vmatprep.subr.bf16.mxu0 %v5405
        %6078 = vmatpush1.bf16.msra.mxu0 %v5404
        %6079 = vmatprep.subr.bf16.mxu0 %v5412
        %6080 = vmatpush1.bf16.msra.mxu0 %v5411
        %6081 = vmatprep.subr.bf16.mxu0 %v5419
        %6082 = vmatpush1.bf16.msra.mxu0 %v5418
        %6083 = vmatprep.subr.bf16.mxu0 %v5426
        %6084 = vmatpush1.bf16.msra.mxu0 %v5425
        %6085 = vmatprep.subr.bf16.mxu0 %v5433
        %6086 = vmatpush1.bf16.msra.mxu0 %v5432
        %6087 = vmatprep.subr.bf16.mxu0 %v5440
        %6088 = vmatpush1.bf16.msra.mxu0 %v5439
        %6089 = vmatprep.mubr.bf16.mxu0 %v3606
        %6090 = vmatmul.mubr.bf16.gmra.mrb[0].mxu0 %v3605
        %v6091 = vpop.f32.mrb[0].mxu0
        %v6092 = vadd.f32 %v6051, %v6091
        %v6093 = vpop.f32.mrb[0].mxu0
        %v6094 = vadd.f32 %v6053, %v6093
        %v6095 = vpop.f32.mrb[0].mxu0
        %v6096 = vpop.f32.mrb[0].mxu0
        %6097 = vdwg.mxu0
        %6098 = vmatprep.subr.bf16.mxu0 %v5447
        %6099 = vmatpush1.bf16.msra.mxu0 %v5446
        %6100 = vmatprep.subr.bf16.mxu0 %v5454
        %6101 = vmatpush1.bf16.msra.mxu0 %v5453
        %6102 = vmatprep.subr.bf16.mxu0 0
        %6103 = vmatpush1.bf16.msra.mxu0 0
        %6104 = vmatprep.subr.bf16.mxu0 0
        %6105 = vmatpush1.bf16.msra.mxu0 0
        %6106 = vmatprep.subr.bf16.mxu0 0
        %6107 = vmatpush1.bf16.msra.mxu0 0
        %6108 = vmatprep.subr.bf16.mxu0 0
        %6109 = vmatpush1.bf16.msra.mxu0 0
        %6110 = vmatprep.subr.bf16.mxu0 0
        %6111 = vmatpush1.bf16.msra.mxu0 0
        %6112 = vmatprep.subr.bf16.mxu0 0
        %6113 = vmatpush1.bf16.msra.mxu0 0
        %6114 = vmatprep.subr.bf16.mxu0 0
        %6115 = vmatpush1.bf16.msra.mxu0 0
        %6116 = vmatprep.subr.bf16.mxu0 0
        %6117 = vmatpush1.bf16.msra.mxu0 0
        %6118 = vmatprep.subr.bf16.mxu0 0
        %6119 = vmatpush1.bf16.msra.mxu0 0
        %6120 = vmatprep.subr.bf16.mxu0 0
        %6121 = vmatpush1.bf16.msra.mxu0 0
        %6122 = vmatprep.subr.bf16.mxu0 0
        %6123 = vmatpush1.bf16.msra.mxu0 0
        %6124 = vmatprep.subr.bf16.mxu0 0
        %6125 = vmatpush1.bf16.msra.mxu0 0
        %6126 = vmatprep.subr.bf16.mxu0 0
        %6127 = vmatpush1.bf16.msra.mxu0 0
        %6128 = vmatprep.subr.bf16.mxu0 0
        %6129 = vmatpush1.bf16.msra.mxu0 0
        %6130 = vmatprep.mubr.bf16.mxu0 0
        %6131 = vmatmul.mubr.bf16.gmra.mrb[0].mxu0 %v5809
        %v6132 = vpop.f32.mrb[0].mxu0
        %v6133 = vadd.f32 %v6092, %v6132
        %v6134 = vpop.f32.mrb[0].mxu0
        %v6135 = vadd.f32 %v6094, %v6134
        %v6136 = vpop.f32.mrb[0].mxu0
        %v6137 = vpop.f32.mrb[0].mxu0
        %6138 = vdwg.mxu0
        %6139 = vmatprep.subr.bf16.mxu0 %v5113
        %6140 = vmatpush1.bf16.msra.mxu0 %v5112
        %6141 = vmatprep.subr.bf16.mxu0 %v5120
        %6142 = vmatpush1.bf16.msra.mxu0 %v5119
        %6143 = vmatprep.subr.bf16.mxu0 %v5127
        %6144 = vmatpush1.bf16.msra.mxu0 %v5126
        %6145 = vmatprep.subr.bf16.mxu0 %v5134
        %6146 = vmatpush1.bf16.msra.mxu0 %v5133
        %6147 = vmatprep.subr.bf16.mxu0 %v5141
        %6148 = vmatpush1.bf16.msra.mxu0 %v5140
        %6149 = vmatprep.subr.bf16.mxu0 %v5148
        %6150 = vmatpush1.bf16.msra.mxu0 %v5147
        %6151 = vmatprep.subr.bf16.mxu0 %v5155
        %6152 = vmatpush1.bf16.msra.mxu0 %v5154
        %6153 = vmatprep.subr.bf16.mxu0 %v5162
        %6154 = vmatpush1.bf16.msra.mxu0 %v5161
        %6155 = vmatprep.subr.bf16.mxu0 %v5169
        %6156 = vmatpush1.bf16.msra.mxu0 %v5168
        %6157 = vmatprep.subr.bf16.mxu0 %v5176
        %6158 = vmatpush1.bf16.msra.mxu0 %v5175
        %6159 = vmatprep.subr.bf16.mxu0 %v5183
        %6160 = vmatpush1.bf16.msra.mxu0 %v5182
        %6161 = vmatprep.subr.bf16.mxu0 %v5190
        %6162 = vmatpush1.bf16.msra.mxu0 %v5189
        %6163 = vmatprep.subr.bf16.mxu0 %v5197
        %6164 = vmatpush1.bf16.msra.mxu0 %v5196
        %6165 = vmatprep.subr.bf16.mxu0 %v5204
        %6166 = vmatpush1.bf16.msra.mxu0 %v5203
        %6167 = vmatprep.subr.bf16.mxu0 %v5211
        %6168 = vmatpush1.bf16.msra.mxu0 %v5210
        %6169 = vmatprep.subr.bf16.mxu0 %v5218
        %6170 = vmatpush1.bf16.msra.mxu0 %v5217
        %6171 = vmatprep.mubr.bf16.mxu0 %v3602
        %6172 = vmatmul.mubr.bf16.gmra.mrb[0].mxu0 %v3601
        %v6173 = vpop.f32.mrb[0].mxu0
        %v6174 = vadd.f32 0.0, %v6173
        %v6175 = vpop.f32.mrb[0].mxu0
        %v6176 = vadd.f32 0.0, %v6175
        %v6177 = vpop.f32.mrb[0].mxu0
        %v6178 = vpop.f32.mrb[0].mxu0
        %6179 = vdwg.mxu0
        %6180 = vmatprep.subr.bf16.mxu0 %v5225
        %6181 = vmatpush1.bf16.msra.mxu0 %v5224
        %6182 = vmatprep.subr.bf16.mxu0 %v5232
        %6183 = vmatpush1.bf16.msra.mxu0 %v5231
        %6184 = vmatprep.subr.bf16.mxu0 %v5239
        %6185 = vmatpush1.bf16.msra.mxu0 %v5238
        %6186 = vmatprep.subr.bf16.mxu0 %v5246
        %6187 = vmatpush1.bf16.msra.mxu0 %v5245
        %6188 = vmatprep.subr.bf16.mxu0 %v5253
        %6189 = vmatpush1.bf16.msra.mxu0 %v5252
        %6190 = vmatprep.subr.bf16.mxu0 %v5260
        %6191 = vmatpush1.bf16.msra.mxu0 %v5259
        %6192 = vmatprep.subr.bf16.mxu0 %v5267
        %6193 = vmatpush1.bf16.msra.mxu0 %v5266
        %6194 = vmatprep.subr.bf16.mxu0 %v5274
        %6195 = vmatpush1.bf16.msra.mxu0 %v5273
        %6196 = vmatprep.subr.bf16.mxu0 %v5281
        %6197 = vmatpush1.bf16.msra.mxu0 %v5280
        %6198 = vmatprep.subr.bf16.mxu0 %v5288
        %6199 = vmatpush1.bf16.msra.mxu0 %v5287
        %6200 = vmatprep.subr.bf16.mxu0 %v5295
        %6201 = vmatpush1.bf16.msra.mxu0 %v5294
        %6202 = vmatprep.subr.bf16.mxu0 %v5302
        %6203 = vmatpush1.bf16.msra.mxu0 %v5301
        %6204 = vmatprep.subr.bf16.mxu0 %v5309
        %6205 = vmatpush1.bf16.msra.mxu0 %v5308
        %6206 = vmatprep.subr.bf16.mxu0 %v5316
        %6207 = vmatpush1.bf16.msra.mxu0 %v5315
        %6208 = vmatprep.subr.bf16.mxu0 %v5323
        %6209 = vmatpush1.bf16.msra.mxu0 %v5322
        %6210 = vmatprep.subr.bf16.mxu0 %v5330
        %6211 = vmatpush1.bf16.msra.mxu0 %v5329
        %6212 = vmatprep.mubr.bf16.mxu0 %v3604
        %6213 = vmatmul.mubr.bf16.gmra.mrb[0].mxu0 %v3603
        %v6214 = vpop.f32.mrb[0].mxu0
        %v6215 = vadd.f32 %v6174, %v6214
        %v6216 = vpop.f32.mrb[0].mxu0
        %v6217 = vadd.f32 %v6176, %v6216
        %v6218 = vpop.f32.mrb[0].mxu0
        %v6219 = vpop.f32.mrb[0].mxu0
        %6220 = vdwg.mxu0
        %6221 = vmatprep.subr.bf16.mxu0 %v5337
        %6222 = vmatpush1.bf16.msra.mxu0 %v5336
        %6223 = vmatprep.subr.bf16.mxu0 %v5344
        %6224 = vmatpush1.bf16.msra.mxu0 %v5343
        %6225 = vmatprep.subr.bf16.mxu0 %v5351
        %6226 = vmatpush1.bf16.msra.mxu0 %v5350
        %6227 = vmatprep.subr.bf16.mxu0 %v5358
        %6228 = vmatpush1.bf16.msra.mxu0 %v5357
        %6229 = vmatprep.subr.bf16.mxu0 %v5365
        %6230 = vmatpush1.bf16.msra.mxu0 %v5364
        %6231 = vmatprep.subr.bf16.mxu0 %v5372
        %6232 = vmatpush1.bf16.msra.mxu0 %v5371
        %6233 = vmatprep.subr.bf16.mxu0 %v5379
        %6234 = vmatpush1.bf16.msra.mxu0 %v5378
        %6235 = vmatprep.subr.bf16.mxu0 %v5386
        %6236 = vmatpush1.bf16.msra.mxu0 %v5385
        %6237 = vmatprep.subr.bf16.mxu0 %v5393
        %6238 = vmatpush1.bf16.msra.mxu0 %v5392
        %6239 = vmatprep.subr.bf16.mxu0 %v5400
        %6240 = vmatpush1.bf16.msra.mxu0 %v5399
        %6241 = vmatprep.subr.bf16.mxu0 %v5407
        %6242 = vmatpush1.bf16.msra.mxu0 %v5406
        %6243 = vmatprep.subr.bf16.mxu0 %v5414
        %6244 = vmatpush1.bf16.msra.mxu0 %v5413
        %6245 = vmatprep.subr.bf16.mxu0 %v5421
        %6246 = vmatpush1.bf16.msra.mxu0 %v5420
        %6247 = vmatprep.subr.bf16.mxu0 %v5428
        %6248 = vmatpush1.bf16.msra.mxu0 %v5427
        %6249 = vmatprep.subr.bf16.mxu0 %v5435
        %6250 = vmatpush1.bf16.msra.mxu0 %v5434
        %6251 = vmatprep.subr.bf16.mxu0 %v5442
        %6252 = vmatpush1.bf16.msra.mxu0 %v5441
        %6253 = vmatprep.mubr.bf16.mxu0 %v3606
        %6254 = vmatmul.mubr.bf16.gmra.mrb[0].mxu0 %v3605
        %v6255 = vpop.f32.mrb[0].mxu0
        %v6256 = vadd.f32 %v6215, %v6255
        %v6257 = vpop.f32.mrb[0].mxu0
        %v6258 = vadd.f32 %v6217, %v6257
        %v6259 = vpop.f32.mrb[0].mxu0
        %v6260 = vpop.f32.mrb[0].mxu0
        %6261 = vdwg.mxu0
        %6262 = vmatprep.subr.bf16.mxu0 %v5449
        %6263 = vmatpush1.bf16.msra.mxu0 %v5448
        %6264 = vmatprep.subr.bf16.mxu0 %v5456
        %6265 = vmatpush1.bf16.msra.mxu0 %v5455
        %6266 = vmatprep.subr.bf16.mxu0 0
        %6267 = vmatpush1.bf16.msra.mxu0 0
        %6268 = vmatprep.subr.bf16.mxu0 0
        %6269 = vmatpush1.bf16.msra.mxu0 0
        %6270 = vmatprep.subr.bf16.mxu0 0
        %6271 = vmatpush1.bf16.msra.mxu0 0
        %6272 = vmatprep.subr.bf16.mxu0 0
        %6273 = vmatpush1.bf16.msra.mxu0 0
        %6274 = vmatprep.subr.bf16.mxu0 0
        %6275 = vmatpush1.bf16.msra.mxu0 0
        %6276 = vmatprep.subr.bf16.mxu0 0
        %6277 = vmatpush1.bf16.msra.mxu0 0
        %6278 = vmatprep.subr.bf16.mxu0 0
        %6279 = vmatpush1.bf16.msra.mxu0 0
        %6280 = vmatprep.subr.bf16.mxu0 0
        %6281 = vmatpush1.bf16.msra.mxu0 0
        %6282 = vmatprep.subr.bf16.mxu0 0
        %6283 = vmatpush1.bf16.msra.mxu0 0
        %6284 = vmatprep.subr.bf16.mxu0 0
        %6285 = vmatpush1.bf16.msra.mxu0 0
        %6286 = vmatprep.subr.bf16.mxu0 0
        %6287 = vmatpush1.bf16.msra.mxu0 0
        %6288 = vmatprep.subr.bf16.mxu0 0
        %6289 = vmatpush1.bf16.msra.mxu0 0
        %6290 = vmatprep.subr.bf16.mxu0 0
        %6291 = vmatpush1.bf16.msra.mxu0 0
        %6292 = vmatprep.subr.bf16.mxu0 0
        %6293 = vmatpush1.bf16.msra.mxu0 0
        %6294 = vmatprep.mubr.bf16.mxu0 0
        %6295 = vmatmul.mubr.bf16.gmra.mrb[0].mxu0 %v5809
        %v6296 = vpop.f32.mrb[0].mxu0
        %v6297 = vadd.f32 %v6256, %v6296
        %v6298 = vpop.f32.mrb[0].mxu0
        %v6299 = vadd.f32 %v6258, %v6298
        %v6300 = vpop.f32.mrb[0].mxu0
        %v6301 = vpop.f32.mrb[0].mxu0
        %6302 = vdwg.mxu0
        %6303 = vmatprep.subr.bf16.mxu0 0
        %6304 = vmatpush1.bf16.msra.mxu0 %v5114
        %6305 = vmatprep.subr.bf16.mxu0 0
        %6306 = vmatpush1.bf16.msra.mxu0 %v5121
        %6307 = vmatprep.subr.bf16.mxu0 0
        %6308 = vmatpush1.bf16.msra.mxu0 %v5128
        %6309 = vmatprep.subr.bf16.mxu0 0
        %6310 = vmatpush1.bf16.msra.mxu0 %v5135
        %6311 = vmatprep.subr.bf16.mxu0 0
        %6312 = vmatpush1.bf16.msra.mxu0 %v5142
        %6313 = vmatprep.subr.bf16.mxu0 0
        %6314 = vmatpush1.bf16.msra.mxu0 %v5149
        %6315 = vmatprep.subr.bf16.mxu0 0
        %6316 = vmatpush1.bf16.msra.mxu0 %v5156
        %6317 = vmatprep.subr.bf16.mxu0 0
        %6318 = vmatpush1.bf16.msra.mxu0 %v5163
        %6319 = vmatprep.subr.bf16.mxu0 0
        %6320 = vmatpush1.bf16.msra.mxu0 %v5170
        %6321 = vmatprep.subr.bf16.mxu0 0
        %6322 = vmatpush1.bf16.msra.mxu0 %v5177
        %6323 = vmatprep.subr.bf16.mxu0 0
        %6324 = vmatpush1.bf16.msra.mxu0 %v5184
        %6325 = vmatprep.subr.bf16.mxu0 0
        %6326 = vmatpush1.bf16.msra.mxu0 %v5191
        %6327 = vmatprep.subr.bf16.mxu0 0
        %6328 = vmatpush1.bf16.msra.mxu0 %v5198
        %6329 = vmatprep.subr.bf16.mxu0 0
        %6330 = vmatpush1.bf16.msra.mxu0 %v5205
        %6331 = vmatprep.subr.bf16.mxu0 0
        %6332 = vmatpush1.bf16.msra.mxu0 %v5212
        %6333 = vmatprep.subr.bf16.mxu0 0
        %6334 = vmatpush1.bf16.msra.mxu0 %v5219
        %6335 = vmatprep.mubr.bf16.mxu0 %v3602
        %6336 = vmatmul.mubr.bf16.gmra.mrb[0].mxu0 %v3601
        %v6337 = vpop.f32.mrb[0].mxu0
        %v6338 = vadd.f32 0.0, %v6337
        %v6339 = vpop.f32.mrb[0].mxu0
        %v6340 = vpop.f32.mrb[0].mxu0
        %v6341 = vpop.f32.mrb[0].mxu0
        %6342 = vdwg.mxu0
        %6343 = vmatprep.subr.bf16.mxu0 0
        %6344 = vmatpush1.bf16.msra.mxu0 %v5226
        %6345 = vmatprep.subr.bf16.mxu0 0
        %6346 = vmatpush1.bf16.msra.mxu0 %v5233
        %6347 = vmatprep.subr.bf16.mxu0 0
        %6348 = vmatpush1.bf16.msra.mxu0 %v5240
        %6349 = vmatprep.subr.bf16.mxu0 0
        %6350 = vmatpush1.bf16.msra.mxu0 %v5247
        %6351 = vmatprep.subr.bf16.mxu0 0
        %6352 = vmatpush1.bf16.msra.mxu0 %v5254
        %6353 = vmatprep.subr.bf16.mxu0 0
        %6354 = vmatpush1.bf16.msra.mxu0 %v5261
        %6355 = vmatprep.subr.bf16.mxu0 0
        %6356 = vmatpush1.bf16.msra.mxu0 %v5268
        %6357 = vmatprep.subr.bf16.mxu0 0
        %6358 = vmatpush1.bf16.msra.mxu0 %v5275
        %6359 = vmatprep.subr.bf16.mxu0 0
        %6360 = vmatpush1.bf16.msra.mxu0 %v5282
        %6361 = vmatprep.subr.bf16.mxu0 0
        %6362 = vmatpush1.bf16.msra.mxu0 %v5289
        %6363 = vmatprep.subr.bf16.mxu0 0
        %6364 = vmatpush1.bf16.msra.mxu0 %v5296
        %6365 = vmatprep.subr.bf16.mxu0 0
        %6366 = vmatpush1.bf16.msra.mxu0 %v5303
        %6367 = vmatprep.subr.bf16.mxu0 0
        %6368 = vmatpush1.bf16.msra.mxu0 %v5310
        %6369 = vmatprep.subr.bf16.mxu0 0
        %6370 = vmatpush1.bf16.msra.mxu0 %v5317
        %6371 = vmatprep.subr.bf16.mxu0 0
        %6372 = vmatpush1.bf16.msra.mxu0 %v5324
        %6373 = vmatprep.subr.bf16.mxu0 0
        %6374 = vmatpush1.bf16.msra.mxu0 %v5331
        %6375 = vmatprep.mubr.bf16.mxu0 %v3604
        %6376 = vmatmul.mubr.bf16.gmra.mrb[0].mxu0 %v3603
        %v6377 = vpop.f32.mrb[0].mxu0
        %v6378 = vadd.f32 %v6338, %v6377
        %v6379 = vpop.f32.mrb[0].mxu0
        %v6380 = vpop.f32.mrb[0].mxu0
        %v6381 = vpop.f32.mrb[0].mxu0
        %6382 = vdwg.mxu0
        %6383 = vmatprep.subr.bf16.mxu0 0
        %6384 = vmatpush1.bf16.msra.mxu0 %v5338
        %6385 = vmatprep.subr.bf16.mxu0 0
        %6386 = vmatpush1.bf16.msra.mxu0 %v5345
        %6387 = vmatprep.subr.bf16.mxu0 0
        %6388 = vmatpush1.bf16.msra.mxu0 %v5352
        %6389 = vmatprep.subr.bf16.mxu0 0
        %6390 = vmatpush1.bf16.msra.mxu0 %v5359
        %6391 = vmatprep.subr.bf16.mxu0 0
        %6392 = vmatpush1.bf16.msra.mxu0 %v5366
        %6393 = vmatprep.subr.bf16.mxu0 0
        %6394 = vmatpush1.bf16.msra.mxu0 %v5373
        %6395 = vmatprep.subr.bf16.mxu0 0
        %6396 = vmatpush1.bf16.msra.mxu0 %v5380
        %6397 = vmatprep.subr.bf16.mxu0 0
        %6398 = vmatpush1.bf16.msra.mxu0 %v5387
        %6399 = vmatprep.subr.bf16.mxu0 0
        %6400 = vmatpush1.bf16.msra.mxu0 %v5394
        %6401 = vmatprep.subr.bf16.mxu0 0
        %6402 = vmatpush1.bf16.msra.mxu0 %v5401
        %6403 = vmatprep.subr.bf16.mxu0 0
        %6404 = vmatpush1.bf16.msra.mxu0 %v5408
        %6405 = vmatprep.subr.bf16.mxu0 0
        %6406 = vmatpush1.bf16.msra.mxu0 %v5415
        %6407 = vmatprep.subr.bf16.mxu0 0
        %6408 = vmatpush1.bf16.msra.mxu0 %v5422
        %6409 = vmatprep.subr.bf16.mxu0 0
        %6410 = vmatpush1.bf16.msra.mxu0 %v5429
        %6411 = vmatprep.subr.bf16.mxu0 0
        %6412 = vmatpush1.bf16.msra.mxu0 %v5436
        %6413 = vmatprep.subr.bf16.mxu0 0
        %6414 = vmatpush1.bf16.msra.mxu0 %v5443
        %6415 = vmatprep.mubr.bf16.mxu0 %v3606
        %6416 = vmatmul.mubr.bf16.gmra.mrb[0].mxu0 %v3605
        %v6417 = vpop.f32.mrb[0].mxu0
        %v6418 = vadd.f32 %v6378, %v6417
        %v6419 = vpop.f32.mrb[0].mxu0
        %v6420 = vpop.f32.mrb[0].mxu0
        %v6421 = vpop.f32.mrb[0].mxu0
        %6422 = vdwg.mxu0
        %6423 = vmatprep.subr.bf16.mxu0 0
        %6424 = vmatpush1.bf16.msra.mxu0 %v5450
        %6425 = vmatprep.subr.bf16.mxu0 0
        %6426 = vmatpush1.bf16.msra.mxu0 %v5457
        %6427 = vmatprep.subr.bf16.mxu0 0
        %6428 = vmatpush1.bf16.msra.mxu0 0
        %6429 = vmatprep.subr.bf16.mxu0 0
        %6430 = vmatpush1.bf16.msra.mxu0 0
        %6431 = vmatprep.subr.bf16.mxu0 0
        %6432 = vmatpush1.bf16.msra.mxu0 0
        %6433 = vmatprep.subr.bf16.mxu0 0
        %6434 = vmatpush1.bf16.msra.mxu0 0
        %6435 = vmatprep.subr.bf16.mxu0 0
        %6436 = vmatpush1.bf16.msra.mxu0 0
        %6437 = vmatprep.subr.bf16.mxu0 0
        %6438 = vmatpush1.bf16.msra.mxu0 0
        %6439 = vmatprep.subr.bf16.mxu0 0
        %6440 = vmatpush1.bf16.msra.mxu0 0
        %6441 = vmatprep.subr.bf16.mxu0 0
        %6442 = vmatpush1.bf16.msra.mxu0 0
        %6443 = vmatprep.subr.bf16.mxu0 0
        %6444 = vmatpush1.bf16.msra.mxu0 0
        %6445 = vmatprep.subr.bf16.mxu0 0
        %6446 = vmatpush1.bf16.msra.mxu0 0
        %6447 = vmatprep.subr.bf16.mxu0 0
        %6448 = vmatpush1.bf16.msra.mxu0 0
        %6449 = vmatprep.subr.bf16.mxu0 0
        %6450 = vmatpush1.bf16.msra.mxu0 0
        %6451 = vmatprep.subr.bf16.mxu0 0
        %6452 = vmatpush1.bf16.msra.mxu0 0
        %6453 = vmatprep.subr.bf16.mxu0 0
        %6454 = vmatpush1.bf16.msra.mxu0 0
        %6455 = vmatprep.mubr.bf16.mxu0 0
        %6456 = vmatmul.mubr.bf16.gmra.mrb[0].mxu0 %v5809
        %v6457 = vpop.f32.mrb[0].mxu0
        %v6458 = vadd.f32 %v6418, %v6457
        %v6459 = vpop.f32.mrb[0].mxu0
        %v6460 = vpop.f32.mrb[0].mxu0
        %v6461 = vpop.f32.mrb[0].mxu0
        %6462 = vdwg.mxu0
        %v6463 = vrot.slane %v5969, 4
        %v6464 = vadd.f32 %v5969, %v6463
        %v6465 = vrot.slane %v6464, 2
        %v6466 = vadd.f32 %v6464, %v6465
        %v6467 = vrot.slane %v6466, 1
        %v6468 = vadd.f32 %v6466, %v6467
        %v6469 = vrot.slane %v5971, 4
        %v6470 = vadd.f32 %v5971, %v6469
        %v6471 = vrot.slane %v6470, 2
        %v6472 = vadd.f32 %v6470, %v6471
        %v6473 = vrot.slane %v6472, 1
        %v6474 = vadd.f32 %v6472, %v6473
        %v6475 = vrot.slane %v6133, 4
        %v6476 = vadd.f32 %v6133, %v6475
        %v6477 = vrot.slane %v6476, 2
        %v6478 = vadd.f32 %v6476, %v6477
        %v6479 = vrot.slane %v6478, 1
        %v6480 = vadd.f32 %v6478, %v6479
        %v6481 = vrot.slane %v6135, 4
        %v6482 = vadd.f32 %v6135, %v6481
        %v6483 = vrot.slane %v6482, 2
        %v6484 = vadd.f32 %v6482, %v6483
        %v6485 = vrot.slane %v6484, 1
        %v6486 = vadd.f32 %v6484, %v6485
        %v6487 = vrot.slane %v6297, 4
        %v6488 = vadd.f32 %v6297, %v6487
        %v6489 = vrot.slane %v6488, 2
        %v6490 = vadd.f32 %v6488, %v6489
        %v6491 = vrot.slane %v6490, 1
        %v6492 = vadd.f32 %v6490, %v6491
        %v6493 = vrot.slane %v6299, 4
        %v6494 = vadd.f32 %v6299, %v6493
        %v6495 = vrot.slane %v6494, 2
        %v6496 = vadd.f32 %v6494, %v6495
        %v6497 = vrot.slane %v6496, 1
        %v6498 = vadd.f32 %v6496, %v6497
        %v6499 = vsel %vm2609, %v6458, 0.0
        %v6500 = vrot.slane %v6499, 4
        %v6501 = vadd.f32 %v6499, %v6500
        %v6502 = vrot.slane %v6501, 2
        %v6503 = vadd.f32 %v6501, %v6502
        %v6504 = vrot.slane %v6503, 1
        %v6505 = vadd.f32 %v6503, %v6504
        %v6506 = vmul.f32 %v6468, %v3308
        %v6507 = vmul.f32 %v6474, %v3308
        %v6508 = vmul.f32 %v6480, %v3308
        %v6509 = vmul.f32 %v6486, %v3308
        %v6510 = vmul.f32 %v6492, %v3308
        %v6511 = vmul.f32 %v6498, %v3308
        %v6512 = vmul.f32 %v6505, %v3308
        %v6513 = vmul.f32 %v5969, %v5969
        %v6514 = vmul.f32 %v5971, %v5971
        %v6515 = vmul.f32 %v6133, %v6133
        %v6516 = vmul.f32 %v6135, %v6135
        %v6517 = vmul.f32 %v6297, %v6297
        %v6518 = vmul.f32 %v6299, %v6299
        %v6519 = vmul.f32 %v6458, %v6458
        %v6520 = vrot.slane %v6513, 4
        %v6521 = vadd.f32 %v6513, %v6520
        %v6522 = vrot.slane %v6521, 2
        %v6523 = vadd.f32 %v6521, %v6522
        %v6524 = vrot.slane %v6523, 1
        %v6525 = vadd.f32 %v6523, %v6524
        %v6526 = vrot.slane %v6514, 4
        %v6527 = vadd.f32 %v6514, %v6526
        %v6528 = vrot.slane %v6527, 2
        %v6529 = vadd.f32 %v6527, %v6528
        %v6530 = vrot.slane %v6529, 1
        %v6531 = vadd.f32 %v6529, %v6530
        %v6532 = vrot.slane %v6515, 4
        %v6533 = vadd.f32 %v6515, %v6532
        %v6534 = vrot.slane %v6533, 2
        %v6535 = vadd.f32 %v6533, %v6534
        %v6536 = vrot.slane %v6535, 1
        %v6537 = vadd.f32 %v6535, %v6536
        %v6538 = vrot.slane %v6516, 4
        %v6539 = vadd.f32 %v6516, %v6538
        %v6540 = vrot.slane %v6539, 2
        %v6541 = vadd.f32 %v6539, %v6540
        %v6542 = vrot.slane %v6541, 1
        %v6543 = vadd.f32 %v6541, %v6542
        %v6544 = vrot.slane %v6517, 4
        %v6545 = vadd.f32 %v6517, %v6544
        %v6546 = vrot.slane %v6545, 2
        %v6547 = vadd.f32 %v6545, %v6546
        %v6548 = vrot.slane %v6547, 1
        %v6549 = vadd.f32 %v6547, %v6548
        %v6550 = vrot.slane %v6518, 4
        %v6551 = vadd.f32 %v6518, %v6550
        %v6552 = vrot.slane %v6551, 2
        %v6553 = vadd.f32 %v6551, %v6552
        %v6554 = vrot.slane %v6553, 1
        %v6555 = vadd.f32 %v6553, %v6554
        %v6556 = vsel %vm2609, %v6519, 0.0
        %v6557 = vrot.slane %v6556, 4
        %v6558 = vadd.f32 %v6556, %v6557
        %v6559 = vrot.slane %v6558, 2
        %v6560 = vadd.f32 %v6558, %v6559
        %v6561 = vrot.slane %v6560, 1
        %v6562 = vadd.f32 %v6560, %v6561
        %v6563 = vmul.f32 %v6525, %v3308
        %v6564 = vmul.f32 %v6531, %v3308
        %v6565 = vmul.f32 %v6537, %v3308
        %v6566 = vmul.f32 %v6543, %v3308
        %v6567 = vmul.f32 %v6549, %v3308
        %v6568 = vmul.f32 %v6555, %v3308
        %v6569 = vmul.f32 %v6562, %v3308
        %v6570 = vmul.f32 %v6506, %v6506
        %v6571 = vmul.f32 %v6507, %v6507
        %v6572 = vmul.f32 %v6508, %v6508
        %v6573 = vmul.f32 %v6509, %v6509
        %v6574 = vmul.f32 %v6510, %v6510
        %v6575 = vmul.f32 %v6511, %v6511
        %v6576 = vmul.f32 %v6512, %v6512
        %v6577 = vsub.f32 %v6563, %v6570
        %v6578 = vsub.f32 %v6564, %v6571
        %v6579 = vsub.f32 %v6565, %v6572
        %v6580 = vsub.f32 %v6566, %v6573
        %v6581 = vsub.f32 %v6567, %v6574
        %v6582 = vsub.f32 %v6568, %v6575
        %v6583 = vsub.f32 %v6569, %v6576
        %v6584 = vadd.f32 %v6577, 1e-05
        %v6585 = vadd.f32 %v6578, 1e-05
        %v6586 = vadd.f32 %v6579, 1e-05
        %v6587 = vadd.f32 %v6580, 1e-05
        %v6588 = vadd.f32 %v6581, 1e-05
        %v6589 = vadd.f32 %v6582, 1e-05
        %v6590 = vadd.f32 %v6583, 1e-05
        %v6591 = vrsqrt.pop %v6584
        %v6592 = vrsqrt.pop %v6585
        %v6593 = vrsqrt.pop %v6586
        %v6594 = vrsqrt.pop %v6587
        %v6595 = vrsqrt.pop %v6588
        %v6596 = vrsqrt.pop %v6589
        %v6597 = vrsqrt.pop %v6590
        %v6605 = vcombine.low %v6591, %v6592
        %v6606 = vcombine.low %v6593, %v6594
        %v6607 = vcombine.low %v6595, %v6596
        %v6608 = vrot.slane %v6605, 6
        %v6609 = vrot.slane %v6606, 6
        %v6610 = vrot.slane %v6607, 6
        %v6611 = vrot.slane %v6597, 6
        %v6616 = vmul.f32 %v398, %v6608
        %v6617 = vmul.f32 %v399, %v6609
        %v6618 = vmul.f32 %v400, %v6610
        %v6619 = vmul.f32 %v401, %v6611
        %v6624 = vlaneseq
        %v6625 = vshrl.u32 %v6624, 7
        %v6626 = vsub.s32 2, %v6625
        %v6627 = vrot.slane %v6616, %v6626
        %v6628 = vlaneseq
        %v6629 = vshrl.u32 %v6628, 7
        %v6630 = vsub.s32 6, %v6629
        %v6631 = vrot.slane %v6616, %v6630
        %v6632 = vlaneseq
        %v6633 = vshrl.u32 %v6632, 7
        %v6634 = vsub.s32 2, %v6633
        %v6635 = vrot.slane %v6617, %v6634
        %v6636 = vlaneseq
        %v6637 = vshrl.u32 %v6636, 7
        %v6638 = vsub.s32 6, %v6637
        %v6639 = vrot.slane %v6617, %v6638
        %v6640 = vlaneseq
        %v6641 = vshrl.u32 %v6640, 7
        %v6642 = vsub.s32 2, %v6641
        %v6643 = vrot.slane %v6618, %v6642
        %v6644 = vlaneseq
        %v6645 = vshrl.u32 %v6644, 7
        %v6646 = vsub.s32 6, %v6645
        %v6647 = vrot.slane %v6618, %v6646
        %v6648 = vlaneseq
        %v6649 = vshrl.u32 %v6648, 7
        %v6650 = vsub.s32 2, %v6649
        %v6651 = vrot.slane %v6619, %v6650
        %v6659 = vmul.f32 %v6506, %v6627
        %v6660 = vmul.f32 %v6507, %v6631
        %v6661 = vmul.f32 %v6508, %v6635
        %v6662 = vmul.f32 %v6509, %v6639
        %v6663 = vmul.f32 %v6510, %v6643
        %v6664 = vmul.f32 %v6511, %v6647
        %v6665 = vmul.f32 %v6512, %v6651
        %v6673 = vcombine.low %v6659, %v6660
        %v6674 = vcombine.low %v6661, %v6662
        %v6675 = vcombine.low %v6663, %v6664
        %v6676 = vrot.slane %v6673, 5
        %v6677 = vrot.slane %v6674, 5
        %v6678 = vrot.slane %v6675, 5
        %v6679 = vrot.slane %v6665, 5
        %v6684 = vsub.f32 %v398, %v6676
        %v6685 = vsub.f32 %v399, %v6677
        %v6686 = vsub.f32 %v400, %v6678
        %v6687 = vsub.f32 %v401, %v6679
        %v6688 = vlaneseq
        %v6689 = vshrl.u32 %v6688, 7
        %v6690 = vsub.s32 2, %v6689
        %v6691 = vrot.slane %v6627, %v6690
        %v6692 = vlaneseq
        %v6693 = vshrl.u32 %v6692, 7
        %v6694 = vsub.s32 2, %v6693
        %v6695 = vrot.slane %v6631, %v6694
        %v6696 = vlaneseq
        %v6697 = vshrl.u32 %v6696, 7
        %v6698 = vsub.s32 2, %v6697
        %v6699 = vrot.slane %v6635, %v6698
        %v6700 = vlaneseq
        %v6701 = vshrl.u32 %v6700, 7
        %v6702 = vsub.s32 2, %v6701
        %v6703 = vrot.slane %v6639, %v6702
        %v6704 = vlaneseq
        %v6705 = vshrl.u32 %v6704, 7
        %v6706 = vsub.s32 2, %v6705
        %v6707 = vrot.slane %v6643, %v6706
        %v6708 = vlaneseq
        %v6709 = vshrl.u32 %v6708, 7
        %v6710 = vsub.s32 2, %v6709
        %v6711 = vrot.slane %v6647, %v6710
        %v6712 = vlaneseq
        %v6713 = vshrl.u32 %v6712, 7
        %v6714 = vsub.s32 2, %v6713
        %v6715 = vrot.slane %v6651, %v6714
        %v6716 = vmul.f32 %v5969, %v6691
        %v6717 = vmul.f32 %v5971, %v6695
        %v6718 = vmul.f32 %v6133, %v6699
        %v6719 = vmul.f32 %v6135, %v6703
        %v6720 = vmul.f32 %v6297, %v6707
        %v6721 = vmul.f32 %v6299, %v6711
        %v6722 = vmul.f32 %v6458, %v6715
        %v6727 = vlaneseq
        %v6728 = vshrl.u32 %v6727, 7
        %v6729 = vsub.s32 3, %v6728
        %v6730 = vrot.slane %v6684, %v6729
        %v6731 = vlaneseq
        %v6732 = vshrl.u32 %v6731, 7
        %v6733 = vsub.s32 7, %v6732
        %v6734 = vrot.slane %v6684, %v6733
        %v6735 = vlaneseq
        %v6736 = vshrl.u32 %v6735, 7
        %v6737 = vsub.s32 3, %v6736
        %v6738 = vrot.slane %v6685, %v6737
        %v6739 = vlaneseq
        %v6740 = vshrl.u32 %v6739, 7
        %v6741 = vsub.s32 7, %v6740
        %v6742 = vrot.slane %v6685, %v6741
        %v6743 = vlaneseq
        %v6744 = vshrl.u32 %v6743, 7
        %v6745 = vsub.s32 3, %v6744
        %v6746 = vrot.slane %v6686, %v6745
        %v6747 = vlaneseq
        %v6748 = vshrl.u32 %v6747, 7
        %v6749 = vsub.s32 7, %v6748
        %v6750 = vrot.slane %v6686, %v6749
        %v6751 = vlaneseq
        %v6752 = vshrl.u32 %v6751, 7
        %v6753 = vsub.s32 3, %v6752
        %v6754 = vrot.slane %v6687, %v6753
        %v6762 = vlaneseq
        %v6763 = vshrl.u32 %v6762, 7
        %v6764 = vsub.s32 3, %v6763
        %v6765 = vrot.slane %v6730, %v6764
        %v6766 = vlaneseq
        %v6767 = vshrl.u32 %v6766, 7
        %v6768 = vsub.s32 3, %v6767
        %v6769 = vrot.slane %v6734, %v6768
        %v6770 = vlaneseq
        %v6771 = vshrl.u32 %v6770, 7
        %v6772 = vsub.s32 3, %v6771
        %v6773 = vrot.slane %v6738, %v6772
        %v6774 = vlaneseq
        %v6775 = vshrl.u32 %v6774, 7
        %v6776 = vsub.s32 3, %v6775
        %v6777 = vrot.slane %v6742, %v6776
        %v6778 = vlaneseq
        %v6779 = vshrl.u32 %v6778, 7
        %v6780 = vsub.s32 3, %v6779
        %v6781 = vrot.slane %v6746, %v6780
        %v6782 = vlaneseq
        %v6783 = vshrl.u32 %v6782, 7
        %v6784 = vsub.s32 3, %v6783
        %v6785 = vrot.slane %v6750, %v6784
        %v6786 = vlaneseq
        %v6787 = vshrl.u32 %v6786, 7
        %v6788 = vsub.s32 3, %v6787
        %v6789 = vrot.slane %v6754, %v6788
        %v6790 = vadd.f32 %v6716, %v6765
        %v6791 = vadd.f32 %v6717, %v6769
        %v6792 = vadd.f32 %v6718, %v6773
        %v6793 = vadd.f32 %v6719, %v6777
        %v6794 = vadd.f32 %v6720, %v6781
        %v6795 = vadd.f32 %v6721, %v6785
        %v6796 = vadd.f32 %v6722, %v6789
        %v6797 = vmax.f32 %v6790, 0.0
        %v6798 = vmax.f32 %v6791, 0.0
        %v6799 = vmax.f32 %v6792, 0.0
        %v6800 = vmax.f32 %v6793, 0.0
        %v6801 = vmax.f32 %v6794, 0.0
        %v6802 = vmax.f32 %v6795, 0.0
        %v6803 = vmax.f32 %v6796, 0.0
        %v6804 = vadd.f32 %v391, %v6797
        %v6805 = vadd.f32 %v392, %v6798
        %v6806 = vadd.f32 %v393, %v6799
        %v6807 = vadd.f32 %v394, %v6800
        %v6808 = vadd.f32 %v395, %v6801
        %v6809 = vadd.f32 %v396, %v6802
        %v6810 = vadd.f32 %v397, %v6803
        %6811 = vst [vmem:[%s6] sm:$0xff] %v6804
        %6812 = vst [vmem:[%s6 + $0x8] sm:$0xff] %v6805
        %6813 = vst [vmem:[%s6 + $0x10] sm:$0xff] %v6806
        %6814 = vst [vmem:[%s6 + $0x18] sm:$0xff] %v6807
        %6815 = vst [vmem:[%s6 + $0x20] sm:$0xff] %v6808
        %6816 = vst [vmem:[%s6 + $0x28] sm:$0xff] %v6809
        %6817 = vst.msk [vmem:[%s6 + $0x30] sm:$0xff] %vm2609, %v6810
        %p6818 = scmp.eq.s32.totalorder %s27, 1
        // Predicated region
        $region65: #{rosenet_forward.1} parent=43 // pred_check
          %p6819 = pneg %p6818
        $region66: #{rosenet_forward.1} parent=43 // pred_check_branch
          %6821 = sbr.rel (%p6819) target = $region68
        $region67: #{rosenet_forward.1} parent=43 // pred_region
          %v6822 = vld [vmem:[%s6] sm:$0xff]
          %v6823 = vld [vmem:[%s6 + $0x8] sm:$0xff]
          %v6824 = vld [vmem:[%s6 + $0x10] sm:$0xff]
          %v6825 = vld [vmem:[%s6 + $0x18] sm:$0xff]
          %v6826 = vld [vmem:[%s6 + $0x20] sm:$0xff]
          %v6827 = vld [vmem:[%s6 + $0x28] sm:$0xff]
          %v6828 = vld [vmem:[%s6 + $0x30] sm:$0xff]
          %v6829 = vpack.c.bf16 %v6822, %v6822
          %v6830 = vpack.c.bf16 %v6823, %v6823
          %v6831 = vpack.c.bf16 %v6824, %v6824
          %v6832 = vpack.c.bf16 %v6825, %v6825
          %v6833 = vpack.c.bf16 %v6826, %v6826
          %v6834 = vpack.c.bf16 %v6827, %v6827
          %v6835 = vpack.c.bf16 %v6828, %v6828
          %v6836 = vld [vmem:[%s4] sm:$0xf]
          %v6837 = vld [vmem:[%s4 + $0x4] sm:$0xf]
          %v6838 = vld [vmem:[%s4 + $0x8] sm:$0xf]
          %v6839 = vld [vmem:[%s4 + $0xc] sm:$0xf]
          %v6840 = vld [vmem:[%s4 + $0x10] sm:$0xf]
          %v6841 = vld [vmem:[%s4 + $0x14] sm:$0xf]
          %v6842 = vld [vmem:[%s4 + $0x18] sm:$0xf]
          %v6843 = vld [vmem:[%s4 + $0x1c] sm:$0xf]
          %v6844 = vld [vmem:[%s4 + $0x20] sm:$0xf]
          %v6845 = vld [vmem:[%s4 + $0x24] sm:$0xf]
          %v6846 = vld [vmem:[%s4 + $0x28] sm:$0xf]
          %v6847 = vld [vmem:[%s4 + $0x2c] sm:$0xf]
          %v6848 = vld [vmem:[%s4 + $0x30] sm:$0xf]
          %v6849 = vld [vmem:[%s4 + $0x34] sm:$0xf]
          %v6850 = vld [vmem:[%s4 + $0x38] sm:$0xf]
          %v6851 = vld [vmem:[%s4 + $0x3c] sm:$0xf]
          %v6852 = vld [vmem:[%s4 + $0x40] sm:$0xf]
          %v6853 = vld [vmem:[%s4 + $0x44] sm:$0xf]
          %v6854 = vld [vmem:[%s4 + $0x48] sm:$0xf]
          %v6855 = vld [vmem:[%s4 + $0x4c] sm:$0xf]
          %v6856 = vld [vmem:[%s4 + $0x50] sm:$0xf]
          %v6857 = vld [vmem:[%s4 + $0x54] sm:$0xf]
          %v6858 = vld [vmem:[%s4 + $0x58] sm:$0xf]
          %v6859 = vld [vmem:[%s4 + $0x5c] sm:$0xf]
          %v6860 = vld [vmem:[%s4 + $0x60] sm:$0xf]
          %v6861 = vld [vmem:[%s4 + $0x64] sm:$0xf]
          %v6862 = vld [vmem:[%s4 + $0x68] sm:$0xf]
          %v6863 = vld [vmem:[%s4 + $0x6c] sm:$0xf]
          %v6864 = vld [vmem:[%s4 + $0x70] sm:$0xf]
          %v6865 = vld [vmem:[%s4 + $0x74] sm:$0xf]
          %v6866 = vld [vmem:[%s4 + $0x78] sm:$0xf]
          %v6867 = vld [vmem:[%s4 + $0x7c] sm:$0xf]
          %v6868 = vld [vmem:[%s4 + $0x80] sm:$0xf]
          %v6869 = vld [vmem:[%s4 + $0x84] sm:$0xf]
          %v6870 = vld [vmem:[%s4 + $0x88] sm:$0xf]
          %v6871 = vld [vmem:[%s4 + $0x8c] sm:$0xf]
          %v6872 = vld [vmem:[%s4 + $0x90] sm:$0xf]
          %v6873 = vld [vmem:[%s4 + $0x94] sm:$0xf]
          %v6874 = vld [vmem:[%s4 + $0x98] sm:$0xf]
          %v6875 = vld [vmem:[%s4 + $0x9c] sm:$0xf]
          %v6876 = vld [vmem:[%s4 + $0xa0] sm:$0xf]
          %v6877 = vld [vmem:[%s4 + $0xa4] sm:$0xf]
          %v6878 = vld [vmem:[%s4 + $0xa8] sm:$0xf]
          %v6879 = vld [vmem:[%s4 + $0xac] sm:$0xf]
          %v6880 = vld [vmem:[%s4 + $0xb0] sm:$0xf]
          %v6881 = vld [vmem:[%s4 + $0xb4] sm:$0xf]
          %v6882 = vld [vmem:[%s4 + $0xb8] sm:$0xf]
          %v6883 = vld [vmem:[%s4 + $0xbc] sm:$0xf]
          %v6884 = vld [vmem:[%s4 + $0xc0] sm:$0xf]
          %v6885 = vld [vmem:[%s4 + $0xc4] sm:$0xf]
          %v6886 = vld [vmem:[%s4 + $0xc8] sm:$0xf]
          %v6887 = vld [vmem:[%s4 + $0xcc] sm:$0xf]
          %v6888 = vld [vmem:[%s4 + $0xd0] sm:$0xf]
          %v6889 = vld [vmem:[%s4 + $0xd4] sm:$0xf]
          %v6890 = vld [vmem:[%s4 + $0xd8] sm:$0xf]
          %v6891 = vld [vmem:[%s4 + $0xdc] sm:$0xf]
          %v6892 = vld [vmem:[%s4 + $0xe0] sm:$0xf]
          %v6893 = vld [vmem:[%s4 + $0xe4] sm:$0xf]
          %v6894 = vld [vmem:[%s4 + $0xe8] sm:$0xf]
          %v6895 = vld [vmem:[%s4 + $0xec] sm:$0xf]
          %v6896 = vld [vmem:[%s4 + $0xf0] sm:$0xf]
          %v6897 = vld [vmem:[%s4 + $0xf4] sm:$0xf]
          %v6898 = vld [vmem:[%s4 + $0xf8] sm:$0xf]
          %v6899 = vld [vmem:[%s4 + $0xfc] sm:$0xf]
          %v6900 = vld [vmem:[%s4 + $0x100] sm:$0xf]
          %v6901 = vld [vmem:[%s4 + $0x104] sm:$0xf]
          %v6902 = vld [vmem:[%s4 + $0x108] sm:$0xf]
          %v6903 = vld [vmem:[%s4 + $0x10c] sm:$0xf]
          %v6904 = vld [vmem:[%s4 + $0x110] sm:$0xf]
          %v6905 = vld [vmem:[%s4 + $0x114] sm:$0xf]
          %v6906 = vld [vmem:[%s4 + $0x118] sm:$0xf]
          %v6907 = vld [vmem:[%s4 + $0x11c] sm:$0xf]
          %v6908 = vld [vmem:[%s4 + $0x120] sm:$0xf]
          %v6909 = vld [vmem:[%s4 + $0x124] sm:$0xf]
          %v6910 = vld [vmem:[%s4 + $0x128] sm:$0xf]
          %v6911 = vld [vmem:[%s4 + $0x12c] sm:$0xf]
          %v6912 = vld [vmem:[%s4 + $0x130] sm:$0xf]
          %v6913 = vld [vmem:[%s4 + $0x134] sm:$0xf]
          %v6914 = vld [vmem:[%s4 + $0x138] sm:$0xf]
          %v6915 = vld [vmem:[%s4 + $0x13c] sm:$0xf]
          %v6916 = vld [vmem:[%s4 + $0x140] sm:$0xf]
          %v6917 = vld [vmem:[%s4 + $0x144] sm:$0xf]
          %v6918 = vld [vmem:[%s4 + $0x148] sm:$0xf]
          %v6919 = vld [vmem:[%s4 + $0x14c] sm:$0xf]
          %v6920 = vld [vmem:[%s4 + $0x150] sm:$0xf]
          %v6921 = vld [vmem:[%s4 + $0x154] sm:$0xf]
          %v6922 = vld [vmem:[%s4 + $0x158] sm:$0xf]
          %v6923 = vld [vmem:[%s4 + $0x15c] sm:$0xf]
          %v6924 = vld [vmem:[%s4 + $0x160] sm:$0xf]
          %v6925 = vld [vmem:[%s4 + $0x164] sm:$0xf]
          %v6926 = vld [vmem:[%s4 + $0x168] sm:$0xf]
          %v6927 = vld [vmem:[%s4 + $0x16c] sm:$0xf]
          %v6928 = vld [vmem:[%s4 + $0x170] sm:$0xf]
          %v6929 = vld [vmem:[%s4 + $0x174] sm:$0xf]
          %v6930 = vld [vmem:[%s4 + $0x178] sm:$0xf]
          %v6931 = vld [vmem:[%s4 + $0x17c] sm:$0xf]
          %v6932 = vld [vmem:[%s4 + $0x180] sm:$0xf]
          %v6933 = vld [vmem:[%s4 + $0x184] sm:$0xf]
          %v6934 = vld [vmem:[%s4 + $0x188] sm:$0xf]
          %v6935 = vld [vmem:[%s4 + $0x18c] sm:$0xf]
          %v6936 = vld [vmem:[#allocation8] sm:$0x1]
          %v6938 = vlaneseq
          %v6939 = vshrl.u32 %v6938, 7
          %v6940 = vsub.s32 0, %v6939
          %v6941 = vrot.slane %v6936, %v6940
          %v7043 = vunpack.c.l.b16 %v6836
          %v7044 = vunpack.c.l.b16 %v6837
          %v7045 = vunpack.c.l.b16 %v6838
          %v7046 = vunpack.c.l.b16 %v6839
          %v7047 = vunpack.c.l.b16 %v6840
          %v7048 = vunpack.c.l.b16 %v6841
          %v7049 = vunpack.c.l.b16 %v6842
          %v7050 = vunpack.c.l.b16 %v6843
          %v7051 = vunpack.c.l.b16 %v6844
          %v7052 = vunpack.c.l.b16 %v6845
          %v7053 = vunpack.c.l.b16 %v6846
          %v7054 = vunpack.c.l.b16 %v6847
          %v7055 = vunpack.c.l.b16 %v6848
          %v7056 = vunpack.c.l.b16 %v6849
          %v7057 = vunpack.c.l.b16 %v6850
          %v7058 = vunpack.c.l.b16 %v6851
          %v7059 = vunpack.c.l.b16 %v6852
          %v7060 = vunpack.c.l.b16 %v6853
          %v7061 = vunpack.c.l.b16 %v6854
          %v7062 = vunpack.c.l.b16 %v6855
          %v7063 = vunpack.c.l.b16 %v6856
          %v7064 = vunpack.c.l.b16 %v6857
          %v7065 = vunpack.c.l.b16 %v6858
          %v7066 = vunpack.c.l.b16 %v6859
          %v7067 = vunpack.c.l.b16 %v6860
          %v7068 = vunpack.c.l.b16 %v6861
          %v7069 = vunpack.c.l.b16 %v6862
          %v7070 = vunpack.c.l.b16 %v6863
          %v7071 = vunpack.c.l.b16 %v6864
          %v7072 = vunpack.c.l.b16 %v6865
          %v7073 = vunpack.c.l.b16 %v6866
          %v7074 = vunpack.c.l.b16 %v6867
          %v7075 = vunpack.c.l.b16 %v6868
          %v7076 = vunpack.c.l.b16 %v6869
          %v7077 = vunpack.c.l.b16 %v6870
          %v7078 = vunpack.c.l.b16 %v6871
          %v7079 = vunpack.c.l.b16 %v6872
          %v7080 = vunpack.c.l.b16 %v6873
          %v7081 = vunpack.c.l.b16 %v6874
          %v7082 = vunpack.c.l.b16 %v6875
          %v7083 = vunpack.c.l.b16 %v6876
          %v7084 = vunpack.c.l.b16 %v6877
          %v7085 = vunpack.c.l.b16 %v6878
          %v7086 = vunpack.c.l.b16 %v6879
          %v7087 = vunpack.c.l.b16 %v6880
          %v7088 = vunpack.c.l.b16 %v6881
          %v7089 = vunpack.c.l.b16 %v6882
          %v7090 = vunpack.c.l.b16 %v6883
          %v7091 = vunpack.c.l.b16 %v6884
          %v7092 = vunpack.c.l.b16 %v6885
          %v7093 = vunpack.c.l.b16 %v6886
          %v7094 = vunpack.c.l.b16 %v6887
          %v7095 = vunpack.c.l.b16 %v6888
          %v7096 = vunpack.c.l.b16 %v6889
          %v7097 = vunpack.c.l.b16 %v6890
          %v7098 = vunpack.c.l.b16 %v6891
          %v7099 = vunpack.c.l.b16 %v6892
          %v7100 = vunpack.c.l.b16 %v6893
          %v7101 = vunpack.c.l.b16 %v6894
          %v7102 = vunpack.c.l.b16 %v6895
          %v7103 = vunpack.c.l.b16 %v6896
          %v7104 = vunpack.c.l.b16 %v6897
          %v7105 = vunpack.c.l.b16 %v6898
          %v7106 = vunpack.c.l.b16 %v6899
          %v7107 = vunpack.c.l.b16 %v6900
          %v7108 = vunpack.c.l.b16 %v6901
          %v7109 = vunpack.c.l.b16 %v6902
          %v7110 = vunpack.c.l.b16 %v6903
          %v7111 = vunpack.c.l.b16 %v6904
          %v7112 = vunpack.c.l.b16 %v6905
          %v7113 = vunpack.c.l.b16 %v6906
          %v7114 = vunpack.c.l.b16 %v6907
          %v7115 = vunpack.c.l.b16 %v6908
          %v7116 = vunpack.c.l.b16 %v6909
          %v7117 = vunpack.c.l.b16 %v6910
          %v7118 = vunpack.c.l.b16 %v6911
          %v7119 = vunpack.c.l.b16 %v6912
          %v7120 = vunpack.c.l.b16 %v6913
          %v7121 = vunpack.c.l.b16 %v6914
          %v7122 = vunpack.c.l.b16 %v6915
          %v7123 = vunpack.c.l.b16 %v6916
          %v7124 = vunpack.c.l.b16 %v6917
          %v7125 = vunpack.c.l.b16 %v6918
          %v7126 = vunpack.c.l.b16 %v6919
          %v7127 = vunpack.c.l.b16 %v6920
          %v7128 = vunpack.c.l.b16 %v6921
          %v7129 = vunpack.c.l.b16 %v6922
          %v7130 = vunpack.c.l.b16 %v6923
          %v7131 = vunpack.c.l.b16 %v6924
          %v7132 = vunpack.c.l.b16 %v6925
          %v7133 = vunpack.c.l.b16 %v6926
          %v7134 = vunpack.c.l.b16 %v6927
          %v7135 = vunpack.c.l.b16 %v6928
          %v7136 = vunpack.c.l.b16 %v6929
          %v7137 = vunpack.c.l.b16 %v6930
          %v7138 = vunpack.c.l.b16 %v6931
          %v7139 = vunpack.c.l.b16 %v6932
          %v7140 = vunpack.c.l.b16 %v6933
          %v7141 = vunpack.c.l.b16 %v6934
          %v7142 = vunpack.c.l.b16 %v6935
          %v7143 = vpack.c.b16 %v7044, %v7043
          %v7144 = vpack.c.b16 %v7046, %v7045
          %v7145 = vpack.c.b16 %v7048, %v7047
          %v7146 = vpack.c.b16 %v7050, %v7049
          %v7147 = vpack.c.b16 %v7052, %v7051
          %v7148 = vpack.c.b16 %v7054, %v7053
          %v7149 = vpack.c.b16 %v7056, %v7055
          %v7150 = vpack.c.b16 %v7058, %v7057
          %v7151 = vpack.c.b16 %v7060, %v7059
          %v7152 = vpack.c.b16 %v7062, %v7061
          %v7153 = vpack.c.b16 %v7064, %v7063
          %v7154 = vpack.c.b16 %v7066, %v7065
          %v7155 = vpack.c.b16 %v7068, %v7067
          %v7156 = vpack.c.b16 %v7070, %v7069
          %v7157 = vpack.c.b16 %v7072, %v7071
          %v7158 = vpack.c.b16 %v7074, %v7073
          %v7159 = vpack.c.b16 %v7076, %v7075
          %v7160 = vpack.c.b16 %v7078, %v7077
          %v7161 = vpack.c.b16 %v7080, %v7079
          %v7162 = vpack.c.b16 %v7082, %v7081
          %v7163 = vpack.c.b16 %v7084, %v7083
          %v7164 = vpack.c.b16 %v7086, %v7085
          %v7165 = vpack.c.b16 %v7088, %v7087
          %v7166 = vpack.c.b16 %v7090, %v7089
          %v7167 = vpack.c.b16 %v7092, %v7091
          %v7168 = vpack.c.b16 %v7094, %v7093
          %v7169 = vpack.c.b16 %v7096, %v7095
          %v7170 = vpack.c.b16 %v7098, %v7097
          %v7171 = vpack.c.b16 %v7100, %v7099
          %v7172 = vpack.c.b16 %v7102, %v7101
          %v7173 = vpack.c.b16 %v7104, %v7103
          %v7174 = vpack.c.b16 %v7106, %v7105
          %v7175 = vpack.c.b16 %v7108, %v7107
          %v7176 = vpack.c.b16 %v7110, %v7109
          %v7177 = vpack.c.b16 %v7112, %v7111
          %v7178 = vpack.c.b16 %v7114, %v7113
          %v7179 = vpack.c.b16 %v7116, %v7115
          %v7180 = vpack.c.b16 %v7118, %v7117
          %v7181 = vpack.c.b16 %v7120, %v7119
          %v7182 = vpack.c.b16 %v7122, %v7121
          %v7183 = vpack.c.b16 %v7124, %v7123
          %v7184 = vpack.c.b16 %v7126, %v7125
          %v7185 = vpack.c.b16 %v7128, %v7127
          %v7186 = vpack.c.b16 %v7130, %v7129
          %v7187 = vpack.c.b16 %v7132, %v7131
          %v7188 = vpack.c.b16 %v7134, %v7133
          %v7189 = vpack.c.b16 %v7136, %v7135
          %v7190 = vpack.c.b16 %v7138, %v7137
          %v7191 = vpack.c.b16 %v7140, %v7139
          %v7192 = vpack.c.b16 %v7142, %v7141
          %v7244 = vsel %vm2609, %v6835, 0
          %7246 = vmatprep.subr.bf16.mxu0 0
          %7247 = vmatpush1.bf16.msra.mxu0 %v7143
          %7248 = vmatprep.subr.bf16.mxu0 0
          %7249 = vmatpush1.bf16.msra.mxu0 %v7144
          %7250 = vmatprep.subr.bf16.mxu0 0
          %7251 = vmatpush1.bf16.msra.mxu0 %v7145
          %7252 = vmatprep.subr.bf16.mxu0 0
          %7253 = vmatpush1.bf16.msra.mxu0 %v7146
          %7254 = vmatprep.subr.bf16.mxu0 0
          %7255 = vmatpush1.bf16.msra.mxu0 %v7147
          %7256 = vmatprep.subr.bf16.mxu0 0
          %7257 = vmatpush1.bf16.msra.mxu0 %v7148
          %7258 = vmatprep.subr.bf16.mxu0 0
          %7259 = vmatpush1.bf16.msra.mxu0 %v7149
          %7260 = vmatprep.subr.bf16.mxu0 0
          %7261 = vmatpush1.bf16.msra.mxu0 %v7150
          %7262 = vmatprep.subr.bf16.mxu0 0
          %7263 = vmatpush1.bf16.msra.mxu0 %v7151
          %7264 = vmatprep.subr.bf16.mxu0 0
          %7265 = vmatpush1.bf16.msra.mxu0 %v7152
          %7266 = vmatprep.subr.bf16.mxu0 0
          %7267 = vmatpush1.bf16.msra.mxu0 %v7153
          %7268 = vmatprep.subr.bf16.mxu0 0
          %7269 = vmatpush1.bf16.msra.mxu0 %v7154
          %7270 = vmatprep.subr.bf16.mxu0 0
          %7271 = vmatpush1.bf16.msra.mxu0 %v7155
          %7272 = vmatprep.subr.bf16.mxu0 0
          %7273 = vmatpush1.bf16.msra.mxu0 %v7156
          %7274 = vmatprep.subr.bf16.mxu0 0
          %7275 = vmatpush1.bf16.msra.mxu0 %v7157
          %7276 = vmatprep.subr.bf16.mxu0 0
          %7277 = vmatpush1.bf16.msra.mxu0 %v7158
          %7278 = vmatprep.mubr.bf16.mxu0 %v6830
          %7279 = vmatmul.mubr.bf16.gmra.mrb[0].mxu0 %v6829
          %v7280 = vpop.f32.mrb[0].mxu0
          %v7281 = vadd.f32 %v6941, %v7280
          %v7282 = vpop.f32.mrb[0].mxu0
          %v7283 = vpop.f32.mrb[0].mxu0
          %v7284 = vpop.f32.mrb[0].mxu0
          %7285 = vdwg.mxu0
          %7286 = vmatprep.subr.bf16.mxu0 0
          %7287 = vmatpush1.bf16.msra.mxu0 %v7159
          %7288 = vmatprep.subr.bf16.mxu0 0
          %7289 = vmatpush1.bf16.msra.mxu0 %v7160
          %7290 = vmatprep.subr.bf16.mxu0 0
          %7291 = vmatpush1.bf16.msra.mxu0 %v7161
          %7292 = vmatprep.subr.bf16.mxu0 0
          %7293 = vmatpush1.bf16.msra.mxu0 %v7162
          %7294 = vmatprep.subr.bf16.mxu0 0
          %7295 = vmatpush1.bf16.msra.mxu0 %v7163
          %7296 = vmatprep.subr.bf16.mxu0 0
          %7297 = vmatpush1.bf16.msra.mxu0 %v7164
          %7298 = vmatprep.subr.bf16.mxu0 0
          %7299 = vmatpush1.bf16.msra.mxu0 %v7165
          %7300 = vmatprep.subr.bf16.mxu0 0
          %7301 = vmatpush1.bf16.msra.mxu0 %v7166
          %7302 = vmatprep.subr.bf16.mxu0 0
          %7303 = vmatpush1.bf16.msra.mxu0 %v7167
          %7304 = vmatprep.subr.bf16.mxu0 0
          %7305 = vmatpush1.bf16.msra.mxu0 %v7168
          %7306 = vmatprep.subr.bf16.mxu0 0
          %7307 = vmatpush1.bf16.msra.mxu0 %v7169
          %7308 = vmatprep.subr.bf16.mxu0 0
          %7309 = vmatpush1.bf16.msra.mxu0 %v7170
          %7310 = vmatprep.subr.bf16.mxu0 0
          %7311 = vmatpush1.bf16.msra.mxu0 %v7171
          %7312 = vmatprep.subr.bf16.mxu0 0
          %7313 = vmatpush1.bf16.msra.mxu0 %v7172
          %7314 = vmatprep.subr.bf16.mxu0 0
          %7315 = vmatpush1.bf16.msra.mxu0 %v7173
          %7316 = vmatprep.subr.bf16.mxu0 0
          %7317 = vmatpush1.bf16.msra.mxu0 %v7174
          %7318 = vmatprep.mubr.bf16.mxu0 %v6832
          %7319 = vmatmul.mubr.bf16.gmra.mrb[0].mxu0 %v6831
          %v7320 = vpop.f32.mrb[0].mxu0
          %v7321 = vadd.f32 %v7281, %v7320
          %v7322 = vpop.f32.mrb[0].mxu0
          %v7323 = vpop.f32.mrb[0].mxu0
          %v7324 = vpop.f32.mrb[0].mxu0
          %7325 = vdwg.mxu0
          %7326 = vmatprep.subr.bf16.mxu0 0
          %7327 = vmatpush1.bf16.msra.mxu0 %v7175
          %7328 = vmatprep.subr.bf16.mxu0 0
          %7329 = vmatpush1.bf16.msra.mxu0 %v7176
          %7330 = vmatprep.subr.bf16.mxu0 0
          %7331 = vmatpush1.bf16.msra.mxu0 %v7177
          %7332 = vmatprep.subr.bf16.mxu0 0
          %7333 = vmatpush1.bf16.msra.mxu0 %v7178
          %7334 = vmatprep.subr.bf16.mxu0 0
          %7335 = vmatpush1.bf16.msra.mxu0 %v7179
          %7336 = vmatprep.subr.bf16.mxu0 0
          %7337 = vmatpush1.bf16.msra.mxu0 %v7180
          %7338 = vmatprep.subr.bf16.mxu0 0
          %7339 = vmatpush1.bf16.msra.mxu0 %v7181
          %7340 = vmatprep.subr.bf16.mxu0 0
          %7341 = vmatpush1.bf16.msra.mxu0 %v7182
          %7342 = vmatprep.subr.bf16.mxu0 0
          %7343 = vmatpush1.bf16.msra.mxu0 %v7183
          %7344 = vmatprep.subr.bf16.mxu0 0
          %7345 = vmatpush1.bf16.msra.mxu0 %v7184
          %7346 = vmatprep.subr.bf16.mxu0 0
          %7347 = vmatpush1.bf16.msra.mxu0 %v7185
          %7348 = vmatprep.subr.bf16.mxu0 0
          %7349 = vmatpush1.bf16.msra.mxu0 %v7186
          %7350 = vmatprep.subr.bf16.mxu0 0
          %7351 = vmatpush1.bf16.msra.mxu0 %v7187
          %7352 = vmatprep.subr.bf16.mxu0 0
          %7353 = vmatpush1.bf16.msra.mxu0 %v7188
          %7354 = vmatprep.subr.bf16.mxu0 0
          %7355 = vmatpush1.bf16.msra.mxu0 %v7189
          %7356 = vmatprep.subr.bf16.mxu0 0
          %7357 = vmatpush1.bf16.msra.mxu0 %v7190
          %7358 = vmatprep.mubr.bf16.mxu0 %v6834
          %7359 = vmatmul.mubr.bf16.gmra.mrb[0].mxu0 %v6833
          %v7360 = vpop.f32.mrb[0].mxu0
          %v7361 = vadd.f32 %v7321, %v7360
          %v7362 = vpop.f32.mrb[0].mxu0
          %v7363 = vpop.f32.mrb[0].mxu0
          %v7364 = vpop.f32.mrb[0].mxu0
          %7365 = vdwg.mxu0
          %7366 = vmatprep.subr.bf16.mxu0 0
          %7367 = vmatpush1.bf16.msra.mxu0 %v7191
          %7368 = vmatprep.subr.bf16.mxu0 0
          %7369 = vmatpush1.bf16.msra.mxu0 %v7192
          %7370 = vmatprep.subr.bf16.mxu0 0
          %7371 = vmatpush1.bf16.msra.mxu0 0
          %7372 = vmatprep.subr.bf16.mxu0 0
          %7373 = vmatpush1.bf16.msra.mxu0 0
          %7374 = vmatprep.subr.bf16.mxu0 0
          %7375 = vmatpush1.bf16.msra.mxu0 0
          %7376 = vmatprep.subr.bf16.mxu0 0
          %7377 = vmatpush1.bf16.msra.mxu0 0
          %7378 = vmatprep.subr.bf16.mxu0 0
          %7379 = vmatpush1.bf16.msra.mxu0 0
          %7380 = vmatprep.subr.bf16.mxu0 0
          %7381 = vmatpush1.bf16.msra.mxu0 0
          %7382 = vmatprep.subr.bf16.mxu0 0
          %7383 = vmatpush1.bf16.msra.mxu0 0
          %7384 = vmatprep.subr.bf16.mxu0 0
          %7385 = vmatpush1.bf16.msra.mxu0 0
          %7386 = vmatprep.subr.bf16.mxu0 0
          %7387 = vmatpush1.bf16.msra.mxu0 0
          %7388 = vmatprep.subr.bf16.mxu0 0
          %7389 = vmatpush1.bf16.msra.mxu0 0
          %7390 = vmatprep.subr.bf16.mxu0 0
          %7391 = vmatpush1.bf16.msra.mxu0 0
          %7392 = vmatprep.subr.bf16.mxu0 0
          %7393 = vmatpush1.bf16.msra.mxu0 0
          %7394 = vmatprep.subr.bf16.mxu0 0
          %7395 = vmatpush1.bf16.msra.mxu0 0
          %7396 = vmatprep.subr.bf16.mxu0 0
          %7397 = vmatpush1.bf16.msra.mxu0 0
          %7398 = vmatprep.mubr.bf16.mxu0 0
          %7399 = vmatmul.mubr.bf16.gmra.mrb[0].mxu0 %v7244
          %v7400 = vpop.f32.mrb[0].mxu0
          %v7401 = vadd.f32 %v7361, %v7400
          %v7402 = vpop.f32.mrb[0].mxu0
          %v7403 = vpop.f32.mrb[0].mxu0
          %v7404 = vpop.f32.mrb[0].mxu0
          %7405 = vdwg.mxu0
          %vm7406 = vcmask 162816
          %7407 = vst.msk [vmem:[#allocation10] sm:$0xff] %vm7406, %v7401
        $region68: #{rosenet_forward.1} parent=43 // pred_fallthru
          _
        // Predicated region
        $region69: #{rosenet_forward.1} parent=43 // pred_check
          %p7408 = pneg %p181
        $region70: #{rosenet_forward.1} parent=43 // pred_check_branch
          %7410 = sbr.rel (%p7408) target = $region72
        $region71: #{rosenet_forward.1} parent=43 // pred_region
          _
        $region72: #{rosenet_forward.1} parent=43 // pred_fallthru
          _
        // Predicated region
        $region73: #{rosenet_forward.1} parent=43 // pred_check
          %p7411 = pneg %p202
        $region74: #{rosenet_forward.1} parent=43 // pred_check_branch
          %7413 = sbr.rel (%p7411) target = $region76
        $region75: #{rosenet_forward.1} parent=43 // pred_region
          %s7415 = ssub.s32 128, 128
          %7416 = vsyncadd [#allocation4], %s7415
          %s7418 = sshll.u32 [#allocation10], 4
          %s7419 = int_to_ptr.vmem [resolvable:$true] %s7418
          %7421 = dma.vmem_to_hbm [thread:$0]  %s7419, 128, %s7, [#allocation4]
        $region76: #{rosenet_forward.1} parent=43 // pred_fallthru
          _
        // Predicated region
        $region77: #{rosenet_forward.1} parent=43 // pred_check
          %p7422 = pneg %p181
        $region78: #{rosenet_forward.1} parent=43 // pred_check_branch
          %7424 = sbr.rel (%p7422) target = $region80
        $region79: #{rosenet_forward.1} parent=43 // pred_region
          _
        $region80: #{rosenet_forward.1} parent=43 // pred_fallthru
          _
        // Predicated region
        $region81: #{rosenet_forward.1} parent=43 // pred_check
          %p7425 = pneg %p202
        $region82: #{rosenet_forward.1} parent=43 // pred_check_branch
          %7427 = sbr.rel (%p7425) target = $region84
        $region83: #{rosenet_forward.1} parent=43 // pred_region
          %7428 = dma.done [#allocation4], 128
        $region84: #{rosenet_forward.1} parent=43 // pred_fallthru
          _
      $region44: #{rosenet_forward.1} parent=5 // pred_fallthru
        _
      %p7429 = scmp.le.s32.totalorder 2, %s22
      // Predicated region
      $region85: #{rosenet_forward.1} parent=5 // pred_check
        %p7430 = pneg %p7429
      $region86: #{rosenet_forward.1} parent=5 // pred_check_branch
        %7432 = sbr.rel (%p7430) target = $region88
      $region87: #{rosenet_forward.1} parent=5 // pred_region
        %s7433 = ssub.s32 %s22, 2
      $region88: #{rosenet_forward.1} parent=5 // pred_fallthru
        _
    $region6: #{rosenet_forward.1} parent=1 // loop_footer
      %s26 = sadd.s32 1, %s22
    $region7: #{rosenet_forward.1} parent=1 // loop_footer_branch
      %21 = sbr.rel target = $region3
    $region8: #{rosenet_forward.1} parent=1 // loop_exit
      _
    %7434 = vsyncpa [#allocation3], 1
    %s7435 = scalar_lea.sflag [#allocation3], 1
    %7436 = vsyncpa %s7435, 1
    %7437 = vsyncpa [#allocation6], 1
    %s7438 = scalar_lea.sflag [#allocation6], 1
    %7439 = vsyncpa %s7438, 1
    %7440 = vsyncpa [#allocation9], 1
    %7441 = vsyncpa [#allocation4], 1
    %s7442 = scalar_lea.sflag [#allocation4], 1
    %7443 = vsyncpa %s7442, 1

</llo_original>
